<compile_context>
chip_gen: v6e
topology: v6e:2x2x1
jax: 0.10.0
libtpu: 0.0.40
codegen_flags: <defaults>
</compile_context>

<pallas_src>
import functools

import jax
import jax.numpy as jnp
from jax.experimental import pallas as pl
from jax.experimental.pallas import tpu as pltpu

# Near-exact f32 matmuls for both the kernel's dots and the reference einsums, so the
# comparison is not polluted by single-pass bf16 MXU truncation.
jax.config.update("jax_default_matmul_precision", "highest")


# ------------------------------ fused Pallas kernel ------------------------------ #

def _fused_attn_kernel(x_ref, wqkv_ref, bqkv_ref, wo_ref, bo_ref, rope_ref, o_ref,
                       *, n_heads):
    # x_ref:    (bt, L, H)   latents for this batch block
    # wqkv_ref: (H, 5H)      fused [Wq | Wq_rot | Wk | Wk_rot | Wv]
    # bqkv_ref: (1, 5H)      fused [bq | rot(bq) | bk | rot(bk) | bv]
    # wo_ref:   (H, H), bo_ref: (1, H)
    # rope_ref: (4, L, H)    [cos_q*scale, sin_q*scale, cos_k, sin_k], head-tiled
    # o_ref:    (bt, L, H)
    bt, L, H = x_ref.shape
    hd = H // n_heads

    # Fused projection for all bt*L rows: one MXU matmul produces Q, rotate_half(Q),
    # K, rotate_half(K) and V at once (rotate_half is folded into the weight columns).
    x = x_ref[...].reshape(bt * L, H)
    qkv = jnp.dot(x, wqkv_ref[...], preferred_element_type=jnp.float32)
    qkv = (qkv + bqkv_ref[...]).reshape(bt, L, 5 * H)

    rope = rope_ref[...]                                     # (4, L, H)
    cos_q, sin_q, cos_k, sin_k = rope[0], rope[1], rope[2], rope[3]

    # Full-width RoPE: two FMAs on (bt, L, H) slabs, no per-head slicing, no half-swap.
    q = qkv[:, :, 0 * H:1 * H] * cos_q + qkv[:, :, 1 * H:2 * H] * sin_q   # pre-scaled
    k = qkv[:, :, 2 * H:3 * H] * cos_k + qkv[:, :, 3 * H:4 * H] * sin_k
    v = qkv[:, :, 4 * H:5 * H]

    # Per-(batch-row, head) attention; tiny (L, hd) tiles, statically unrolled.
    rows = []
    for b in range(bt):
        heads = []
        for h in range(n_heads):
            qh = q[b, :, h * hd:(h + 1) * hd]
            kh = k[b, :, h * hd:(h + 1) * hd]
            vh = v[b, :, h * hd:(h + 1) * hd]
            s = jax.lax.dot_general(qh, kh, (((1,), (1,)), ((), ())),
                                    preferred_element_type=jnp.float32)   # (L, L)
            p = jnp.exp(s - jnp.max(s, axis=-1, keepdims=True))
            p = p / jnp.sum(p, axis=-1, keepdims=True)        # exact divide (correctness)
            heads.append(jnp.dot(p, vh, preferred_element_type=jnp.float32))
        rows.append(jnp.concatenate(heads, axis=-1))          # (L, H)
    attn = jnp.concatenate(rows, axis=0) if bt > 1 else rows[0]           # (bt*L, H)

    # Output projection for the whole batch block in one matmul; lane-dense store.
    out = jnp.dot(attn, wo_ref[...], preferred_element_type=jnp.float32) + bo_ref[...]
    o_ref[...] = out.reshape(bt, L, H).astype(o_ref.dtype)


# --------------------------------- module glue ---------------------------------- #

def get_cos_sin(dim, max_latent_positions, base=10000.0, dtype=jnp.float32):
    inv_freq = 1.0 / (base ** (jnp.arange(0, dim, 2, dtype=jnp.float32) / dim))
    t = jnp.arange(max_latent_positions, dtype=jnp.float32)
    freqs = jnp.einsum("i,j->ij", t, inv_freq)
    emb = jnp.concatenate((freqs, freqs), axis=-1)
    return jnp.cos(emb).astype(dtype), jnp.sin(emb).astype(dtype)


def init_params(key, hidden_size):
    ks = jax.random.split(key, 8)
    s = 1.0 / (hidden_size ** 0.5)
    return {
        "wq": jax.random.normal(ks[0], (hidden_size, hidden_size), jnp.float32) * s,
        "bq": jax.random.normal(ks[1], (hidden_size,), jnp.float32) * 0.01,
        "wk": jax.random.normal(ks[2], (hidden_size, hidden_size), jnp.float32) * s,
        "bk": jax.random.normal(ks[3], (hidden_size,), jnp.float32) * 0.01,
        "wv": jax.random.normal(ks[4], (hidden_size, hidden_size), jnp.float32) * s,
        "bv": jax.random.normal(ks[5], (hidden_size,), jnp.float32) * 0.01,
        "wo": jax.random.normal(ks[6], (hidden_size, hidden_size), jnp.float32) * s,
        "bo": jax.random.normal(ks[7], (hidden_size,), jnp.float32) * 0.01,
    }


def _largest_divisor_at_most(n, cap):
    for c in range(max(1, min(cap, n)), 0, -1):
        if n % c == 0:
            return c
    return 1


def neural_attention_forward(params, latents, cos, sin, latents_timestamp, n_heads,
                             int_dtype=jnp.int32, batch_block=None):
    """Self-attention path of NeuralAttention.forward (target=None, target_mask=None,
    dropout=0.0) as one fused Pallas kernel."""
    B, L, H = latents.shape
    hd = H // n_heads
    half = hd // 2
    scale = 1.0 / float(hd) ** 0.5

    # RoPE tables gathered once (positions shared across the batch on this path),
    # tiled across heads to full (L, H) width; softmax scale folded into the Q tables.
    ts = latents_timestamp.astype(int_dtype)                       # (L,)  (trunc like torch)
    cos_full = jnp.tile(cos[ts], (1, n_heads))                     # (L, H)
    sin_full = jnp.tile(sin[ts], (1, n_heads))
    rope = jnp.stack([cos_full * scale, sin_full * scale, cos_full, sin_full], axis=0)

    # Fold rotate_half into extra weight/bias columns:
    #   x @ W_rot + rot(b)  ==  rotate_half(x @ W + b)   (exact: column permutation + sign).
    def rot_cols(w):
        w3 = w.reshape(H, n_heads, hd)
        return jnp.concatenate([-w3[..., half:], w3[..., :half]], axis=-1).reshape(H, H)

    def rot_bias(b):
        b2 = b.reshape(n_heads, hd)
        return jnp.concatenate([-b2[:, half:], b2[:, :half]], axis=-1).reshape(H)

    wq, wk, wv = params["wq"], params["wk"], params["wv"]
    bq, bk, bv = params["bq"], params["bk"], params["bv"]
    wqkv = jnp.concatenate([wq, rot_cols(wq), wk, rot_cols(wk), wv], axis=1)   # (H, 5H)
    bqkv = jnp.concatenate([bq, rot_bias(bq), bk, rot_bias(bk), bv]).reshape(1, 5 * H)
    wo = params["wo"]
    bo = params["bo"].reshape(1, H)

    # Batch blocking: amortize per-grid-step overhead and fill MXU sublanes, while
    # keeping >=2 grid steps so v7x's 2 TensorCores both get work ("parallel" axis).
    if batch_block is None:
        batch_block = max(1, min(8, B // 2)) if B > 1 else 1
    bt = _largest_divisor_at_most(B, batch_block)

    kernel = functools.partial(_fused_attn_kernel, n_heads=n_heads)
    return pl.pallas_call(
        kernel,
        out_shape=jax.ShapeDtypeStruct((B, L, H), latents.dtype),
        grid=(B // bt,),
        in_specs=[
            pl.BlockSpec((bt, L, H), lambda b: (b, 0, 0)),     # latents (per batch block)
            pl.BlockSpec((H, 5 * H), lambda b: (0, 0)),        # fused [Wq|Wq_rot|Wk|Wk_rot|Wv]
            pl.BlockSpec((1, 5 * H), lambda b: (0, 0)),        # fused bias
            pl.BlockSpec((H, H), lambda b: (0, 0)),            # Wo
            pl.BlockSpec((1, H), lambda b: (0, 0)),            # bo
            pl.BlockSpec((4, L, H), lambda b: (0, 0, 0)),      # merged RoPE tables
        ],
        out_specs=pl.BlockSpec((bt, L, H), lambda b: (b, 0, 0)),
        compiler_params=pltpu.CompilerParams(
            dimension_semantics=("parallel",),                 # batch axis -> 2 TCs on v7x
            vmem_limit_bytes=32 * 1024 * 1024,
        ),
    )(latents, wqkv, bqkv, wo, bo, rope)


# ------------------------------ pure-JAX reference ------------------------------- #

def reference_forward(params, latents, cos, sin, latents_timestamp, n_heads):
    B, L, H = latents.shape
    hd = H // n_heads
    ts = jnp.broadcast_to(latents_timestamp.astype(jnp.int32)[None, :], (B, L))

    q = latents @ params["wq"] + params["bq"]
    k = latents @ params["wk"] + params["bk"]
    v = latents @ params["wv"] + params["bv"]

    def sh(x):
        return x.reshape(B, L, n_heads, hd).transpose(0, 2, 1, 3)

    q, k, v = sh(q), sh(k), sh(v)
    cq, sq = cos[ts][:, None], sin[ts][:, None]

    def rh(x):
        h = x.shape[-1] // 2
        return jnp.concatenate((-x[..., h:], x[..., :h]), axis=-1)

    q = q * cq + rh(q) * sq
    k = k * cq + rh(k) * sq
    s = jnp.einsum("bhld,bhtd->bhlt", q, k) * (1.0 / float(hd) ** 0.5)
    p = jax.nn.softmax(s, axis=-1)
    o = jnp.einsum("bhlt,bhtd->bhld", p, v)
    o = o.transpose(0, 2, 1, 3).reshape(B, L, H)
    return o @ params["wo"] + params["bo"]


# ------------------------------------- main -------------------------------------- #

if __name__ == "__main__":
    key = jax.random.PRNGKey(0)
    k_lat, k_par = jax.random.split(key)

    # NeuralAttention(n_latents=8, hidden_size=64, n_heads=4, use_bias=True,
    #                 dropout=0.0, max_n_latents=32, base=10000, idx=0)
    B, n_latents, hidden, n_heads = 2, 8, 64, 4
    max_n_latents, base = 32, 10000.0
    head_size = hidden // n_heads

    latents = jax.random.normal(k_lat, (B, n_latents, hidden), jnp.float32)
    params = init_params(k_par, hidden)

    cos, sin = get_cos_sin(head_size, max_n_latents, base=base)
    latents_timestamp = (jnp.arange(n_latents, dtype=jnp.float32)
                         * (max_n_latents - 1) / (n_latents - 1))

    out = neural_attention_forward(params, latents, cos, sin, latents_timestamp, n_heads)
    out = jax.block_until_ready(out)

    ref = reference_forward(params, latents, cos, sin, latents_timestamp, n_heads)
    assert out.shape == (B, n_latents, hidden)
    assert jnp.allclose(out, ref, atol=1e-3, rtol=1e-3), "Pallas output mismatch vs reference"

    print("KERNEL_OK")
</pallas_src>

<mosaic_0001>
module attributes {stable_mosaic.version = 11 : i64} {
  func.func @_fused_attn_kernel(%arg0: i32, %arg1: memref<1x8x64xf32, #tpu.memory_space<vmem>>, %arg2: memref<64x320xf32, #tpu.memory_space<vmem>>, %arg3: memref<1x320xf32, #tpu.memory_space<vmem>>, %arg4: memref<64x64xf32, #tpu.memory_space<vmem>>, %arg5: memref<1x64xf32, #tpu.memory_space<vmem>>, %arg6: memref<4x8x64xf32, #tpu.memory_space<vmem>>, %arg7: memref<1x8x64xf32, #tpu.memory_space<vmem>>) attributes {dimension_semantics = [#tpu.dimension_semantics<parallel>], iteration_bounds = array<i64: 2>, scalar_prefetch = 0 : i64, scratch_operands = 0 : i64, tpu.core_type = #tpu.core_type<tc>, window_params = [{transform_indices = @transform_0, window_bounds = array<i64: 1, 8, 64>}, {pipeline_mode = #tpu.pipeline_mode<synchronous>, transform_indices = @transform_1, window_bounds = array<i64: 64, 320>}, {pipeline_mode = #tpu.pipeline_mode<synchronous>, transform_indices = @transform_2, window_bounds = array<i64: 1, 320>}, {pipeline_mode = #tpu.pipeline_mode<synchronous>, transform_indices = @transform_3, window_bounds = array<i64: 64, 64>}, {pipeline_mode = #tpu.pipeline_mode<synchronous>, transform_indices = @transform_4, window_bounds = array<i64: 1, 64>}, {pipeline_mode = #tpu.pipeline_mode<synchronous>, transform_indices = @transform_5, window_bounds = array<i64: 4, 8, 64>}, {transform_indices = @transform_6, window_bounds = array<i64: 1, 8, 64>}]} {
    %c0 = arith.constant 0 : index
    %c0_0 = arith.constant 0 : index
    %c0_1 = arith.constant 0 : index
    %0 = vector.load %arg1[%c0, %c0_0, %c0_1] : memref<1x8x64xf32, #tpu.memory_space<vmem>>, vector<1x8x64xf32>
    %1 = vector.shape_cast %0 : vector<1x8x64xf32> to vector<8x64xf32>
    %c0_2 = arith.constant 0 : index
    %c0_3 = arith.constant 0 : index
    %2 = vector.load %arg2[%c0_2, %c0_3] : memref<64x320xf32, #tpu.memory_space<vmem>>, vector<64x320xf32>
    %cst = arith.constant dense<0.000000e+00> : vector<8x320xf32>
    %3 = tpu.matmul %1, %2, %cst {dimension_numbers = #tpu.dot_dimension_numbers<[1], [0], [0], [1], [0, 0, 1, 1], [], []>, precision = #tpu.contract_precision<fp32>} : vector<8x64xf32>, vector<64x320xf32>, vector<8x320xf32> -> vector<8x320xf32>
    %c0_4 = arith.constant 0 : index
    %c0_5 = arith.constant 0 : index
    %4 = vector.load %arg3[%c0_4, %c0_5] : memref<1x320xf32, #tpu.memory_space<vmem>>, vector<1x320xf32>
    %5 = vector.broadcast %4 : vector<1x320xf32> to vector<8x320xf32>
    %6 = arith.addf %3, %5 : vector<8x320xf32>
    %7 = vector.shape_cast %6 : vector<8x320xf32> to vector<1x8x320xf32>
    %c0_6 = arith.constant 0 : index
    %c0_7 = arith.constant 0 : index
    %c0_8 = arith.constant 0 : index
    %8 = vector.load %arg6[%c0_6, %c0_7, %c0_8] : memref<4x8x64xf32, #tpu.memory_space<vmem>>, vector<4x8x64xf32>
    %9 = vector.extract_strided_slice %8 {offsets = [0, 0, 0], sizes = [1, 8, 64], strides = [1, 1, 1]} : vector<4x8x64xf32> to vector<1x8x64xf32>
    %10 = vector.shape_cast %9 : vector<1x8x64xf32> to vector<8x64xf32>
    %11 = vector.extract_strided_slice %8 {offsets = [1, 0, 0], sizes = [1, 8, 64], strides = [1, 1, 1]} : vector<4x8x64xf32> to vector<1x8x64xf32>
    %12 = vector.shape_cast %11 : vector<1x8x64xf32> to vector<8x64xf32>
    %13 = vector.extract_strided_slice %8 {offsets = [2, 0, 0], sizes = [1, 8, 64], strides = [1, 1, 1]} : vector<4x8x64xf32> to vector<1x8x64xf32>
    %14 = vector.shape_cast %13 : vector<1x8x64xf32> to vector<8x64xf32>
    %15 = vector.extract_strided_slice %8 {offsets = [3, 0, 0], sizes = [1, 8, 64], strides = [1, 1, 1]} : vector<4x8x64xf32> to vector<1x8x64xf32>
    %16 = vector.shape_cast %15 : vector<1x8x64xf32> to vector<8x64xf32>
    %17 = vector.extract_strided_slice %7 {offsets = [0, 0, 0], sizes = [1, 8, 64], strides = [1, 1, 1]} : vector<1x8x320xf32> to vector<1x8x64xf32>
    %18 = vector.shape_cast %10 : vector<8x64xf32> to vector<1x8x64xf32>
    %19 = arith.mulf %17, %18 : vector<1x8x64xf32>
    %20 = vector.extract_strided_slice %7 {offsets = [0, 0, 64], sizes = [1, 8, 64], strides = [1, 1, 1]} : vector<1x8x320xf32> to vector<1x8x64xf32>
    %21 = vector.shape_cast %12 : vector<8x64xf32> to vector<1x8x64xf32>
    %22 = arith.mulf %20, %21 : vector<1x8x64xf32>
    %23 = arith.addf %19, %22 : vector<1x8x64xf32>
    %24 = vector.extract_strided_slice %7 {offsets = [0, 0, 128], sizes = [1, 8, 64], strides = [1, 1, 1]} : vector<1x8x320xf32> to vector<1x8x64xf32>
    %25 = vector.shape_cast %14 : vector<8x64xf32> to vector<1x8x64xf32>
    %26 = arith.mulf %24, %25 : vector<1x8x64xf32>
    %27 = vector.extract_strided_slice %7 {offsets = [0, 0, 192], sizes = [1, 8, 64], strides = [1, 1, 1]} : vector<1x8x320xf32> to vector<1x8x64xf32>
    %28 = vector.shape_cast %16 : vector<8x64xf32> to vector<1x8x64xf32>
    %29 = arith.mulf %27, %28 : vector<1x8x64xf32>
    %30 = arith.addf %26, %29 : vector<1x8x64xf32>
    %31 = vector.extract_strided_slice %7 {offsets = [0, 0, 256], sizes = [1, 8, 64], strides = [1, 1, 1]} : vector<1x8x320xf32> to vector<1x8x64xf32>
    %32 = vector.extract_strided_slice %23 {offsets = [0, 0, 0], sizes = [1, 8, 16], strides = [1, 1, 1]} : vector<1x8x64xf32> to vector<1x8x16xf32>
    %33 = vector.shape_cast %32 : vector<1x8x16xf32> to vector<8x16xf32>
    %34 = vector.extract_strided_slice %30 {offsets = [0, 0, 0], sizes = [1, 8, 16], strides = [1, 1, 1]} : vector<1x8x64xf32> to vector<1x8x16xf32>
    %35 = vector.shape_cast %34 : vector<1x8x16xf32> to vector<8x16xf32>
    %36 = vector.extract_strided_slice %31 {offsets = [0, 0, 0], sizes = [1, 8, 16], strides = [1, 1, 1]} : vector<1x8x64xf32> to vector<1x8x16xf32>
    %37 = vector.shape_cast %36 : vector<1x8x16xf32> to vector<8x16xf32>
    %cst_9 = arith.constant dense<0.000000e+00> : vector<8x8xf32>
    %38 = tpu.matmul %33, %35, %cst_9 {dimension_numbers = #tpu.dot_dimension_numbers<[1], [1], [0], [0], [0, 0, 1, 0], [], []>, precision = #tpu.contract_precision<fp32>} : vector<8x16xf32>, vector<8x16xf32>, vector<8x8xf32> -> vector<8x8xf32>
    %cst_10 = arith.constant dense<0xFF800000> : vector<8xf32>
    %39 = vector.multi_reduction <maximumf>, %38, %cst_10 [1] : vector<8x8xf32> to vector<8xf32>
    %40 = vector.shape_cast %39 : vector<8xf32> to vector<8x1xf32>
    %41 = vector.broadcast %40 : vector<8x1xf32> to vector<8x8xf32>
    %42 = arith.subf %38, %41 : vector<8x8xf32>
    %43 = math.exp %42 : vector<8x8xf32>
    %cst_11 = arith.constant dense<0.000000e+00> : vector<8xf32>
    %44 = vector.multi_reduction <add>, %43, %cst_11 [1] : vector<8x8xf32> to vector<8xf32>
    %45 = vector.shape_cast %44 : vector<8xf32> to vector<8x1xf32>
    %46 = vector.broadcast %45 : vector<8x1xf32> to vector<8x8xf32>
    %47 = arith.divf %43, %46 : vector<8x8xf32>
    %cst_12 = arith.constant dense<0.000000e+00> : vector<8x16xf32>
    %48 = tpu.matmul %47, %37, %cst_12 {dimension_numbers = #tpu.dot_dimension_numbers<[1], [0], [0], [1], [0, 0, 1, 1], [], []>, precision = #tpu.contract_precision<fp32>} : vector<8x8xf32>, vector<8x16xf32>, vector<8x16xf32> -> vector<8x16xf32>
    %49 = vector.extract_strided_slice %23 {offsets = [0, 0, 16], sizes = [1, 8, 16], strides = [1, 1, 1]} : vector<1x8x64xf32> to vector<1x8x16xf32>
    %50 = vector.shape_cast %49 : vector<1x8x16xf32> to vector<8x16xf32>
    %51 = vector.extract_strided_slice %30 {offsets = [0, 0, 16], sizes = [1, 8, 16], strides = [1, 1, 1]} : vector<1x8x64xf32> to vector<1x8x16xf32>
    %52 = vector.shape_cast %51 : vector<1x8x16xf32> to vector<8x16xf32>
    %53 = vector.extract_strided_slice %31 {offsets = [0, 0, 16], sizes = [1, 8, 16], strides = [1, 1, 1]} : vector<1x8x64xf32> to vector<1x8x16xf32>
    %54 = vector.shape_cast %53 : vector<1x8x16xf32> to vector<8x16xf32>
    %cst_13 = arith.constant dense<0.000000e+00> : vector<8x8xf32>
    %55 = tpu.matmul %50, %52, %cst_13 {dimension_numbers = #tpu.dot_dimension_numbers<[1], [1], [0], [0], [0, 0, 1, 0], [], []>, precision = #tpu.contract_precision<fp32>} : vector<8x16xf32>, vector<8x16xf32>, vector<8x8xf32> -> vector<8x8xf32>
    %cst_14 = arith.constant dense<0xFF800000> : vector<8xf32>
    %56 = vector.multi_reduction <maximumf>, %55, %cst_14 [1] : vector<8x8xf32> to vector<8xf32>
    %57 = vector.shape_cast %56 : vector<8xf32> to vector<8x1xf32>
    %58 = vector.broadcast %57 : vector<8x1xf32> to vector<8x8xf32>
    %59 = arith.subf %55, %58 : vector<8x8xf32>
    %60 = math.exp %59 : vector<8x8xf32>
    %cst_15 = arith.constant dense<0.000000e+00> : vector<8xf32>
    %61 = vector.multi_reduction <add>, %60, %cst_15 [1] : vector<8x8xf32> to vector<8xf32>
    %62 = vector.shape_cast %61 : vector<8xf32> to vector<8x1xf32>
    %63 = vector.broadcast %62 : vector<8x1xf32> to vector<8x8xf32>
    %64 = arith.divf %60, %63 : vector<8x8xf32>
    %cst_16 = arith.constant dense<0.000000e+00> : vector<8x16xf32>
    %65 = tpu.matmul %64, %54, %cst_16 {dimension_numbers = #tpu.dot_dimension_numbers<[1], [0], [0], [1], [0, 0, 1, 1], [], []>, precision = #tpu.contract_precision<fp32>} : vector<8x8xf32>, vector<8x16xf32>, vector<8x16xf32> -> vector<8x16xf32>
    %66 = vector.extract_strided_slice %23 {offsets = [0, 0, 32], sizes = [1, 8, 16], strides = [1, 1, 1]} : vector<1x8x64xf32> to vector<1x8x16xf32>
    %67 = vector.shape_cast %66 : vector<1x8x16xf32> to vector<8x16xf32>
    %68 = vector.extract_strided_slice %30 {offsets = [0, 0, 32], sizes = [1, 8, 16], strides = [1, 1, 1]} : vector<1x8x64xf32> to vector<1x8x16xf32>
    %69 = vector.shape_cast %68 : vector<1x8x16xf32> to vector<8x16xf32>
    %70 = vector.extract_strided_slice %31 {offsets = [0, 0, 32], sizes = [1, 8, 16], strides = [1, 1, 1]} : vector<1x8x64xf32> to vector<1x8x16xf32>
    %71 = vector.shape_cast %70 : vector<1x8x16xf32> to vector<8x16xf32>
    %cst_17 = arith.constant dense<0.000000e+00> : vector<8x8xf32>
    %72 = tpu.matmul %67, %69, %cst_17 {dimension_numbers = #tpu.dot_dimension_numbers<[1], [1], [0], [0], [0, 0, 1, 0], [], []>, precision = #tpu.contract_precision<fp32>} : vector<8x16xf32>, vector<8x16xf32>, vector<8x8xf32> -> vector<8x8xf32>
    %cst_18 = arith.constant dense<0xFF800000> : vector<8xf32>
    %73 = vector.multi_reduction <maximumf>, %72, %cst_18 [1] : vector<8x8xf32> to vector<8xf32>
    %74 = vector.shape_cast %73 : vector<8xf32> to vector<8x1xf32>
    %75 = vector.broadcast %74 : vector<8x1xf32> to vector<8x8xf32>
    %76 = arith.subf %72, %75 : vector<8x8xf32>
    %77 = math.exp %76 : vector<8x8xf32>
    %cst_19 = arith.constant dense<0.000000e+00> : vector<8xf32>
    %78 = vector.multi_reduction <add>, %77, %cst_19 [1] : vector<8x8xf32> to vector<8xf32>
    %79 = vector.shape_cast %78 : vector<8xf32> to vector<8x1xf32>
    %80 = vector.broadcast %79 : vector<8x1xf32> to vector<8x8xf32>
    %81 = arith.divf %77, %80 : vector<8x8xf32>
    %cst_20 = arith.constant dense<0.000000e+00> : vector<8x16xf32>
    %82 = tpu.matmul %81, %71, %cst_20 {dimension_numbers = #tpu.dot_dimension_numbers<[1], [0], [0], [1], [0, 0, 1, 1], [], []>, precision = #tpu.contract_precision<fp32>} : vector<8x8xf32>, vector<8x16xf32>, vector<8x16xf32> -> vector<8x16xf32>
    %83 = vector.extract_strided_slice %23 {offsets = [0, 0, 48], sizes = [1, 8, 16], strides = [1, 1, 1]} : vector<1x8x64xf32> to vector<1x8x16xf32>
    %84 = vector.shape_cast %83 : vector<1x8x16xf32> to vector<8x16xf32>
    %85 = vector.extract_strided_slice %30 {offsets = [0, 0, 48], sizes = [1, 8, 16], strides = [1, 1, 1]} : vector<1x8x64xf32> to vector<1x8x16xf32>
    %86 = vector.shape_cast %85 : vector<1x8x16xf32> to vector<8x16xf32>
    %87 = vector.extract_strided_slice %31 {offsets = [0, 0, 48], sizes = [1, 8, 16], strides = [1, 1, 1]} : vector<1x8x64xf32> to vector<1x8x16xf32>
    %88 = vector.shape_cast %87 : vector<1x8x16xf32> to vector<8x16xf32>
    %cst_21 = arith.constant dense<0.000000e+00> : vector<8x8xf32>
    %89 = tpu.matmul %84, %86, %cst_21 {dimension_numbers = #tpu.dot_dimension_numbers<[1], [1], [0], [0], [0, 0, 1, 0], [], []>, precision = #tpu.contract_precision<fp32>} : vector<8x16xf32>, vector<8x16xf32>, vector<8x8xf32> -> vector<8x8xf32>
    %cst_22 = arith.constant dense<0xFF800000> : vector<8xf32>
    %90 = vector.multi_reduction <maximumf>, %89, %cst_22 [1] : vector<8x8xf32> to vector<8xf32>
    %91 = vector.shape_cast %90 : vector<8xf32> to vector<8x1xf32>
    %92 = vector.broadcast %91 : vector<8x1xf32> to vector<8x8xf32>
    %93 = arith.subf %89, %92 : vector<8x8xf32>
    %94 = math.exp %93 : vector<8x8xf32>
    %cst_23 = arith.constant dense<0.000000e+00> : vector<8xf32>
    %95 = vector.multi_reduction <add>, %94, %cst_23 [1] : vector<8x8xf32> to vector<8xf32>
    %96 = vector.shape_cast %95 : vector<8xf32> to vector<8x1xf32>
    %97 = vector.broadcast %96 : vector<8x1xf32> to vector<8x8xf32>
    %98 = arith.divf %94, %97 : vector<8x8xf32>
    %cst_24 = arith.constant dense<0.000000e+00> : vector<8x16xf32>
    %99 = tpu.matmul %98, %88, %cst_24 {dimension_numbers = #tpu.dot_dimension_numbers<[1], [0], [0], [1], [0, 0, 1, 1], [], []>, precision = #tpu.contract_precision<fp32>} : vector<8x8xf32>, vector<8x16xf32>, vector<8x16xf32> -> vector<8x16xf32>
    %100 = tpu.concatenate %48, %65, %82, %99 in 1 : vector<8x16xf32>, vector<8x16xf32>, vector<8x16xf32>, vector<8x16xf32> -> vector<8x64xf32>
    %c0_25 = arith.constant 0 : index
    %c0_26 = arith.constant 0 : index
    %101 = vector.load %arg4[%c0_25, %c0_26] : memref<64x64xf32, #tpu.memory_space<vmem>>, vector<64x64xf32>
    %cst_27 = arith.constant dense<0.000000e+00> : vector<8x64xf32>
    %102 = tpu.matmul %100, %101, %cst_27 {dimension_numbers = #tpu.dot_dimension_numbers<[1], [0], [0], [1], [0, 0, 1, 1], [], []>, precision = #tpu.contract_precision<fp32>} : vector<8x64xf32>, vector<64x64xf32>, vector<8x64xf32> -> vector<8x64xf32>
    %c0_28 = arith.constant 0 : index
    %c0_29 = arith.constant 0 : index
    %103 = vector.load %arg5[%c0_28, %c0_29] : memref<1x64xf32, #tpu.memory_space<vmem>>, vector<1x64xf32>
    %104 = vector.broadcast %103 : vector<1x64xf32> to vector<8x64xf32>
    %105 = arith.addf %102, %104 : vector<8x64xf32>
    %106 = vector.shape_cast %105 : vector<8x64xf32> to vector<1x8x64xf32>
    %c0_30 = arith.constant 0 : index
    %c0_31 = arith.constant 0 : index
    %c0_32 = arith.constant 0 : index
    %107 = vector.load %arg7[%c0_30, %c0_31, %c0_32] : memref<1x8x64xf32, #tpu.memory_space<vmem>>, vector<1x8x64xf32>
    tpu.vector_store %arg7[%c0_30, %c0_31, %c0_32], %106 {strides = array<i32>} : memref<1x8x64xf32, #tpu.memory_space<vmem>>, vector<1x8x64xf32>,
    return
  }
  func.func @transform_0(%arg0: i32) -> (i32, i32, i32) {
    %c0_i32 = arith.constant 0 : i32
    %c0_i32_0 = arith.constant 0 : i32
    %c0_i32_1 = arith.constant 0 : i32
    return %arg0, %c0_i32, %c0_i32_0 : i32, i32, i32
  }
  func.func @transform_1(%arg0: i32) -> (i32, i32) {
    %c0_i32 = arith.constant 0 : i32
    %c0_i32_0 = arith.constant 0 : i32
    %c0_i32_1 = arith.constant 0 : i32
    return %c0_i32, %c0_i32_0 : i32, i32
  }
  func.func @transform_2(%arg0: i32) -> (i32, i32) {
    %c0_i32 = arith.constant 0 : i32
    %c0_i32_0 = arith.constant 0 : i32
    %c0_i32_1 = arith.constant 0 : i32
    return %c0_i32, %c0_i32_0 : i32, i32
  }
  func.func @transform_3(%arg0: i32) -> (i32, i32) {
    %c0_i32 = arith.constant 0 : i32
    %c0_i32_0 = arith.constant 0 : i32
    %c0_i32_1 = arith.constant 0 : i32
    return %c0_i32, %c0_i32_0 : i32, i32
  }
  func.func @transform_4(%arg0: i32) -> (i32, i32) {
    %c0_i32 = arith.constant 0 : i32
    %c0_i32_0 = arith.constant 0 : i32
    %c0_i32_1 = arith.constant 0 : i32
    return %c0_i32, %c0_i32_0 : i32, i32
  }
  func.func @transform_5(%arg0: i32) -> (i32, i32, i32) {
    %c0_i32 = arith.constant 0 : i32
    %c0_i32_0 = arith.constant 0 : i32
    %c0_i32_1 = arith.constant 0 : i32
    %c0_i32_2 = arith.constant 0 : i32
    return %c0_i32, %c0_i32_0, %c0_i32_1 : i32, i32, i32
  }
  func.func @transform_6(%arg0: i32) -> (i32, i32, i32) {
    %c0_i32 = arith.constant 0 : i32
    %c0_i32_0 = arith.constant 0 : i32
    %c0_i32_1 = arith.constant 0 : i32
    return %arg0, %c0_i32, %c0_i32_0 : i32, i32, i32
  }
}

</mosaic_0001>

<llo_original>
// kernel: tpu_custom_call.1
$region0: #{tpu_custom_call.1}
  #allocation0 [shape = 'u32[]', space=smem, size = 0x4, offset = 0x4, fixed_abs, tag = 'smem constant byte address 0x4 - core index']
  #allocation1 [shape = 'u32[144,128]{1,0:T(1,128)}', space=vmem, size = 0x12000, scoped, tag = 'internal scratch']
  %s0 = inlined_call_operand.hbm [shape: f32[2,8,64], index: 0, kind: input, shape index: {}]
  %s1 = inlined_call_operand.hbm [shape: f32[64,320], index: 1, kind: input, shape index: {}]
  %s2 = inlined_call_operand.vmem [shape: f32[1,320], index: 2, kind: input, shape index: {}]
  %s3 = inlined_call_operand.hbm [shape: f32[64,64], index: 3, kind: input, shape index: {}]
  %s4 = inlined_call_operand.vmem [shape: f32[1,64], index: 4, kind: input, shape index: {}]
  %s5 = inlined_call_operand.hbm [shape: f32[4,8,64], index: 5, kind: input, shape index: {}]
  %s6 = inlined_call_operand.hbm [shape: f32[2,8,64], index: 6, kind: output, shape index: {}]
  %s7 = sld [smem:[#allocation0]]
  $region73: #{tpu_custom_call.1} parent=0
    _
  %s9 = ssub.s32 1, %s7
  %s10 = scalar_select 0, %s9, %s7
  $region1: #{tpu_custom_call.1} parent=0
    #allocation2 [shape = 'u8[8192]{0}', space=vmem, size = 0x2000, scoped, tag = 'input window, operand 0']
    #allocation3 [shape = 's32[2]{0}', space=sflag, size = 0x8, scoped, tag = 'scoped memory for tpu_custom_call.1']
    #allocation4 [shape = 's32[2]{0}', space=sflag, size = 0x8, scoped, tag = 'scoped memory for tpu_custom_call.1']
    #allocation5 [shape = 'u8[98304]{0}', space=vmem, size = 0x18000, scoped, tag = 'input window, operand 1, single buffered']
    #allocation6 [shape = 's32[1]{0}', space=sflag, size = 0x4, scoped, tag = 'scoped memory for tpu_custom_call.1']
    #allocation7 [shape = 'u8[32768]{0}', space=vmem, size = 0x8000, scoped, tag = 'input window, operand 3, single buffered']
    #allocation8 [shape = 'u8[16384]{0}', space=vmem, size = 0x4000, scoped, tag = 'input window, operand 5, single buffered']
    #allocation9 [shape = 's32[1]{0}', space=sflag, size = 0x4, scoped, tag = 'scoped memory for tpu_custom_call.1']
    #allocation10 [shape = 'u8[8192]{0}', space=vmem, size = 0x2000, scoped, tag = 'output window, operand 0']
    %11 = vsyncpa [#allocation3], 0
    %s12 = scalar_lea.sflag [#allocation3], 1
    %13 = vsyncpa %s12, 0
    %14 = vsyncpa [#allocation6], 0
    %15 = vsyncpa [#allocation9], 0
    %16 = vsyncpa [#allocation4], 0
    %s17 = scalar_lea.sflag [#allocation4], 1
    %18 = vsyncpa %s17, 0
    loop: start=0, step=1, limit=4
    $region2: #{tpu_custom_call.1} parent=1 // loop_pre_header
      _
    $region3: #{tpu_custom_call.1} parent=1 // loop_header
      %s20 = sphi 0, %s24
      %p21 = scmp.ge.s32.totalorder %s20, 4
      %s30 = sphi 0, %s32
      %s33 = sphi 0, %s30
      %s34 = sphi 0, %s33
      %s50 = sphi 0, %s34
      %s54 = sphi 0, %s54
      %s56 = sphi 0, %s54
      %s57 = sphi 0, %s56
      %s71 = sphi 0, %s57
      %s75 = sphi 0, %s75
      %s77 = sphi 0, %s75
      %s78 = sphi 0, %s77
      %s92 = sphi 0, %s78
      %s96 = sphi 0, %s96
      %s98 = sphi 0, %s96
      %s99 = sphi 0, %s98
      %s113 = sphi 0, %s99
      %s117 = sphi 0, %s117
      %s119 = sphi 0, %s117
      %s120 = sphi 0, %s119
      %s134 = sphi 0, %s120
      %s138 = sphi 0, %s138
      %s140 = sphi 0, %s138
      %s141 = sphi 0, %s140
      %s155 = sphi 0, %s141
      %s161 = sphi 0, %s163
      %s164 = sphi 0, %s161
      %s165 = sphi 0, %s164
      %s181 = sphi 0, %s165
    $region4: #{tpu_custom_call.1} parent=1 // loop_header_branch
      %23 = sbr.rel (%p21) target = $region8
    $region5: #{tpu_custom_call.1} parent=1 // loop_body
      %s25 = ssub.s32 %s20, 1
      %s26 = ssub.s32 %s20, 2
      %s27 = sadd.s32 %s20, 1
      %s28 = ssub.s32 %s20, %s27
      %p29 = scmp.eq.s32.totalorder %s28, 0
      %s31 = sadd.s32 %s30, 1
      %s32 = scalar_select %p29, %s30, %s31
      %p35 = pneg %p29
      %p36 = scmp.eq.s32.totalorder %s20, 1
      %p37 = por %p35, %p36
      %p38 = scmp.ne.s32.totalorder %s30, %s33
      %p39 = scmp.eq.s32.totalorder %s20, 0
      %p40 = por %p38, %p39
      %p41 = scmp.ne.s32.totalorder %s30, %s33
      %p42 = scmp.eq.s32.totalorder %s25, 1
      %p43 = por %p41, %p42
      %p44 = scmp.ne.s32.totalorder %s33, %s34
      %p45 = scmp.eq.s32.totalorder %s25, 0
      %p46 = por %p44, %p45
      %p47 = scmp.ne.s32.totalorder %s33, %s34
      %p48 = scmp.eq.s32.totalorder %s26, 1
      %p49 = por %p47, %p48
      %p51 = scmp.ne.s32.totalorder %s34, %s50
      %p52 = scmp.eq.s32.totalorder %s26, 0
      %p53 = por %p51, %p52
      %s55 = sadd.s32 %s54, 1
      %p58 = scmp.eq.s32.totalorder %s20, 1
      %p59 = scmp.ne.s32.totalorder %s54, %s56
      %p60 = scmp.eq.s32.totalorder %s20, 0
      %p61 = por %p59, %p60
      %p62 = scmp.ne.s32.totalorder %s54, %s56
      %p63 = scmp.eq.s32.totalorder %s25, 1
      %p64 = por %p62, %p63
      %p65 = scmp.ne.s32.totalorder %s56, %s57
      %p66 = scmp.eq.s32.totalorder %s25, 0
      %p67 = por %p65, %p66
      %p68 = scmp.ne.s32.totalorder %s56, %s57
      %p69 = scmp.eq.s32.totalorder %s26, 1
      %p70 = por %p68, %p69
      %p72 = scmp.ne.s32.totalorder %s57, %s71
      %p73 = scmp.eq.s32.totalorder %s26, 0
      %p74 = por %p72, %p73
      %s76 = sadd.s32 %s75, 1
      %p79 = scmp.eq.s32.totalorder %s20, 1
      %p80 = scmp.ne.s32.totalorder %s75, %s77
      %p81 = scmp.eq.s32.totalorder %s20, 0
      %p82 = por %p80, %p81
      %p83 = scmp.ne.s32.totalorder %s75, %s77
      %p84 = scmp.eq.s32.totalorder %s25, 1
      %p85 = por %p83, %p84
      %p86 = scmp.ne.s32.totalorder %s77, %s78
      %p87 = scmp.eq.s32.totalorder %s25, 0
      %p88 = por %p86, %p87
      %p89 = scmp.ne.s32.totalorder %s77, %s78
      %p90 = scmp.eq.s32.totalorder %s26, 1
      %p91 = por %p89, %p90
      %p93 = scmp.ne.s32.totalorder %s78, %s92
      %p94 = scmp.eq.s32.totalorder %s26, 0
      %p95 = por %p93, %p94
      %s97 = sadd.s32 %s96, 1
      %p100 = scmp.eq.s32.totalorder %s20, 1
      %p101 = scmp.ne.s32.totalorder %s96, %s98
      %p102 = scmp.eq.s32.totalorder %s20, 0
      %p103 = por %p101, %p102
      %p104 = scmp.ne.s32.totalorder %s96, %s98
      %p105 = scmp.eq.s32.totalorder %s25, 1
      %p106 = por %p104, %p105
      %p107 = scmp.ne.s32.totalorder %s98, %s99
      %p108 = scmp.eq.s32.totalorder %s25, 0
      %p109 = por %p107, %p108
      %p110 = scmp.ne.s32.totalorder %s98, %s99
      %p111 = scmp.eq.s32.totalorder %s26, 1
      %p112 = por %p110, %p111
      %p114 = scmp.ne.s32.totalorder %s99, %s113
      %p115 = scmp.eq.s32.totalorder %s26, 0
      %p116 = por %p114, %p115
      %s118 = sadd.s32 %s117, 1
      %p121 = scmp.eq.s32.totalorder %s20, 1
      %p122 = scmp.ne.s32.totalorder %s117, %s119
      %p123 = scmp.eq.s32.totalorder %s20, 0
      %p124 = por %p122, %p123
      %p125 = scmp.ne.s32.totalorder %s117, %s119
      %p126 = scmp.eq.s32.totalorder %s25, 1
      %p127 = por %p125, %p126
      %p128 = scmp.ne.s32.totalorder %s119, %s120
      %p129 = scmp.eq.s32.totalorder %s25, 0
      %p130 = por %p128, %p129
      %p131 = scmp.ne.s32.totalorder %s119, %s120
      %p132 = scmp.eq.s32.totalorder %s26, 1
      %p133 = por %p131, %p132
      %p135 = scmp.ne.s32.totalorder %s120, %s134
      %p136 = scmp.eq.s32.totalorder %s26, 0
      %p137 = por %p135, %p136
      %s139 = sadd.s32 %s138, 1
      %p142 = scmp.eq.s32.totalorder %s20, 1
      %p143 = scmp.ne.s32.totalorder %s138, %s140
      %p144 = scmp.eq.s32.totalorder %s20, 0
      %p145 = por %p143, %p144
      %p146 = scmp.ne.s32.totalorder %s138, %s140
      %p147 = scmp.eq.s32.totalorder %s25, 1
      %p148 = por %p146, %p147
      %p149 = scmp.ne.s32.totalorder %s140, %s141
      %p150 = scmp.eq.s32.totalorder %s25, 0
      %p151 = por %p149, %p150
      %p152 = scmp.ne.s32.totalorder %s140, %s141
      %p153 = scmp.eq.s32.totalorder %s26, 1
      %p154 = por %p152, %p153
      %p156 = scmp.ne.s32.totalorder %s141, %s155
      %p157 = scmp.eq.s32.totalorder %s26, 0
      %p158 = por %p156, %p157
      %s159 = ssub.s32 %s20, %s27
      %p160 = scmp.eq.s32.totalorder %s159, 0
      %s162 = sadd.s32 %s161, 1
      %s163 = scalar_select %p160, %s161, %s162
      %p166 = pneg %p160
      %p167 = scmp.eq.s32.totalorder %s20, 1
      %p168 = por %p166, %p167
      %p169 = scmp.ne.s32.totalorder %s161, %s164
      %p170 = scmp.eq.s32.totalorder %s20, 0
      %p171 = por %p169, %p170
      %p172 = scmp.ne.s32.totalorder %s161, %s164
      %p173 = scmp.eq.s32.totalorder %s25, 1
      %p174 = por %p172, %p173
      %p175 = scmp.ne.s32.totalorder %s164, %s165
      %p176 = scmp.eq.s32.totalorder %s25, 0
      %p177 = por %p175, %p176
      %p178 = scmp.ne.s32.totalorder %s164, %s165
      %p179 = scmp.eq.s32.totalorder %s26, 1
      %p180 = por %p178, %p179
      %p182 = scmp.ne.s32.totalorder %s165, %s181
      %p183 = scmp.eq.s32.totalorder %s26, 0
      %p184 = por %p182, %p183
      %p185 = scmp.le.s32.totalorder 1, %s20
      %p186 = scmp.lt.s32.totalorder %s20, 3
      %p187 = pnand %p185, %p186
      %p188 = pneg %p187
      // Predicated region
      $region9: #{tpu_custom_call.1} parent=5 // pred_check
        _
      $region10: #{tpu_custom_call.1} parent=5 // pred_check_branch
        %190 = sbr.rel (%p187) target = $region12
      $region11: #{tpu_custom_call.1} parent=5 // pred_region
        %s191 = ssub.s32 %s20, 1
        // Predicated region
        $region13: #{tpu_custom_call.1} parent=11 // pred_check
          %p192 = pneg %p67
        $region14: #{tpu_custom_call.1} parent=11 // pred_check_branch
          %194 = sbr.rel (%p192) target = $region16
        $region15: #{tpu_custom_call.1} parent=11 // pred_region
          %s196 = ssub.s32 3072, 3072
          %197 = vsyncadd [#allocation6], %s196
          %s198 = sshll.u32 [#allocation5], 4
          %s199 = int_to_ptr.vmem [resolvable:$true] %s198
          %204 = dma.hbm_to_vmem [thread:$0]  %s1, 3072, %s199, [#allocation6], 384, 384, 24
        $region16: #{tpu_custom_call.1} parent=11 // pred_fallthru
          _
        // Predicated region
        $region17: #{tpu_custom_call.1} parent=11 // pred_check
          %p205 = pneg %p88
        $region18: #{tpu_custom_call.1} parent=11 // pred_check_branch
          %207 = sbr.rel (%p205) target = $region20
        $region19: #{tpu_custom_call.1} parent=11 // pred_region
          _
        $region20: #{tpu_custom_call.1} parent=11 // pred_fallthru
          _
        // Predicated region
        $region21: #{tpu_custom_call.1} parent=11 // pred_check
          %p208 = pneg %p109
        $region22: #{tpu_custom_call.1} parent=11 // pred_check_branch
          %210 = sbr.rel (%p208) target = $region24
        $region23: #{tpu_custom_call.1} parent=11 // pred_region
          %s212 = ssub.s32 1024, 1024
          %213 = vsyncadd [#allocation6], %s212
          %s214 = sshll.u32 [#allocation7], 4
          %s215 = int_to_ptr.vmem [resolvable:$true] %s214
          %220 = dma.hbm_to_vmem [thread:$0]  %s3, 1024, %s215, [#allocation6], 128, 128, 8
        $region24: #{tpu_custom_call.1} parent=11 // pred_fallthru
          _
        // Predicated region
        $region25: #{tpu_custom_call.1} parent=11 // pred_check
          %p221 = pneg %p130
        $region26: #{tpu_custom_call.1} parent=11 // pred_check_branch
          %223 = sbr.rel (%p221) target = $region28
        $region27: #{tpu_custom_call.1} parent=11 // pred_region
          _
        $region28: #{tpu_custom_call.1} parent=11 // pred_fallthru
          _
        // Predicated region
        $region29: #{tpu_custom_call.1} parent=11 // pred_check
          %p224 = pneg %p151
        $region30: #{tpu_custom_call.1} parent=11 // pred_check_branch
          %226 = sbr.rel (%p224) target = $region32
        $region31: #{tpu_custom_call.1} parent=11 // pred_region
          %s228 = ssub.s32 512, 512
          %229 = vsyncadd [#allocation9], %s228
          %s230 = sshll.u32 [#allocation8], 4
          %s231 = int_to_ptr.vmem [resolvable:$true] %s230
          %236 = dma.hbm_to_vmem [thread:$0]  %s5, 512, %s231, [#allocation9], 128, 128, 8
        $region32: #{tpu_custom_call.1} parent=11 // pred_fallthru
          _
      $region12: #{tpu_custom_call.1} parent=5 // pred_fallthru
        _
      %p237 = scmp.lt.s32.totalorder %s20, 2
      // Predicated region
      $region33: #{tpu_custom_call.1} parent=5 // pred_check
        %p238 = pneg %p237
      $region34: #{tpu_custom_call.1} parent=5 // pred_check_branch
        %240 = sbr.rel (%p238) target = $region36
      $region35: #{tpu_custom_call.1} parent=5 // pred_region
        // Predicated region
        $region37: #{tpu_custom_call.1} parent=35 // pred_check
          %p241 = pneg %p40
        $region38: #{tpu_custom_call.1} parent=35 // pred_check_branch
          %243 = sbr.rel (%p241) target = $region40
        $region39: #{tpu_custom_call.1} parent=35 // pred_region
          %s244 = sand.u32 %s30, 1
          %s245 = scalar_lea.sflag [#allocation3], %s244
          %s246 = sand.u32 %s30, 1
          %s247 = smul.addr %s246, 8
          %s248 = scalar_lea.vmem [#allocation2], %s247
          %s250 = ssub.s32 128, 128
          %251 = vsyncadd %s245, %s250
          %s252 = smul.addr %s20, 128
          %s253 = scalar_lea.hbm %s0, %s252
          %s255 = sshll.u32 %s248, 4
          %s256 = int_to_ptr.vmem [resolvable:$true] %s255
          %258 = dma.hbm_to_vmem [thread:$0]  %s253, 128, %s256, %s245
        $region40: #{tpu_custom_call.1} parent=35 // pred_fallthru
          _
      $region36: #{tpu_custom_call.1} parent=5 // pred_fallthru
        _
      %p259 = scmp.le.s32.totalorder 1, %s20
      %p260 = scmp.lt.s32.totalorder %s20, 3
      %p261 = pnand %p259, %p260
      %p262 = pneg %p261
      // Predicated region
      $region41: #{tpu_custom_call.1} parent=5 // pred_check
        _
      $region42: #{tpu_custom_call.1} parent=5 // pred_check_branch
        %264 = sbr.rel (%p261) target = $region44
      $region43: #{tpu_custom_call.1} parent=5 // pred_region
        %s265 = ssub.s32 %s20, 1
        %s266 = sand.u32 %s33, 1
        %s267 = scalar_lea.sflag [#allocation3], %s266
        %s268 = sand.u32 %s33, 1
        %s269 = smul.addr %s268, 8
        %s270 = scalar_lea.vmem [#allocation2], %s269
        // Predicated region
        $region45: #{tpu_custom_call.1} parent=43 // pred_check
          %p271 = pneg %p46
        $region46: #{tpu_custom_call.1} parent=43 // pred_check_branch
          %273 = sbr.rel (%p271) target = $region48
        $region47: #{tpu_custom_call.1} parent=43 // pred_region
          %274 = dma.done %s267, 128
        $region48: #{tpu_custom_call.1} parent=43 // pred_fallthru
          _
        // Predicated region
        $region49: #{tpu_custom_call.1} parent=43 // pred_check
          %p275 = pneg %p67
        $region50: #{tpu_custom_call.1} parent=43 // pred_check_branch
          %277 = sbr.rel (%p275) target = $region52
        $region51: #{tpu_custom_call.1} parent=43 // pred_region
          %278 = dma.done [#allocation6], 3072
        $region52: #{tpu_custom_call.1} parent=43 // pred_fallthru
          _
        // Predicated region
        $region53: #{tpu_custom_call.1} parent=43 // pred_check
          %p279 = pneg %p109
        $region54: #{tpu_custom_call.1} parent=43 // pred_check_branch
          %281 = sbr.rel (%p279) target = $region56
        $region55: #{tpu_custom_call.1} parent=43 // pred_region
          %282 = dma.done [#allocation6], 1024
        $region56: #{tpu_custom_call.1} parent=43 // pred_fallthru
          _
        // Predicated region
        $region57: #{tpu_custom_call.1} parent=43 // pred_check
          %p283 = pneg %p151
        $region58: #{tpu_custom_call.1} parent=43 // pred_check_branch
          %285 = sbr.rel (%p283) target = $region60
        $region59: #{tpu_custom_call.1} parent=43 // pred_region
          %286 = dma.done [#allocation9], 512
        $region60: #{tpu_custom_call.1} parent=43 // pred_fallthru
          _
        %s287 = sand.u32 %s33, 1
        %s288 = scalar_lea.sflag [#allocation3], %s287
        %s289 = sand.u32 %s33, 1
        %s290 = smul.addr %s289, 8
        %s291 = scalar_lea.vmem [#allocation2], %s290
        %p292 = pneg %p46
        %p293 = pneg %p43
        %p294 = pneg %p67
        %p295 = pneg %p64
        %p296 = pneg %p88
        %p297 = pneg %p85
        %p298 = pneg %p109
        %p299 = pneg %p106
        %p300 = pneg %p130
        %p301 = pneg %p127
        %p302 = pneg %p151
        %p303 = pneg %p148
        %p304 = pneg %p177
        %p305 = pneg %p174
        %s306 = sand.u32 %s164, 1
        %s307 = scalar_lea.sflag [#allocation4], %s306
        %s308 = sand.u32 %s164, 1
        %s309 = smul.addr %s308, 8
        %s310 = scalar_lea.vmem [#allocation10], %s309
        %v311 = vld [vmem:[%s270] sm:$0xff]
        %v312 = vld [vmem:[#allocation5] sm:$0xff]
        %v313 = vld [vmem:[#allocation5 + $0x8] sm:$0xff]
        %v314 = vld [vmem:[#allocation5 + $0x10] sm:$0xff]
        %v315 = vld [vmem:[#allocation5 + $0x18] sm:$0xff]
        %v316 = vld [vmem:[#allocation5 + $0x20] sm:$0xff]
        %v317 = vld [vmem:[#allocation5 + $0x28] sm:$0xff]
        %v318 = vld [vmem:[#allocation5 + $0x30] sm:$0xff]
        %v319 = vld [vmem:[#allocation5 + $0x38] sm:$0xff]
        %v320 = vld [vmem:[#allocation5 + $0x40] sm:$0xff]
        %v321 = vld [vmem:[#allocation5 + $0x48] sm:$0xff]
        %v322 = vld [vmem:[#allocation5 + $0x50] sm:$0xff]
        %v323 = vld [vmem:[#allocation5 + $0x58] sm:$0xff]
        %v324 = vld [vmem:[#allocation5 + $0x60] sm:$0xff]
        %v325 = vld [vmem:[#allocation5 + $0x68] sm:$0xff]
        %v326 = vld [vmem:[#allocation5 + $0x70] sm:$0xff]
        %v327 = vld [vmem:[#allocation5 + $0x78] sm:$0xff]
        %v328 = vld [vmem:[#allocation5 + $0x80] sm:$0xff]
        %v329 = vld [vmem:[#allocation5 + $0x88] sm:$0xff]
        %v330 = vld [vmem:[#allocation5 + $0x90] sm:$0xff]
        %v331 = vld [vmem:[#allocation5 + $0x98] sm:$0xff]
        %v332 = vld [vmem:[#allocation5 + $0xa0] sm:$0xff]
        %v333 = vld [vmem:[#allocation5 + $0xa8] sm:$0xff]
        %v334 = vld [vmem:[#allocation5 + $0xb0] sm:$0xff]
        %v335 = vld [vmem:[#allocation5 + $0xb8] sm:$0xff]
        %v336 = vld [vmem:[%s2] sm:$0x7]
        %v338 = vlaneseq
        %v339 = vshrl.u32 %v338, 7
        %v340 = vsub.s32 0, %v339
        %v341 = vrot.slane %v336, %v340
        %v342 = vlaneseq
        %v343 = vshrl.u32 %v342, 7
        %v344 = vsub.s32 1, %v343
        %v345 = vrot.slane %v336, %v344
        %v346 = vlaneseq
        %v347 = vshrl.u32 %v346, 7
        %v348 = vsub.s32 2, %v347
        %v349 = vrot.slane %v336, %v348
        %vm353 = vcmask 523264
        %v355 = vsel %vm353, %v311, 0
        %357 = vmatprep.subr.mxu0 0.0
        %358 = vmatpush1.msra.mxu0 0.0
        %359 = vmatprep.subr.mxu0 0.0
        %360 = vmatpush1.msra.mxu0 0.0
        %361 = vmatprep.subr.mxu0 0.0
        %362 = vmatpush1.msra.mxu0 0.0
        %363 = vmatprep.subr.mxu0 0.0
        %364 = vmatpush1.msra.mxu0 0.0
        %365 = vmatprep.subr.mxu0 0.0
        %366 = vmatpush1.msra.mxu0 0.0
        %367 = vmatprep.subr.mxu0 0.0
        %368 = vmatpush1.msra.mxu0 0.0
        %369 = vmatprep.subr.mxu0 0.0
        %370 = vmatpush1.msra.mxu0 0.0
        %371 = vmatprep.subr.mxu0 0.0
        %372 = vmatpush1.msra.mxu0 0.0
        %v373 = vand.u32 %v334, 4294901760
        %374 = vmatprep.subr.mxu0 %v373
        %v375 = vand.u32 %v333, 4294901760
        %376 = vmatpush1.msra.mxu0 %v375
        %v377 = vand.u32 %v331, 4294901760
        %378 = vmatprep.subr.mxu0 %v377
        %v379 = vand.u32 %v330, 4294901760
        %380 = vmatpush1.msra.mxu0 %v379
        %v381 = vand.u32 %v328, 4294901760
        %382 = vmatprep.subr.mxu0 %v381
        %v383 = vand.u32 %v327, 4294901760
        %384 = vmatpush1.msra.mxu0 %v383
        %v385 = vand.u32 %v325, 4294901760
        %386 = vmatprep.subr.mxu0 %v385
        %v387 = vand.u32 %v324, 4294901760
        %388 = vmatpush1.msra.mxu0 %v387
        %v389 = vand.u32 %v322, 4294901760
        %390 = vmatprep.subr.mxu0 %v389
        %v391 = vand.u32 %v321, 4294901760
        %392 = vmatpush1.msra.mxu0 %v391
        %v393 = vand.u32 %v319, 4294901760
        %394 = vmatprep.subr.mxu0 %v393
        %v395 = vand.u32 %v318, 4294901760
        %396 = vmatpush1.msra.mxu0 %v395
        %v397 = vand.u32 %v316, 4294901760
        %398 = vmatprep.subr.mxu0 %v397
        %v399 = vand.u32 %v315, 4294901760
        %400 = vmatpush1.msra.mxu0 %v399
        %v401 = vand.u32 %v313, 4294901760
        %402 = vmatprep.subr.mxu0 %v401
        %v403 = vand.u32 %v312, 4294901760
        %404 = vmatpush1.msra.mxu0 %v403
        %405 = vmatprep.subr.mxu0 0.0
        %406 = vmatpush2.msra.mxu0 0.0
        %407 = vmatprep.subr.mxu0 0.0
        %408 = vmatpush2.msra.mxu0 0.0
        %409 = vmatprep.subr.mxu0 0.0
        %410 = vmatpush2.msra.mxu0 0.0
        %411 = vmatprep.subr.mxu0 0.0
        %412 = vmatpush2.msra.mxu0 0.0
        %413 = vmatprep.subr.mxu0 0.0
        %414 = vmatpush2.msra.mxu0 0.0
        %415 = vmatprep.subr.mxu0 0.0
        %416 = vmatpush2.msra.mxu0 0.0
        %417 = vmatprep.subr.mxu0 0.0
        %418 = vmatpush2.msra.mxu0 0.0
        %419 = vmatprep.subr.mxu0 0.0
        %420 = vmatpush2.msra.mxu0 0.0
        %421 = vmatprep.subr.mxu0 0.0
        %422 = vmatpush2.msra.mxu0 0.0
        %423 = vmatprep.subr.mxu0 0.0
        %424 = vmatpush2.msra.mxu0 0.0
        %425 = vmatprep.subr.mxu0 0.0
        %426 = vmatpush2.msra.mxu0 0.0
        %427 = vmatprep.subr.mxu0 0.0
        %428 = vmatpush2.msra.mxu0 0.0
        %429 = vmatprep.subr.mxu0 0.0
        %430 = vmatpush2.msra.mxu0 0.0
        %431 = vmatprep.subr.mxu0 0.0
        %432 = vmatpush2.msra.mxu0 0.0
        %433 = vmatprep.subr.mxu0 0.0
        %434 = vmatpush2.msra.mxu0 0.0
        %435 = vmatprep.subr.mxu0 0.0
        %436 = vmatpush2.msra.mxu0 0.0
        %437 = vmatprep.mubr.f32.mxu0 0.0
        %v438 = vand.u32 %v355, 4294901760
        %v439 = vsub.f32 %v355, %v438
        %v440 = vand.u32 %v439, 4294901760
        %v441 = vsub.f32 %v439, %v440
        %v442 = vand.u32 %v441, 4294901760
        %443 = vmatmul.mubr.f32.gmra.mxu0 %v442
        %v444 = vpop.f32.mrf.mxu0
        %v445 = vadd.f32 %v341, %v444
        %v446 = vpop.f32.mrf.mxu0
        %v447 = vadd.f32 %v345, %v446
        %448 = vdwg.mxu0
        %449 = vmatprep.subr.mxu0 0.0
        %450 = vmatpush1.msra.mxu0 0.0
        %451 = vmatprep.subr.mxu0 0.0
        %452 = vmatpush1.msra.mxu0 0.0
        %453 = vmatprep.subr.mxu0 0.0
        %454 = vmatpush1.msra.mxu0 0.0
        %455 = vmatprep.subr.mxu0 0.0
        %456 = vmatpush1.msra.mxu0 0.0
        %457 = vmatprep.subr.mxu0 0.0
        %458 = vmatpush1.msra.mxu0 0.0
        %459 = vmatprep.subr.mxu0 0.0
        %460 = vmatpush1.msra.mxu0 0.0
        %461 = vmatprep.subr.mxu0 0.0
        %462 = vmatpush1.msra.mxu0 0.0
        %463 = vmatprep.subr.mxu0 0.0
        %464 = vmatpush1.msra.mxu0 0.0
        %v465 = vand.u32 %v334, 4294901760
        %v466 = vsub.f32 %v334, %v465
        %v467 = vand.u32 %v466, 4294901760
        %v468 = vsub.f32 %v466, %v467
        %v469 = vand.u32 %v468, 4294901760
        %470 = vmatprep.subr.mxu0 %v469
        %v471 = vand.u32 %v333, 4294901760
        %v472 = vsub.f32 %v333, %v471
        %v473 = vand.u32 %v472, 4294901760
        %v474 = vsub.f32 %v472, %v473
        %v475 = vand.u32 %v474, 4294901760
        %476 = vmatpush1.msra.mxu0 %v475
        %v477 = vand.u32 %v331, 4294901760
        %v478 = vsub.f32 %v331, %v477
        %v479 = vand.u32 %v478, 4294901760
        %v480 = vsub.f32 %v478, %v479
        %v481 = vand.u32 %v480, 4294901760
        %482 = vmatprep.subr.mxu0 %v481
        %v483 = vand.u32 %v330, 4294901760
        %v484 = vsub.f32 %v330, %v483
        %v485 = vand.u32 %v484, 4294901760
        %v486 = vsub.f32 %v484, %v485
        %v487 = vand.u32 %v486, 4294901760
        %488 = vmatpush1.msra.mxu0 %v487
        %v489 = vand.u32 %v328, 4294901760
        %v490 = vsub.f32 %v328, %v489
        %v491 = vand.u32 %v490, 4294901760
        %v492 = vsub.f32 %v490, %v491
        %v493 = vand.u32 %v492, 4294901760
        %494 = vmatprep.subr.mxu0 %v493
        %v495 = vand.u32 %v327, 4294901760
        %v496 = vsub.f32 %v327, %v495
        %v497 = vand.u32 %v496, 4294901760
        %v498 = vsub.f32 %v496, %v497
        %v499 = vand.u32 %v498, 4294901760
        %500 = vmatpush1.msra.mxu0 %v499
        %v501 = vand.u32 %v325, 4294901760
        %v502 = vsub.f32 %v325, %v501
        %v503 = vand.u32 %v502, 4294901760
        %v504 = vsub.f32 %v502, %v503
        %v505 = vand.u32 %v504, 4294901760
        %506 = vmatprep.subr.mxu0 %v505
        %v507 = vand.u32 %v324, 4294901760
        %v508 = vsub.f32 %v324, %v507
        %v509 = vand.u32 %v508, 4294901760
        %v510 = vsub.f32 %v508, %v509
        %v511 = vand.u32 %v510, 4294901760
        %512 = vmatpush1.msra.mxu0 %v511
        %v513 = vand.u32 %v322, 4294901760
        %v514 = vsub.f32 %v322, %v513
        %v515 = vand.u32 %v514, 4294901760
        %v516 = vsub.f32 %v514, %v515
        %v517 = vand.u32 %v516, 4294901760
        %518 = vmatprep.subr.mxu0 %v517
        %v519 = vand.u32 %v321, 4294901760
        %v520 = vsub.f32 %v321, %v519
        %v521 = vand.u32 %v520, 4294901760
        %v522 = vsub.f32 %v520, %v521
        %v523 = vand.u32 %v522, 4294901760
        %524 = vmatpush1.msra.mxu0 %v523
        %v525 = vand.u32 %v319, 4294901760
        %v526 = vsub.f32 %v319, %v525
        %v527 = vand.u32 %v526, 4294901760
        %v528 = vsub.f32 %v526, %v527
        %v529 = vand.u32 %v528, 4294901760
        %530 = vmatprep.subr.mxu0 %v529
        %v531 = vand.u32 %v318, 4294901760
        %v532 = vsub.f32 %v318, %v531
        %v533 = vand.u32 %v532, 4294901760
        %v534 = vsub.f32 %v532, %v533
        %v535 = vand.u32 %v534, 4294901760
        %536 = vmatpush1.msra.mxu0 %v535
        %v537 = vand.u32 %v316, 4294901760
        %v538 = vsub.f32 %v316, %v537
        %v539 = vand.u32 %v538, 4294901760
        %v540 = vsub.f32 %v538, %v539
        %v541 = vand.u32 %v540, 4294901760
        %542 = vmatprep.subr.mxu0 %v541
        %v543 = vand.u32 %v315, 4294901760
        %v544 = vsub.f32 %v315, %v543
        %v545 = vand.u32 %v544, 4294901760
        %v546 = vsub.f32 %v544, %v545
        %v547 = vand.u32 %v546, 4294901760
        %548 = vmatpush1.msra.mxu0 %v547
        %v549 = vand.u32 %v313, 4294901760
        %v550 = vsub.f32 %v313, %v549
        %v551 = vand.u32 %v550, 4294901760
        %v552 = vsub.f32 %v550, %v551
        %v553 = vand.u32 %v552, 4294901760
        %554 = vmatprep.subr.mxu0 %v553
        %v555 = vand.u32 %v312, 4294901760
        %v556 = vsub.f32 %v312, %v555
        %v557 = vand.u32 %v556, 4294901760
        %v558 = vsub.f32 %v556, %v557
        %v559 = vand.u32 %v558, 4294901760
        %560 = vmatpush1.msra.mxu0 %v559
        %561 = vmatprep.subr.mxu0 0.0
        %562 = vmatpush2.msra.mxu0 0.0
        %563 = vmatprep.subr.mxu0 0.0
        %564 = vmatpush2.msra.mxu0 0.0
        %565 = vmatprep.subr.mxu0 0.0
        %566 = vmatpush2.msra.mxu0 0.0
        %567 = vmatprep.subr.mxu0 0.0
        %568 = vmatpush2.msra.mxu0 0.0
        %569 = vmatprep.subr.mxu0 0.0
        %570 = vmatpush2.msra.mxu0 0.0
        %571 = vmatprep.subr.mxu0 0.0
        %572 = vmatpush2.msra.mxu0 0.0
        %573 = vmatprep.subr.mxu0 0.0
        %574 = vmatpush2.msra.mxu0 0.0
        %575 = vmatprep.subr.mxu0 0.0
        %576 = vmatpush2.msra.mxu0 0.0
        %577 = vmatprep.subr.mxu0 0.0
        %578 = vmatpush2.msra.mxu0 0.0
        %579 = vmatprep.subr.mxu0 0.0
        %580 = vmatpush2.msra.mxu0 0.0
        %581 = vmatprep.subr.mxu0 0.0
        %582 = vmatpush2.msra.mxu0 0.0
        %583 = vmatprep.subr.mxu0 0.0
        %584 = vmatpush2.msra.mxu0 0.0
        %585 = vmatprep.subr.mxu0 0.0
        %586 = vmatpush2.msra.mxu0 0.0
        %587 = vmatprep.subr.mxu0 0.0
        %588 = vmatpush2.msra.mxu0 0.0
        %589 = vmatprep.subr.mxu0 0.0
        %590 = vmatpush2.msra.mxu0 0.0
        %591 = vmatprep.subr.mxu0 0.0
        %592 = vmatpush2.msra.mxu0 0.0
        %593 = vmatprep.mubr.f32.mxu0 0.0
        %v594 = vand.u32 %v355, 4294901760
        %595 = vmatmul.mubr.f32.gmra.mxu0 %v594
        %v596 = vpop.f32.mrf.mxu0
        %v597 = vadd.f32 %v445, %v596
        %v598 = vpop.f32.mrf.mxu0
        %v599 = vadd.f32 %v447, %v598
        %600 = vdwg.mxu0
        %601 = vmatprep.subr.mxu0 0.0
        %602 = vmatpush1.msra.mxu0 0.0
        %603 = vmatprep.subr.mxu0 0.0
        %604 = vmatpush1.msra.mxu0 0.0
        %605 = vmatprep.subr.mxu0 0.0
        %606 = vmatpush1.msra.mxu0 0.0
        %607 = vmatprep.subr.mxu0 0.0
        %608 = vmatpush1.msra.mxu0 0.0
        %609 = vmatprep.subr.mxu0 0.0
        %610 = vmatpush1.msra.mxu0 0.0
        %611 = vmatprep.subr.mxu0 0.0
        %612 = vmatpush1.msra.mxu0 0.0
        %613 = vmatprep.subr.mxu0 0.0
        %614 = vmatpush1.msra.mxu0 0.0
        %615 = vmatprep.subr.mxu0 0.0
        %616 = vmatpush1.msra.mxu0 0.0
        %v617 = vand.u32 %v334, 4294901760
        %v618 = vsub.f32 %v334, %v617
        %619 = vmatprep.subr.mxu0 %v618
        %v620 = vand.u32 %v333, 4294901760
        %v621 = vsub.f32 %v333, %v620
        %622 = vmatpush1.msra.mxu0 %v621
        %v623 = vand.u32 %v331, 4294901760
        %v624 = vsub.f32 %v331, %v623
        %625 = vmatprep.subr.mxu0 %v624
        %v626 = vand.u32 %v330, 4294901760
        %v627 = vsub.f32 %v330, %v626
        %628 = vmatpush1.msra.mxu0 %v627
        %v629 = vand.u32 %v328, 4294901760
        %v630 = vsub.f32 %v328, %v629
        %631 = vmatprep.subr.mxu0 %v630
        %v632 = vand.u32 %v327, 4294901760
        %v633 = vsub.f32 %v327, %v632
        %634 = vmatpush1.msra.mxu0 %v633
        %v635 = vand.u32 %v325, 4294901760
        %v636 = vsub.f32 %v325, %v635
        %637 = vmatprep.subr.mxu0 %v636
        %v638 = vand.u32 %v324, 4294901760
        %v639 = vsub.f32 %v324, %v638
        %640 = vmatpush1.msra.mxu0 %v639
        %v641 = vand.u32 %v322, 4294901760
        %v642 = vsub.f32 %v322, %v641
        %643 = vmatprep.subr.mxu0 %v642
        %v644 = vand.u32 %v321, 4294901760
        %v645 = vsub.f32 %v321, %v644
        %646 = vmatpush1.msra.mxu0 %v645
        %v647 = vand.u32 %v319, 4294901760
        %v648 = vsub.f32 %v319, %v647
        %649 = vmatprep.subr.mxu0 %v648
        %v650 = vand.u32 %v318, 4294901760
        %v651 = vsub.f32 %v318, %v650
        %652 = vmatpush1.msra.mxu0 %v651
        %v653 = vand.u32 %v316, 4294901760
        %v654 = vsub.f32 %v316, %v653
        %655 = vmatprep.subr.mxu0 %v654
        %v656 = vand.u32 %v315, 4294901760
        %v657 = vsub.f32 %v315, %v656
        %658 = vmatpush1.msra.mxu0 %v657
        %v659 = vand.u32 %v313, 4294901760
        %v660 = vsub.f32 %v313, %v659
        %661 = vmatprep.subr.mxu0 %v660
        %v662 = vand.u32 %v312, 4294901760
        %v663 = vsub.f32 %v312, %v662
        %664 = vmatpush1.msra.mxu0 %v663
        %665 = vmatprep.subr.mxu0 0.0
        %666 = vmatpush2.msra.mxu0 0.0
        %667 = vmatprep.subr.mxu0 0.0
        %668 = vmatpush2.msra.mxu0 0.0
        %669 = vmatprep.subr.mxu0 0.0
        %670 = vmatpush2.msra.mxu0 0.0
        %671 = vmatprep.subr.mxu0 0.0
        %672 = vmatpush2.msra.mxu0 0.0
        %673 = vmatprep.subr.mxu0 0.0
        %674 = vmatpush2.msra.mxu0 0.0
        %675 = vmatprep.subr.mxu0 0.0
        %676 = vmatpush2.msra.mxu0 0.0
        %677 = vmatprep.subr.mxu0 0.0
        %678 = vmatpush2.msra.mxu0 0.0
        %679 = vmatprep.subr.mxu0 0.0
        %680 = vmatpush2.msra.mxu0 0.0
        %681 = vmatprep.subr.mxu0 0.0
        %682 = vmatpush2.msra.mxu0 0.0
        %683 = vmatprep.subr.mxu0 0.0
        %684 = vmatpush2.msra.mxu0 0.0
        %685 = vmatprep.subr.mxu0 0.0
        %686 = vmatpush2.msra.mxu0 0.0
        %687 = vmatprep.subr.mxu0 0.0
        %688 = vmatpush2.msra.mxu0 0.0
        %689 = vmatprep.subr.mxu0 0.0
        %690 = vmatpush2.msra.mxu0 0.0
        %691 = vmatprep.subr.mxu0 0.0
        %692 = vmatpush2.msra.mxu0 0.0
        %693 = vmatprep.subr.mxu0 0.0
        %694 = vmatpush2.msra.mxu0 0.0
        %695 = vmatprep.subr.mxu0 0.0
        %696 = vmatpush2.msra.mxu0 0.0
        %697 = vmatprep.mubr.f32.mxu0 0.0
        %v698 = vand.u32 %v355, 4294901760
        %v699 = vsub.f32 %v355, %v698
        %700 = vmatmul.mubr.f32.gmra.mxu0 %v699
        %v701 = vpop.f32.mrf.mxu0
        %v702 = vadd.f32 %v597, %v701
        %v703 = vpop.f32.mrf.mxu0
        %v704 = vadd.f32 %v599, %v703
        %705 = vdwg.mxu0
        %706 = vmatprep.subr.mxu0 0.0
        %707 = vmatpush1.msra.mxu0 0.0
        %708 = vmatprep.subr.mxu0 0.0
        %709 = vmatpush1.msra.mxu0 0.0
        %710 = vmatprep.subr.mxu0 0.0
        %711 = vmatpush1.msra.mxu0 0.0
        %712 = vmatprep.subr.mxu0 0.0
        %713 = vmatpush1.msra.mxu0 0.0
        %714 = vmatprep.subr.mxu0 0.0
        %715 = vmatpush1.msra.mxu0 0.0
        %716 = vmatprep.subr.mxu0 0.0
        %717 = vmatpush1.msra.mxu0 0.0
        %718 = vmatprep.subr.mxu0 0.0
        %719 = vmatpush1.msra.mxu0 0.0
        %720 = vmatprep.subr.mxu0 0.0
        %721 = vmatpush1.msra.mxu0 0.0
        %v722 = vand.u32 %v334, 4294901760
        %723 = vmatprep.subr.mxu0 %v722
        %v724 = vand.u32 %v333, 4294901760
        %725 = vmatpush1.msra.mxu0 %v724
        %v726 = vand.u32 %v331, 4294901760
        %727 = vmatprep.subr.mxu0 %v726
        %v728 = vand.u32 %v330, 4294901760
        %729 = vmatpush1.msra.mxu0 %v728
        %v730 = vand.u32 %v328, 4294901760
        %731 = vmatprep.subr.mxu0 %v730
        %v732 = vand.u32 %v327, 4294901760
        %733 = vmatpush1.msra.mxu0 %v732
        %v734 = vand.u32 %v325, 4294901760
        %735 = vmatprep.subr.mxu0 %v734
        %v736 = vand.u32 %v324, 4294901760
        %737 = vmatpush1.msra.mxu0 %v736
        %v738 = vand.u32 %v322, 4294901760
        %739 = vmatprep.subr.mxu0 %v738
        %v740 = vand.u32 %v321, 4294901760
        %741 = vmatpush1.msra.mxu0 %v740
        %v742 = vand.u32 %v319, 4294901760
        %743 = vmatprep.subr.mxu0 %v742
        %v744 = vand.u32 %v318, 4294901760
        %745 = vmatpush1.msra.mxu0 %v744
        %v746 = vand.u32 %v316, 4294901760
        %747 = vmatprep.subr.mxu0 %v746
        %v748 = vand.u32 %v315, 4294901760
        %749 = vmatpush1.msra.mxu0 %v748
        %v750 = vand.u32 %v313, 4294901760
        %751 = vmatprep.subr.mxu0 %v750
        %v752 = vand.u32 %v312, 4294901760
        %753 = vmatpush1.msra.mxu0 %v752
        %754 = vmatprep.subr.mxu0 0.0
        %755 = vmatpush2.msra.mxu0 0.0
        %756 = vmatprep.subr.mxu0 0.0
        %757 = vmatpush2.msra.mxu0 0.0
        %758 = vmatprep.subr.mxu0 0.0
        %759 = vmatpush2.msra.mxu0 0.0
        %760 = vmatprep.subr.mxu0 0.0
        %761 = vmatpush2.msra.mxu0 0.0
        %762 = vmatprep.subr.mxu0 0.0
        %763 = vmatpush2.msra.mxu0 0.0
        %764 = vmatprep.subr.mxu0 0.0
        %765 = vmatpush2.msra.mxu0 0.0
        %766 = vmatprep.subr.mxu0 0.0
        %767 = vmatpush2.msra.mxu0 0.0
        %768 = vmatprep.subr.mxu0 0.0
        %769 = vmatpush2.msra.mxu0 0.0
        %770 = vmatprep.subr.mxu0 0.0
        %771 = vmatpush2.msra.mxu0 0.0
        %772 = vmatprep.subr.mxu0 0.0
        %773 = vmatpush2.msra.mxu0 0.0
        %774 = vmatprep.subr.mxu0 0.0
        %775 = vmatpush2.msra.mxu0 0.0
        %776 = vmatprep.subr.mxu0 0.0
        %777 = vmatpush2.msra.mxu0 0.0
        %778 = vmatprep.subr.mxu0 0.0
        %779 = vmatpush2.msra.mxu0 0.0
        %780 = vmatprep.subr.mxu0 0.0
        %781 = vmatpush2.msra.mxu0 0.0
        %782 = vmatprep.subr.mxu0 0.0
        %783 = vmatpush2.msra.mxu0 0.0
        %784 = vmatprep.subr.mxu0 0.0
        %785 = vmatpush2.msra.mxu0 0.0
        %786 = vmatprep.mubr.f32.mxu0 0.0
        %v787 = vand.u32 %v355, 4294901760
        %v788 = vsub.f32 %v355, %v787
        %v789 = vand.u32 %v788, 4294901760
        %790 = vmatmul.mubr.f32.gmra.mxu0 %v789
        %v791 = vpop.f32.mrf.mxu0
        %v792 = vadd.f32 %v702, %v791
        %v793 = vpop.f32.mrf.mxu0
        %v794 = vadd.f32 %v704, %v793
        %795 = vdwg.mxu0
        %796 = vmatprep.subr.mxu0 0.0
        %797 = vmatpush1.msra.mxu0 0.0
        %798 = vmatprep.subr.mxu0 0.0
        %799 = vmatpush1.msra.mxu0 0.0
        %800 = vmatprep.subr.mxu0 0.0
        %801 = vmatpush1.msra.mxu0 0.0
        %802 = vmatprep.subr.mxu0 0.0
        %803 = vmatpush1.msra.mxu0 0.0
        %804 = vmatprep.subr.mxu0 0.0
        %805 = vmatpush1.msra.mxu0 0.0
        %806 = vmatprep.subr.mxu0 0.0
        %807 = vmatpush1.msra.mxu0 0.0
        %808 = vmatprep.subr.mxu0 0.0
        %809 = vmatpush1.msra.mxu0 0.0
        %810 = vmatprep.subr.mxu0 0.0
        %811 = vmatpush1.msra.mxu0 0.0
        %v812 = vand.u32 %v334, 4294901760
        %v813 = vsub.f32 %v334, %v812
        %v814 = vand.u32 %v813, 4294901760
        %815 = vmatprep.subr.mxu0 %v814
        %v816 = vand.u32 %v333, 4294901760
        %v817 = vsub.f32 %v333, %v816
        %v818 = vand.u32 %v817, 4294901760
        %819 = vmatpush1.msra.mxu0 %v818
        %v820 = vand.u32 %v331, 4294901760
        %v821 = vsub.f32 %v331, %v820
        %v822 = vand.u32 %v821, 4294901760
        %823 = vmatprep.subr.mxu0 %v822
        %v824 = vand.u32 %v330, 4294901760
        %v825 = vsub.f32 %v330, %v824
        %v826 = vand.u32 %v825, 4294901760
        %827 = vmatpush1.msra.mxu0 %v826
        %v828 = vand.u32 %v328, 4294901760
        %v829 = vsub.f32 %v328, %v828
        %v830 = vand.u32 %v829, 4294901760
        %831 = vmatprep.subr.mxu0 %v830
        %v832 = vand.u32 %v327, 4294901760
        %v833 = vsub.f32 %v327, %v832
        %v834 = vand.u32 %v833, 4294901760
        %835 = vmatpush1.msra.mxu0 %v834
        %v836 = vand.u32 %v325, 4294901760
        %v837 = vsub.f32 %v325, %v836
        %v838 = vand.u32 %v837, 4294901760
        %839 = vmatprep.subr.mxu0 %v838
        %v840 = vand.u32 %v324, 4294901760
        %v841 = vsub.f32 %v324, %v840
        %v842 = vand.u32 %v841, 4294901760
        %843 = vmatpush1.msra.mxu0 %v842
        %v844 = vand.u32 %v322, 4294901760
        %v845 = vsub.f32 %v322, %v844
        %v846 = vand.u32 %v845, 4294901760
        %847 = vmatprep.subr.mxu0 %v846
        %v848 = vand.u32 %v321, 4294901760
        %v849 = vsub.f32 %v321, %v848
        %v850 = vand.u32 %v849, 4294901760
        %851 = vmatpush1.msra.mxu0 %v850
        %v852 = vand.u32 %v319, 4294901760
        %v853 = vsub.f32 %v319, %v852
        %v854 = vand.u32 %v853, 4294901760
        %855 = vmatprep.subr.mxu0 %v854
        %v856 = vand.u32 %v318, 4294901760
        %v857 = vsub.f32 %v318, %v856
        %v858 = vand.u32 %v857, 4294901760
        %859 = vmatpush1.msra.mxu0 %v858
        %v860 = vand.u32 %v316, 4294901760
        %v861 = vsub.f32 %v316, %v860
        %v862 = vand.u32 %v861, 4294901760
        %863 = vmatprep.subr.mxu0 %v862
        %v864 = vand.u32 %v315, 4294901760
        %v865 = vsub.f32 %v315, %v864
        %v866 = vand.u32 %v865, 4294901760
        %867 = vmatpush1.msra.mxu0 %v866
        %v868 = vand.u32 %v313, 4294901760
        %v869 = vsub.f32 %v313, %v868
        %v870 = vand.u32 %v869, 4294901760
        %871 = vmatprep.subr.mxu0 %v870
        %v872 = vand.u32 %v312, 4294901760
        %v873 = vsub.f32 %v312, %v872
        %v874 = vand.u32 %v873, 4294901760
        %875 = vmatpush1.msra.mxu0 %v874
        %876 = vmatprep.subr.mxu0 0.0
        %877 = vmatpush2.msra.mxu0 0.0
        %878 = vmatprep.subr.mxu0 0.0
        %879 = vmatpush2.msra.mxu0 0.0
        %880 = vmatprep.subr.mxu0 0.0
        %881 = vmatpush2.msra.mxu0 0.0
        %882 = vmatprep.subr.mxu0 0.0
        %883 = vmatpush2.msra.mxu0 0.0
        %884 = vmatprep.subr.mxu0 0.0
        %885 = vmatpush2.msra.mxu0 0.0
        %886 = vmatprep.subr.mxu0 0.0
        %887 = vmatpush2.msra.mxu0 0.0
        %888 = vmatprep.subr.mxu0 0.0
        %889 = vmatpush2.msra.mxu0 0.0
        %890 = vmatprep.subr.mxu0 0.0
        %891 = vmatpush2.msra.mxu0 0.0
        %892 = vmatprep.subr.mxu0 0.0
        %893 = vmatpush2.msra.mxu0 0.0
        %894 = vmatprep.subr.mxu0 0.0
        %895 = vmatpush2.msra.mxu0 0.0
        %896 = vmatprep.subr.mxu0 0.0
        %897 = vmatpush2.msra.mxu0 0.0
        %898 = vmatprep.subr.mxu0 0.0
        %899 = vmatpush2.msra.mxu0 0.0
        %900 = vmatprep.subr.mxu0 0.0
        %901 = vmatpush2.msra.mxu0 0.0
        %902 = vmatprep.subr.mxu0 0.0
        %903 = vmatpush2.msra.mxu0 0.0
        %904 = vmatprep.subr.mxu0 0.0
        %905 = vmatpush2.msra.mxu0 0.0
        %906 = vmatprep.subr.mxu0 0.0
        %907 = vmatpush2.msra.mxu0 0.0
        %908 = vmatprep.mubr.f32.mxu0 0.0
        %v909 = vand.u32 %v355, 4294901760
        %910 = vmatmul.mubr.f32.gmra.mxu0 %v909
        %v911 = vpop.f32.mrf.mxu0
        %v912 = vadd.f32 %v792, %v911
        %v913 = vpop.f32.mrf.mxu0
        %v914 = vadd.f32 %v794, %v913
        %915 = vdwg.mxu0
        %916 = vmatprep.subr.mxu0 0.0
        %917 = vmatpush1.msra.mxu0 0.0
        %918 = vmatprep.subr.mxu0 0.0
        %919 = vmatpush1.msra.mxu0 0.0
        %920 = vmatprep.subr.mxu0 0.0
        %921 = vmatpush1.msra.mxu0 0.0
        %922 = vmatprep.subr.mxu0 0.0
        %923 = vmatpush1.msra.mxu0 0.0
        %924 = vmatprep.subr.mxu0 0.0
        %925 = vmatpush1.msra.mxu0 0.0
        %926 = vmatprep.subr.mxu0 0.0
        %927 = vmatpush1.msra.mxu0 0.0
        %928 = vmatprep.subr.mxu0 0.0
        %929 = vmatpush1.msra.mxu0 0.0
        %930 = vmatprep.subr.mxu0 0.0
        %931 = vmatpush1.msra.mxu0 0.0
        %v932 = vand.u32 %v334, 4294901760
        %933 = vmatprep.subr.mxu0 %v932
        %v934 = vand.u32 %v333, 4294901760
        %935 = vmatpush1.msra.mxu0 %v934
        %v936 = vand.u32 %v331, 4294901760
        %937 = vmatprep.subr.mxu0 %v936
        %v938 = vand.u32 %v330, 4294901760
        %939 = vmatpush1.msra.mxu0 %v938
        %v940 = vand.u32 %v328, 4294901760
        %941 = vmatprep.subr.mxu0 %v940
        %v942 = vand.u32 %v327, 4294901760
        %943 = vmatpush1.msra.mxu0 %v942
        %v944 = vand.u32 %v325, 4294901760
        %945 = vmatprep.subr.mxu0 %v944
        %v946 = vand.u32 %v324, 4294901760
        %947 = vmatpush1.msra.mxu0 %v946
        %v948 = vand.u32 %v322, 4294901760
        %949 = vmatprep.subr.mxu0 %v948
        %v950 = vand.u32 %v321, 4294901760
        %951 = vmatpush1.msra.mxu0 %v950
        %v952 = vand.u32 %v319, 4294901760
        %953 = vmatprep.subr.mxu0 %v952
        %v954 = vand.u32 %v318, 4294901760
        %955 = vmatpush1.msra.mxu0 %v954
        %v956 = vand.u32 %v316, 4294901760
        %957 = vmatprep.subr.mxu0 %v956
        %v958 = vand.u32 %v315, 4294901760
        %959 = vmatpush1.msra.mxu0 %v958
        %v960 = vand.u32 %v313, 4294901760
        %961 = vmatprep.subr.mxu0 %v960
        %v962 = vand.u32 %v312, 4294901760
        %963 = vmatpush1.msra.mxu0 %v962
        %964 = vmatprep.subr.mxu0 0.0
        %965 = vmatpush2.msra.mxu0 0.0
        %966 = vmatprep.subr.mxu0 0.0
        %967 = vmatpush2.msra.mxu0 0.0
        %968 = vmatprep.subr.mxu0 0.0
        %969 = vmatpush2.msra.mxu0 0.0
        %970 = vmatprep.subr.mxu0 0.0
        %971 = vmatpush2.msra.mxu0 0.0
        %972 = vmatprep.subr.mxu0 0.0
        %973 = vmatpush2.msra.mxu0 0.0
        %974 = vmatprep.subr.mxu0 0.0
        %975 = vmatpush2.msra.mxu0 0.0
        %976 = vmatprep.subr.mxu0 0.0
        %977 = vmatpush2.msra.mxu0 0.0
        %978 = vmatprep.subr.mxu0 0.0
        %979 = vmatpush2.msra.mxu0 0.0
        %980 = vmatprep.subr.mxu0 0.0
        %981 = vmatpush2.msra.mxu0 0.0
        %982 = vmatprep.subr.mxu0 0.0
        %983 = vmatpush2.msra.mxu0 0.0
        %984 = vmatprep.subr.mxu0 0.0
        %985 = vmatpush2.msra.mxu0 0.0
        %986 = vmatprep.subr.mxu0 0.0
        %987 = vmatpush2.msra.mxu0 0.0
        %988 = vmatprep.subr.mxu0 0.0
        %989 = vmatpush2.msra.mxu0 0.0
        %990 = vmatprep.subr.mxu0 0.0
        %991 = vmatpush2.msra.mxu0 0.0
        %992 = vmatprep.subr.mxu0 0.0
        %993 = vmatpush2.msra.mxu0 0.0
        %994 = vmatprep.subr.mxu0 0.0
        %995 = vmatpush2.msra.mxu0 0.0
        %996 = vmatprep.mubr.f32.mxu0 0.0
        %v997 = vand.u32 %v355, 4294901760
        %998 = vmatmul.mubr.f32.gmra.mxu0 %v997
        %v999 = vpop.f32.mrf.mxu0
        %v1000 = vadd.f32 %v912, %v999
        %v1001 = vpop.f32.mrf.mxu0
        %v1002 = vadd.f32 %v914, %v1001
        %1003 = vdwg.mxu0
        %1004 = vmatprep.subr.mxu0 0.0
        %1005 = vmatpush1.msra.mxu0 0.0
        %1006 = vmatprep.subr.mxu0 0.0
        %1007 = vmatpush1.msra.mxu0 0.0
        %1008 = vmatprep.subr.mxu0 0.0
        %1009 = vmatpush1.msra.mxu0 0.0
        %1010 = vmatprep.subr.mxu0 0.0
        %1011 = vmatpush1.msra.mxu0 0.0
        %1012 = vmatprep.subr.mxu0 0.0
        %1013 = vmatpush1.msra.mxu0 0.0
        %1014 = vmatprep.subr.mxu0 0.0
        %1015 = vmatpush1.msra.mxu0 0.0
        %1016 = vmatprep.subr.mxu0 0.0
        %1017 = vmatpush1.msra.mxu0 0.0
        %1018 = vmatprep.subr.mxu0 0.0
        %1019 = vmatpush1.msra.mxu0 0.0
        %1020 = vmatprep.subr.mxu0 0.0
        %v1021 = vand.u32 %v335, 4294901760
        %1022 = vmatpush1.msra.mxu0 %v1021
        %1023 = vmatprep.subr.mxu0 0.0
        %v1024 = vand.u32 %v332, 4294901760
        %1025 = vmatpush1.msra.mxu0 %v1024
        %1026 = vmatprep.subr.mxu0 0.0
        %v1027 = vand.u32 %v329, 4294901760
        %1028 = vmatpush1.msra.mxu0 %v1027
        %1029 = vmatprep.subr.mxu0 0.0
        %v1030 = vand.u32 %v326, 4294901760
        %1031 = vmatpush1.msra.mxu0 %v1030
        %1032 = vmatprep.subr.mxu0 0.0
        %v1033 = vand.u32 %v323, 4294901760
        %1034 = vmatpush1.msra.mxu0 %v1033
        %1035 = vmatprep.subr.mxu0 0.0
        %v1036 = vand.u32 %v320, 4294901760
        %1037 = vmatpush1.msra.mxu0 %v1036
        %1038 = vmatprep.subr.mxu0 0.0
        %v1039 = vand.u32 %v317, 4294901760
        %1040 = vmatpush1.msra.mxu0 %v1039
        %1041 = vmatprep.subr.mxu0 0.0
        %v1042 = vand.u32 %v314, 4294901760
        %1043 = vmatpush1.msra.mxu0 %v1042
        %1044 = vmatprep.subr.mxu0 0.0
        %1045 = vmatpush2.msra.mxu0 0.0
        %1046 = vmatprep.subr.mxu0 0.0
        %1047 = vmatpush2.msra.mxu0 0.0
        %1048 = vmatprep.subr.mxu0 0.0
        %1049 = vmatpush2.msra.mxu0 0.0
        %1050 = vmatprep.subr.mxu0 0.0
        %1051 = vmatpush2.msra.mxu0 0.0
        %1052 = vmatprep.subr.mxu0 0.0
        %1053 = vmatpush2.msra.mxu0 0.0
        %1054 = vmatprep.subr.mxu0 0.0
        %1055 = vmatpush2.msra.mxu0 0.0
        %1056 = vmatprep.subr.mxu0 0.0
        %1057 = vmatpush2.msra.mxu0 0.0
        %1058 = vmatprep.subr.mxu0 0.0
        %1059 = vmatpush2.msra.mxu0 0.0
        %1060 = vmatprep.subr.mxu0 0.0
        %1061 = vmatpush2.msra.mxu0 0.0
        %1062 = vmatprep.subr.mxu0 0.0
        %1063 = vmatpush2.msra.mxu0 0.0
        %1064 = vmatprep.subr.mxu0 0.0
        %1065 = vmatpush2.msra.mxu0 0.0
        %1066 = vmatprep.subr.mxu0 0.0
        %1067 = vmatpush2.msra.mxu0 0.0
        %1068 = vmatprep.subr.mxu0 0.0
        %1069 = vmatpush2.msra.mxu0 0.0
        %1070 = vmatprep.subr.mxu0 0.0
        %1071 = vmatpush2.msra.mxu0 0.0
        %1072 = vmatprep.subr.mxu0 0.0
        %1073 = vmatpush2.msra.mxu0 0.0
        %1074 = vmatprep.subr.mxu0 0.0
        %1075 = vmatpush2.msra.mxu0 0.0
        %1076 = vmatprep.mubr.f32.mxu0 0.0
        %v1077 = vand.u32 %v355, 4294901760
        %v1078 = vsub.f32 %v355, %v1077
        %v1079 = vand.u32 %v1078, 4294901760
        %v1080 = vsub.f32 %v1078, %v1079
        %v1081 = vand.u32 %v1080, 4294901760
        %1082 = vmatmul.mubr.f32.gmra.mxu0 %v1081
        %v1083 = vpop.f32.mrf.mxu0
        %v1084 = vadd.f32 %v349, %v1083
        %v1085 = vpop.f32.mrf.mxu0
        %1086 = vdwg.mxu0
        %1087 = vmatprep.subr.mxu0 0.0
        %1088 = vmatpush1.msra.mxu0 0.0
        %1089 = vmatprep.subr.mxu0 0.0
        %1090 = vmatpush1.msra.mxu0 0.0
        %1091 = vmatprep.subr.mxu0 0.0
        %1092 = vmatpush1.msra.mxu0 0.0
        %1093 = vmatprep.subr.mxu0 0.0
        %1094 = vmatpush1.msra.mxu0 0.0
        %1095 = vmatprep.subr.mxu0 0.0
        %1096 = vmatpush1.msra.mxu0 0.0
        %1097 = vmatprep.subr.mxu0 0.0
        %1098 = vmatpush1.msra.mxu0 0.0
        %1099 = vmatprep.subr.mxu0 0.0
        %1100 = vmatpush1.msra.mxu0 0.0
        %1101 = vmatprep.subr.mxu0 0.0
        %1102 = vmatpush1.msra.mxu0 0.0
        %1103 = vmatprep.subr.mxu0 0.0
        %v1104 = vand.u32 %v335, 4294901760
        %v1105 = vsub.f32 %v335, %v1104
        %v1106 = vand.u32 %v1105, 4294901760
        %v1107 = vsub.f32 %v1105, %v1106
        %v1108 = vand.u32 %v1107, 4294901760
        %1109 = vmatpush1.msra.mxu0 %v1108
        %1110 = vmatprep.subr.mxu0 0.0
        %v1111 = vand.u32 %v332, 4294901760
        %v1112 = vsub.f32 %v332, %v1111
        %v1113 = vand.u32 %v1112, 4294901760
        %v1114 = vsub.f32 %v1112, %v1113
        %v1115 = vand.u32 %v1114, 4294901760
        %1116 = vmatpush1.msra.mxu0 %v1115
        %1117 = vmatprep.subr.mxu0 0.0
        %v1118 = vand.u32 %v329, 4294901760
        %v1119 = vsub.f32 %v329, %v1118
        %v1120 = vand.u32 %v1119, 4294901760
        %v1121 = vsub.f32 %v1119, %v1120
        %v1122 = vand.u32 %v1121, 4294901760
        %1123 = vmatpush1.msra.mxu0 %v1122
        %1124 = vmatprep.subr.mxu0 0.0
        %v1125 = vand.u32 %v326, 4294901760
        %v1126 = vsub.f32 %v326, %v1125
        %v1127 = vand.u32 %v1126, 4294901760
        %v1128 = vsub.f32 %v1126, %v1127
        %v1129 = vand.u32 %v1128, 4294901760
        %1130 = vmatpush1.msra.mxu0 %v1129
        %1131 = vmatprep.subr.mxu0 0.0
        %v1132 = vand.u32 %v323, 4294901760
        %v1133 = vsub.f32 %v323, %v1132
        %v1134 = vand.u32 %v1133, 4294901760
        %v1135 = vsub.f32 %v1133, %v1134
        %v1136 = vand.u32 %v1135, 4294901760
        %1137 = vmatpush1.msra.mxu0 %v1136
        %1138 = vmatprep.subr.mxu0 0.0
        %v1139 = vand.u32 %v320, 4294901760
        %v1140 = vsub.f32 %v320, %v1139
        %v1141 = vand.u32 %v1140, 4294901760
        %v1142 = vsub.f32 %v1140, %v1141
        %v1143 = vand.u32 %v1142, 4294901760
        %1144 = vmatpush1.msra.mxu0 %v1143
        %1145 = vmatprep.subr.mxu0 0.0
        %v1146 = vand.u32 %v317, 4294901760
        %v1147 = vsub.f32 %v317, %v1146
        %v1148 = vand.u32 %v1147, 4294901760
        %v1149 = vsub.f32 %v1147, %v1148
        %v1150 = vand.u32 %v1149, 4294901760
        %1151 = vmatpush1.msra.mxu0 %v1150
        %1152 = vmatprep.subr.mxu0 0.0
        %v1153 = vand.u32 %v314, 4294901760
        %v1154 = vsub.f32 %v314, %v1153
        %v1155 = vand.u32 %v1154, 4294901760
        %v1156 = vsub.f32 %v1154, %v1155
        %v1157 = vand.u32 %v1156, 4294901760
        %1158 = vmatpush1.msra.mxu0 %v1157
        %1159 = vmatprep.subr.mxu0 0.0
        %1160 = vmatpush2.msra.mxu0 0.0
        %1161 = vmatprep.subr.mxu0 0.0
        %1162 = vmatpush2.msra.mxu0 0.0
        %1163 = vmatprep.subr.mxu0 0.0
        %1164 = vmatpush2.msra.mxu0 0.0
        %1165 = vmatprep.subr.mxu0 0.0
        %1166 = vmatpush2.msra.mxu0 0.0
        %1167 = vmatprep.subr.mxu0 0.0
        %1168 = vmatpush2.msra.mxu0 0.0
        %1169 = vmatprep.subr.mxu0 0.0
        %1170 = vmatpush2.msra.mxu0 0.0
        %1171 = vmatprep.subr.mxu0 0.0
        %1172 = vmatpush2.msra.mxu0 0.0
        %1173 = vmatprep.subr.mxu0 0.0
        %1174 = vmatpush2.msra.mxu0 0.0
        %1175 = vmatprep.subr.mxu0 0.0
        %1176 = vmatpush2.msra.mxu0 0.0
        %1177 = vmatprep.subr.mxu0 0.0
        %1178 = vmatpush2.msra.mxu0 0.0
        %1179 = vmatprep.subr.mxu0 0.0
        %1180 = vmatpush2.msra.mxu0 0.0
        %1181 = vmatprep.subr.mxu0 0.0
        %1182 = vmatpush2.msra.mxu0 0.0
        %1183 = vmatprep.subr.mxu0 0.0
        %1184 = vmatpush2.msra.mxu0 0.0
        %1185 = vmatprep.subr.mxu0 0.0
        %1186 = vmatpush2.msra.mxu0 0.0
        %1187 = vmatprep.subr.mxu0 0.0
        %1188 = vmatpush2.msra.mxu0 0.0
        %1189 = vmatprep.subr.mxu0 0.0
        %1190 = vmatpush2.msra.mxu0 0.0
        %1191 = vmatprep.mubr.f32.mxu0 0.0
        %v1192 = vand.u32 %v355, 4294901760
        %1193 = vmatmul.mubr.f32.gmra.mxu0 %v1192
        %v1194 = vpop.f32.mrf.mxu0
        %v1195 = vadd.f32 %v1084, %v1194
        %v1196 = vpop.f32.mrf.mxu0
        %1197 = vdwg.mxu0
        %1198 = vmatprep.subr.mxu0 0.0
        %1199 = vmatpush1.msra.mxu0 0.0
        %1200 = vmatprep.subr.mxu0 0.0
        %1201 = vmatpush1.msra.mxu0 0.0
        %1202 = vmatprep.subr.mxu0 0.0
        %1203 = vmatpush1.msra.mxu0 0.0
        %1204 = vmatprep.subr.mxu0 0.0
        %1205 = vmatpush1.msra.mxu0 0.0
        %1206 = vmatprep.subr.mxu0 0.0
        %1207 = vmatpush1.msra.mxu0 0.0
        %1208 = vmatprep.subr.mxu0 0.0
        %1209 = vmatpush1.msra.mxu0 0.0
        %1210 = vmatprep.subr.mxu0 0.0
        %1211 = vmatpush1.msra.mxu0 0.0
        %1212 = vmatprep.subr.mxu0 0.0
        %1213 = vmatpush1.msra.mxu0 0.0
        %1214 = vmatprep.subr.mxu0 0.0
        %v1215 = vand.u32 %v335, 4294901760
        %v1216 = vsub.f32 %v335, %v1215
        %1217 = vmatpush1.msra.mxu0 %v1216
        %1218 = vmatprep.subr.mxu0 0.0
        %v1219 = vand.u32 %v332, 4294901760
        %v1220 = vsub.f32 %v332, %v1219
        %1221 = vmatpush1.msra.mxu0 %v1220
        %1222 = vmatprep.subr.mxu0 0.0
        %v1223 = vand.u32 %v329, 4294901760
        %v1224 = vsub.f32 %v329, %v1223
        %1225 = vmatpush1.msra.mxu0 %v1224
        %1226 = vmatprep.subr.mxu0 0.0
        %v1227 = vand.u32 %v326, 4294901760
        %v1228 = vsub.f32 %v326, %v1227
        %1229 = vmatpush1.msra.mxu0 %v1228
        %1230 = vmatprep.subr.mxu0 0.0
        %v1231 = vand.u32 %v323, 4294901760
        %v1232 = vsub.f32 %v323, %v1231
        %1233 = vmatpush1.msra.mxu0 %v1232
        %1234 = vmatprep.subr.mxu0 0.0
        %v1235 = vand.u32 %v320, 4294901760
        %v1236 = vsub.f32 %v320, %v1235
        %1237 = vmatpush1.msra.mxu0 %v1236
        %1238 = vmatprep.subr.mxu0 0.0
        %v1239 = vand.u32 %v317, 4294901760
        %v1240 = vsub.f32 %v317, %v1239
        %1241 = vmatpush1.msra.mxu0 %v1240
        %1242 = vmatprep.subr.mxu0 0.0
        %v1243 = vand.u32 %v314, 4294901760
        %v1244 = vsub.f32 %v314, %v1243
        %1245 = vmatpush1.msra.mxu0 %v1244
        %1246 = vmatprep.subr.mxu0 0.0
        %1247 = vmatpush2.msra.mxu0 0.0
        %1248 = vmatprep.subr.mxu0 0.0
        %1249 = vmatpush2.msra.mxu0 0.0
        %1250 = vmatprep.subr.mxu0 0.0
        %1251 = vmatpush2.msra.mxu0 0.0
        %1252 = vmatprep.subr.mxu0 0.0
        %1253 = vmatpush2.msra.mxu0 0.0
        %1254 = vmatprep.subr.mxu0 0.0
        %1255 = vmatpush2.msra.mxu0 0.0
        %1256 = vmatprep.subr.mxu0 0.0
        %1257 = vmatpush2.msra.mxu0 0.0
        %1258 = vmatprep.subr.mxu0 0.0
        %1259 = vmatpush2.msra.mxu0 0.0
        %1260 = vmatprep.subr.mxu0 0.0
        %1261 = vmatpush2.msra.mxu0 0.0
        %1262 = vmatprep.subr.mxu0 0.0
        %1263 = vmatpush2.msra.mxu0 0.0
        %1264 = vmatprep.subr.mxu0 0.0
        %1265 = vmatpush2.msra.mxu0 0.0
        %1266 = vmatprep.subr.mxu0 0.0
        %1267 = vmatpush2.msra.mxu0 0.0
        %1268 = vmatprep.subr.mxu0 0.0
        %1269 = vmatpush2.msra.mxu0 0.0
        %1270 = vmatprep.subr.mxu0 0.0
        %1271 = vmatpush2.msra.mxu0 0.0
        %1272 = vmatprep.subr.mxu0 0.0
        %1273 = vmatpush2.msra.mxu0 0.0
        %1274 = vmatprep.subr.mxu0 0.0
        %1275 = vmatpush2.msra.mxu0 0.0
        %1276 = vmatprep.subr.mxu0 0.0
        %1277 = vmatpush2.msra.mxu0 0.0
        %1278 = vmatprep.mubr.f32.mxu0 0.0
        %v1279 = vand.u32 %v355, 4294901760
        %v1280 = vsub.f32 %v355, %v1279
        %1281 = vmatmul.mubr.f32.gmra.mxu0 %v1280
        %v1282 = vpop.f32.mrf.mxu0
        %v1283 = vadd.f32 %v1195, %v1282
        %v1284 = vpop.f32.mrf.mxu0
        %1285 = vdwg.mxu0
        %1286 = vmatprep.subr.mxu0 0.0
        %1287 = vmatpush1.msra.mxu0 0.0
        %1288 = vmatprep.subr.mxu0 0.0
        %1289 = vmatpush1.msra.mxu0 0.0
        %1290 = vmatprep.subr.mxu0 0.0
        %1291 = vmatpush1.msra.mxu0 0.0
        %1292 = vmatprep.subr.mxu0 0.0
        %1293 = vmatpush1.msra.mxu0 0.0
        %1294 = vmatprep.subr.mxu0 0.0
        %1295 = vmatpush1.msra.mxu0 0.0
        %1296 = vmatprep.subr.mxu0 0.0
        %1297 = vmatpush1.msra.mxu0 0.0
        %1298 = vmatprep.subr.mxu0 0.0
        %1299 = vmatpush1.msra.mxu0 0.0
        %1300 = vmatprep.subr.mxu0 0.0
        %1301 = vmatpush1.msra.mxu0 0.0
        %1302 = vmatprep.subr.mxu0 0.0
        %v1303 = vand.u32 %v335, 4294901760
        %1304 = vmatpush1.msra.mxu0 %v1303
        %1305 = vmatprep.subr.mxu0 0.0
        %v1306 = vand.u32 %v332, 4294901760
        %1307 = vmatpush1.msra.mxu0 %v1306
        %1308 = vmatprep.subr.mxu0 0.0
        %v1309 = vand.u32 %v329, 4294901760
        %1310 = vmatpush1.msra.mxu0 %v1309
        %1311 = vmatprep.subr.mxu0 0.0
        %v1312 = vand.u32 %v326, 4294901760
        %1313 = vmatpush1.msra.mxu0 %v1312
        %1314 = vmatprep.subr.mxu0 0.0
        %v1315 = vand.u32 %v323, 4294901760
        %1316 = vmatpush1.msra.mxu0 %v1315
        %1317 = vmatprep.subr.mxu0 0.0
        %v1318 = vand.u32 %v320, 4294901760
        %1319 = vmatpush1.msra.mxu0 %v1318
        %1320 = vmatprep.subr.mxu0 0.0
        %v1321 = vand.u32 %v317, 4294901760
        %1322 = vmatpush1.msra.mxu0 %v1321
        %1323 = vmatprep.subr.mxu0 0.0
        %v1324 = vand.u32 %v314, 4294901760
        %1325 = vmatpush1.msra.mxu0 %v1324
        %1326 = vmatprep.subr.mxu0 0.0
        %1327 = vmatpush2.msra.mxu0 0.0
        %1328 = vmatprep.subr.mxu0 0.0
        %1329 = vmatpush2.msra.mxu0 0.0
        %1330 = vmatprep.subr.mxu0 0.0
        %1331 = vmatpush2.msra.mxu0 0.0
        %1332 = vmatprep.subr.mxu0 0.0
        %1333 = vmatpush2.msra.mxu0 0.0
        %1334 = vmatprep.subr.mxu0 0.0
        %1335 = vmatpush2.msra.mxu0 0.0
        %1336 = vmatprep.subr.mxu0 0.0
        %1337 = vmatpush2.msra.mxu0 0.0
        %1338 = vmatprep.subr.mxu0 0.0
        %1339 = vmatpush2.msra.mxu0 0.0
        %1340 = vmatprep.subr.mxu0 0.0
        %1341 = vmatpush2.msra.mxu0 0.0
        %1342 = vmatprep.subr.mxu0 0.0
        %1343 = vmatpush2.msra.mxu0 0.0
        %1344 = vmatprep.subr.mxu0 0.0
        %1345 = vmatpush2.msra.mxu0 0.0
        %1346 = vmatprep.subr.mxu0 0.0
        %1347 = vmatpush2.msra.mxu0 0.0
        %1348 = vmatprep.subr.mxu0 0.0
        %1349 = vmatpush2.msra.mxu0 0.0
        %1350 = vmatprep.subr.mxu0 0.0
        %1351 = vmatpush2.msra.mxu0 0.0
        %1352 = vmatprep.subr.mxu0 0.0
        %1353 = vmatpush2.msra.mxu0 0.0
        %1354 = vmatprep.subr.mxu0 0.0
        %1355 = vmatpush2.msra.mxu0 0.0
        %1356 = vmatprep.subr.mxu0 0.0
        %1357 = vmatpush2.msra.mxu0 0.0
        %1358 = vmatprep.mubr.f32.mxu0 0.0
        %v1359 = vand.u32 %v355, 4294901760
        %v1360 = vsub.f32 %v355, %v1359
        %v1361 = vand.u32 %v1360, 4294901760
        %1362 = vmatmul.mubr.f32.gmra.mxu0 %v1361
        %v1363 = vpop.f32.mrf.mxu0
        %v1364 = vadd.f32 %v1283, %v1363
        %v1365 = vpop.f32.mrf.mxu0
        %1366 = vdwg.mxu0
        %1367 = vmatprep.subr.mxu0 0.0
        %1368 = vmatpush1.msra.mxu0 0.0
        %1369 = vmatprep.subr.mxu0 0.0
        %1370 = vmatpush1.msra.mxu0 0.0
        %1371 = vmatprep.subr.mxu0 0.0
        %1372 = vmatpush1.msra.mxu0 0.0
        %1373 = vmatprep.subr.mxu0 0.0
        %1374 = vmatpush1.msra.mxu0 0.0
        %1375 = vmatprep.subr.mxu0 0.0
        %1376 = vmatpush1.msra.mxu0 0.0
        %1377 = vmatprep.subr.mxu0 0.0
        %1378 = vmatpush1.msra.mxu0 0.0
        %1379 = vmatprep.subr.mxu0 0.0
        %1380 = vmatpush1.msra.mxu0 0.0
        %1381 = vmatprep.subr.mxu0 0.0
        %1382 = vmatpush1.msra.mxu0 0.0
        %1383 = vmatprep.subr.mxu0 0.0
        %v1384 = vand.u32 %v335, 4294901760
        %v1385 = vsub.f32 %v335, %v1384
        %v1386 = vand.u32 %v1385, 4294901760
        %1387 = vmatpush1.msra.mxu0 %v1386
        %1388 = vmatprep.subr.mxu0 0.0
        %v1389 = vand.u32 %v332, 4294901760
        %v1390 = vsub.f32 %v332, %v1389
        %v1391 = vand.u32 %v1390, 4294901760
        %1392 = vmatpush1.msra.mxu0 %v1391
        %1393 = vmatprep.subr.mxu0 0.0
        %v1394 = vand.u32 %v329, 4294901760
        %v1395 = vsub.f32 %v329, %v1394
        %v1396 = vand.u32 %v1395, 4294901760
        %1397 = vmatpush1.msra.mxu0 %v1396
        %1398 = vmatprep.subr.mxu0 0.0
        %v1399 = vand.u32 %v326, 4294901760
        %v1400 = vsub.f32 %v326, %v1399
        %v1401 = vand.u32 %v1400, 4294901760
        %1402 = vmatpush1.msra.mxu0 %v1401
        %1403 = vmatprep.subr.mxu0 0.0
        %v1404 = vand.u32 %v323, 4294901760
        %v1405 = vsub.f32 %v323, %v1404
        %v1406 = vand.u32 %v1405, 4294901760
        %1407 = vmatpush1.msra.mxu0 %v1406
        %1408 = vmatprep.subr.mxu0 0.0
        %v1409 = vand.u32 %v320, 4294901760
        %v1410 = vsub.f32 %v320, %v1409
        %v1411 = vand.u32 %v1410, 4294901760
        %1412 = vmatpush1.msra.mxu0 %v1411
        %1413 = vmatprep.subr.mxu0 0.0
        %v1414 = vand.u32 %v317, 4294901760
        %v1415 = vsub.f32 %v317, %v1414
        %v1416 = vand.u32 %v1415, 4294901760
        %1417 = vmatpush1.msra.mxu0 %v1416
        %1418 = vmatprep.subr.mxu0 0.0
        %v1419 = vand.u32 %v314, 4294901760
        %v1420 = vsub.f32 %v314, %v1419
        %v1421 = vand.u32 %v1420, 4294901760
        %1422 = vmatpush1.msra.mxu0 %v1421
        %1423 = vmatprep.subr.mxu0 0.0
        %1424 = vmatpush2.msra.mxu0 0.0
        %1425 = vmatprep.subr.mxu0 0.0
        %1426 = vmatpush2.msra.mxu0 0.0
        %1427 = vmatprep.subr.mxu0 0.0
        %1428 = vmatpush2.msra.mxu0 0.0
        %1429 = vmatprep.subr.mxu0 0.0
        %1430 = vmatpush2.msra.mxu0 0.0
        %1431 = vmatprep.subr.mxu0 0.0
        %1432 = vmatpush2.msra.mxu0 0.0
        %1433 = vmatprep.subr.mxu0 0.0
        %1434 = vmatpush2.msra.mxu0 0.0
        %1435 = vmatprep.subr.mxu0 0.0
        %1436 = vmatpush2.msra.mxu0 0.0
        %1437 = vmatprep.subr.mxu0 0.0
        %1438 = vmatpush2.msra.mxu0 0.0
        %1439 = vmatprep.subr.mxu0 0.0
        %1440 = vmatpush2.msra.mxu0 0.0
        %1441 = vmatprep.subr.mxu0 0.0
        %1442 = vmatpush2.msra.mxu0 0.0
        %1443 = vmatprep.subr.mxu0 0.0
        %1444 = vmatpush2.msra.mxu0 0.0
        %1445 = vmatprep.subr.mxu0 0.0
        %1446 = vmatpush2.msra.mxu0 0.0
        %1447 = vmatprep.subr.mxu0 0.0
        %1448 = vmatpush2.msra.mxu0 0.0
        %1449 = vmatprep.subr.mxu0 0.0
        %1450 = vmatpush2.msra.mxu0 0.0
        %1451 = vmatprep.subr.mxu0 0.0
        %1452 = vmatpush2.msra.mxu0 0.0
        %1453 = vmatprep.subr.mxu0 0.0
        %1454 = vmatpush2.msra.mxu0 0.0
        %1455 = vmatprep.mubr.f32.mxu0 0.0
        %v1456 = vand.u32 %v355, 4294901760
        %1457 = vmatmul.mubr.f32.gmra.mxu0 %v1456
        %v1458 = vpop.f32.mrf.mxu0
        %v1459 = vadd.f32 %v1364, %v1458
        %v1460 = vpop.f32.mrf.mxu0
        %1461 = vdwg.mxu0
        %1462 = vmatprep.subr.mxu0 0.0
        %1463 = vmatpush1.msra.mxu0 0.0
        %1464 = vmatprep.subr.mxu0 0.0
        %1465 = vmatpush1.msra.mxu0 0.0
        %1466 = vmatprep.subr.mxu0 0.0
        %1467 = vmatpush1.msra.mxu0 0.0
        %1468 = vmatprep.subr.mxu0 0.0
        %1469 = vmatpush1.msra.mxu0 0.0
        %1470 = vmatprep.subr.mxu0 0.0
        %1471 = vmatpush1.msra.mxu0 0.0
        %1472 = vmatprep.subr.mxu0 0.0
        %1473 = vmatpush1.msra.mxu0 0.0
        %1474 = vmatprep.subr.mxu0 0.0
        %1475 = vmatpush1.msra.mxu0 0.0
        %1476 = vmatprep.subr.mxu0 0.0
        %1477 = vmatpush1.msra.mxu0 0.0
        %1478 = vmatprep.subr.mxu0 0.0
        %v1479 = vand.u32 %v335, 4294901760
        %1480 = vmatpush1.msra.mxu0 %v1479
        %1481 = vmatprep.subr.mxu0 0.0
        %v1482 = vand.u32 %v332, 4294901760
        %1483 = vmatpush1.msra.mxu0 %v1482
        %1484 = vmatprep.subr.mxu0 0.0
        %v1485 = vand.u32 %v329, 4294901760
        %1486 = vmatpush1.msra.mxu0 %v1485
        %1487 = vmatprep.subr.mxu0 0.0
        %v1488 = vand.u32 %v326, 4294901760
        %1489 = vmatpush1.msra.mxu0 %v1488
        %1490 = vmatprep.subr.mxu0 0.0
        %v1491 = vand.u32 %v323, 4294901760
        %1492 = vmatpush1.msra.mxu0 %v1491
        %1493 = vmatprep.subr.mxu0 0.0
        %v1494 = vand.u32 %v320, 4294901760
        %1495 = vmatpush1.msra.mxu0 %v1494
        %1496 = vmatprep.subr.mxu0 0.0
        %v1497 = vand.u32 %v317, 4294901760
        %1498 = vmatpush1.msra.mxu0 %v1497
        %1499 = vmatprep.subr.mxu0 0.0
        %v1500 = vand.u32 %v314, 4294901760
        %1501 = vmatpush1.msra.mxu0 %v1500
        %1502 = vmatprep.subr.mxu0 0.0
        %1503 = vmatpush2.msra.mxu0 0.0
        %1504 = vmatprep.subr.mxu0 0.0
        %1505 = vmatpush2.msra.mxu0 0.0
        %1506 = vmatprep.subr.mxu0 0.0
        %1507 = vmatpush2.msra.mxu0 0.0
        %1508 = vmatprep.subr.mxu0 0.0
        %1509 = vmatpush2.msra.mxu0 0.0
        %1510 = vmatprep.subr.mxu0 0.0
        %1511 = vmatpush2.msra.mxu0 0.0
        %1512 = vmatprep.subr.mxu0 0.0
        %1513 = vmatpush2.msra.mxu0 0.0
        %1514 = vmatprep.subr.mxu0 0.0
        %1515 = vmatpush2.msra.mxu0 0.0
        %1516 = vmatprep.subr.mxu0 0.0
        %1517 = vmatpush2.msra.mxu0 0.0
        %1518 = vmatprep.subr.mxu0 0.0
        %1519 = vmatpush2.msra.mxu0 0.0
        %1520 = vmatprep.subr.mxu0 0.0
        %1521 = vmatpush2.msra.mxu0 0.0
        %1522 = vmatprep.subr.mxu0 0.0
        %1523 = vmatpush2.msra.mxu0 0.0
        %1524 = vmatprep.subr.mxu0 0.0
        %1525 = vmatpush2.msra.mxu0 0.0
        %1526 = vmatprep.subr.mxu0 0.0
        %1527 = vmatpush2.msra.mxu0 0.0
        %1528 = vmatprep.subr.mxu0 0.0
        %1529 = vmatpush2.msra.mxu0 0.0
        %1530 = vmatprep.subr.mxu0 0.0
        %1531 = vmatpush2.msra.mxu0 0.0
        %1532 = vmatprep.subr.mxu0 0.0
        %1533 = vmatpush2.msra.mxu0 0.0
        %1534 = vmatprep.mubr.f32.mxu0 0.0
        %v1535 = vand.u32 %v355, 4294901760
        %1536 = vmatmul.mubr.f32.gmra.mxu0 %v1535
        %v1537 = vpop.f32.mrf.mxu0
        %v1538 = vadd.f32 %v1459, %v1537
        %v1539 = vpop.f32.mrf.mxu0
        %1540 = vdwg.mxu0
        %v1541 = vld [vmem:[#allocation8] sm:$0xff]
        %v1542 = vld [vmem:[#allocation8 + $0x8] sm:$0xff]
        %v1543 = vld [vmem:[#allocation8 + $0x10] sm:$0xff]
        %v1544 = vld [vmem:[#allocation8 + $0x18] sm:$0xff]
        %v1545 = vmul.f32 %v1000, %v1541
        %1547 = vrot.lane.b32.xlu0 %v1542, 64
        %v1548 = vpop.permute.xlu0 %1547
        %v1550 = vmul.f32 %v1000, %v1548
        %1552 = vrot.lane.b32.xlu0 %v1550, 64
        %v1553 = vpop.permute.xlu0 %1552
        %v1555 = vadd.f32 %v1545, %v1553
        %v1556 = vmul.f32 %v1002, %v1543
        %1558 = vrot.lane.b32.xlu0 %v1544, 64
        %v1559 = vpop.permute.xlu0 %1558
        %v1561 = vmul.f32 %v1002, %v1559
        %1563 = vrot.lane.b32.xlu0 %v1561, 64
        %v1564 = vpop.permute.xlu0 %1563
        %v1566 = vadd.f32 %v1556, %v1564
        %vm1567 = vcmask 130048
        %v1569 = vsel %vm1567, %v1555, 0
        %v1572 = vsel %vm1567, %v1566, 0
        %1574 = vmatprep.subr.mxu0 0.0
        %1575 = vmatpush1.xpose.msra.mxu0 0.0
        %1576 = vmatprep.subr.mxu0 0.0
        %1577 = vmatpush1.xpose.msra.mxu0 0.0
        %1578 = vmatprep.subr.mxu0 0.0
        %1579 = vmatpush1.xpose.msra.mxu0 0.0
        %1580 = vmatprep.subr.mxu0 0.0
        %1581 = vmatpush1.xpose.msra.mxu0 0.0
        %1582 = vmatprep.subr.mxu0 0.0
        %1583 = vmatpush1.xpose.msra.mxu0 0.0
        %1584 = vmatprep.subr.mxu0 0.0
        %1585 = vmatpush1.xpose.msra.mxu0 0.0
        %1586 = vmatprep.subr.mxu0 0.0
        %1587 = vmatpush1.xpose.msra.mxu0 0.0
        %1588 = vmatprep.subr.mxu0 0.0
        %1589 = vmatpush1.xpose.msra.mxu0 0.0
        %1590 = vmatprep.subr.mxu0 0.0
        %1591 = vmatpush1.xpose.msra.mxu0 0.0
        %1592 = vmatprep.subr.mxu0 0.0
        %1593 = vmatpush1.xpose.msra.mxu0 0.0
        %1594 = vmatprep.subr.mxu0 0.0
        %1595 = vmatpush1.xpose.msra.mxu0 0.0
        %1596 = vmatprep.subr.mxu0 0.0
        %1597 = vmatpush1.xpose.msra.mxu0 0.0
        %1598 = vmatprep.subr.mxu0 0.0
        %1599 = vmatpush1.xpose.msra.mxu0 0.0
        %1600 = vmatprep.subr.mxu0 0.0
        %1601 = vmatpush1.xpose.msra.mxu0 0.0
        %1602 = vmatprep.subr.mxu0 0.0
        %1603 = vmatpush1.xpose.msra.mxu0 0.0
        %1604 = vmatprep.subr.mxu0 0.0
        %v1605 = vand.u32 %v1572, 4294901760
        %1606 = vmatpush1.xpose.msra.mxu0 %v1605
        %1607 = vmatprep.subr.mxu0 0.0
        %1608 = vmatpush2.xpose.msra.mxu0 0.0
        %1609 = vmatprep.subr.mxu0 0.0
        %1610 = vmatpush2.xpose.msra.mxu0 0.0
        %1611 = vmatprep.subr.mxu0 0.0
        %1612 = vmatpush2.xpose.msra.mxu0 0.0
        %1613 = vmatprep.subr.mxu0 0.0
        %1614 = vmatpush2.xpose.msra.mxu0 0.0
        %1615 = vmatprep.subr.mxu0 0.0
        %1616 = vmatpush2.xpose.msra.mxu0 0.0
        %1617 = vmatprep.subr.mxu0 0.0
        %1618 = vmatpush2.xpose.msra.mxu0 0.0
        %1619 = vmatprep.subr.mxu0 0.0
        %1620 = vmatpush2.xpose.msra.mxu0 0.0
        %1621 = vmatprep.subr.mxu0 0.0
        %1622 = vmatpush2.xpose.msra.mxu0 0.0
        %1623 = vmatprep.subr.mxu0 0.0
        %1624 = vmatpush2.xpose.msra.mxu0 0.0
        %1625 = vmatprep.subr.mxu0 0.0
        %1626 = vmatpush2.xpose.msra.mxu0 0.0
        %1627 = vmatprep.subr.mxu0 0.0
        %1628 = vmatpush2.xpose.msra.mxu0 0.0
        %1629 = vmatprep.subr.mxu0 0.0
        %1630 = vmatpush2.xpose.msra.mxu0 0.0
        %1631 = vmatprep.subr.mxu0 0.0
        %1632 = vmatpush2.xpose.msra.mxu0 0.0
        %1633 = vmatprep.subr.mxu0 0.0
        %1634 = vmatpush2.xpose.msra.mxu0 0.0
        %1635 = vmatprep.subr.mxu0 0.0
        %1636 = vmatpush2.xpose.msra.mxu0 0.0
        %1637 = vmatprep.subr.mxu0 0.0
        %1638 = vmatpush2.xpose.msra.mxu0 0.0
        %1639 = vmatprep.mubr.f32.mxu0 0.0
        %v1640 = vand.u32 %v1569, 4294901760
        %v1641 = vsub.f32 %v1569, %v1640
        %v1642 = vand.u32 %v1641, 4294901760
        %v1643 = vsub.f32 %v1641, %v1642
        %v1644 = vand.u32 %v1643, 4294901760
        %1645 = vmatmul.mubr.f32.gmra.mxu0 %v1644
        %v1646 = vpop.f32.mrf.mxu0
        %v1647 = vadd.f32 0.0, %v1646
        %v1648 = vpop.f32.mrf.mxu0
        %1649 = vdwg.mxu0
        %1650 = vmatprep.subr.mxu0 0.0
        %1651 = vmatpush1.xpose.msra.mxu0 0.0
        %1652 = vmatprep.subr.mxu0 0.0
        %1653 = vmatpush1.xpose.msra.mxu0 0.0
        %1654 = vmatprep.subr.mxu0 0.0
        %1655 = vmatpush1.xpose.msra.mxu0 0.0
        %1656 = vmatprep.subr.mxu0 0.0
        %1657 = vmatpush1.xpose.msra.mxu0 0.0
        %1658 = vmatprep.subr.mxu0 0.0
        %1659 = vmatpush1.xpose.msra.mxu0 0.0
        %1660 = vmatprep.subr.mxu0 0.0
        %1661 = vmatpush1.xpose.msra.mxu0 0.0
        %1662 = vmatprep.subr.mxu0 0.0
        %1663 = vmatpush1.xpose.msra.mxu0 0.0
        %1664 = vmatprep.subr.mxu0 0.0
        %1665 = vmatpush1.xpose.msra.mxu0 0.0
        %1666 = vmatprep.subr.mxu0 0.0
        %1667 = vmatpush1.xpose.msra.mxu0 0.0
        %1668 = vmatprep.subr.mxu0 0.0
        %1669 = vmatpush1.xpose.msra.mxu0 0.0
        %1670 = vmatprep.subr.mxu0 0.0
        %1671 = vmatpush1.xpose.msra.mxu0 0.0
        %1672 = vmatprep.subr.mxu0 0.0
        %1673 = vmatpush1.xpose.msra.mxu0 0.0
        %1674 = vmatprep.subr.mxu0 0.0
        %1675 = vmatpush1.xpose.msra.mxu0 0.0
        %1676 = vmatprep.subr.mxu0 0.0
        %1677 = vmatpush1.xpose.msra.mxu0 0.0
        %1678 = vmatprep.subr.mxu0 0.0
        %1679 = vmatpush1.xpose.msra.mxu0 0.0
        %1680 = vmatprep.subr.mxu0 0.0
        %v1681 = vand.u32 %v1572, 4294901760
        %v1682 = vsub.f32 %v1572, %v1681
        %v1683 = vand.u32 %v1682, 4294901760
        %v1684 = vsub.f32 %v1682, %v1683
        %v1685 = vand.u32 %v1684, 4294901760
        %1686 = vmatpush1.xpose.msra.mxu0 %v1685
        %1687 = vmatprep.subr.mxu0 0.0
        %1688 = vmatpush2.xpose.msra.mxu0 0.0
        %1689 = vmatprep.subr.mxu0 0.0
        %1690 = vmatpush2.xpose.msra.mxu0 0.0
        %1691 = vmatprep.subr.mxu0 0.0
        %1692 = vmatpush2.xpose.msra.mxu0 0.0
        %1693 = vmatprep.subr.mxu0 0.0
        %1694 = vmatpush2.xpose.msra.mxu0 0.0
        %1695 = vmatprep.subr.mxu0 0.0
        %1696 = vmatpush2.xpose.msra.mxu0 0.0
        %1697 = vmatprep.subr.mxu0 0.0
        %1698 = vmatpush2.xpose.msra.mxu0 0.0
        %1699 = vmatprep.subr.mxu0 0.0
        %1700 = vmatpush2.xpose.msra.mxu0 0.0
        %1701 = vmatprep.subr.mxu0 0.0
        %1702 = vmatpush2.xpose.msra.mxu0 0.0
        %1703 = vmatprep.subr.mxu0 0.0
        %1704 = vmatpush2.xpose.msra.mxu0 0.0
        %1705 = vmatprep.subr.mxu0 0.0
        %1706 = vmatpush2.xpose.msra.mxu0 0.0
        %1707 = vmatprep.subr.mxu0 0.0
        %1708 = vmatpush2.xpose.msra.mxu0 0.0
        %1709 = vmatprep.subr.mxu0 0.0
        %1710 = vmatpush2.xpose.msra.mxu0 0.0
        %1711 = vmatprep.subr.mxu0 0.0
        %1712 = vmatpush2.xpose.msra.mxu0 0.0
        %1713 = vmatprep.subr.mxu0 0.0
        %1714 = vmatpush2.xpose.msra.mxu0 0.0
        %1715 = vmatprep.subr.mxu0 0.0
        %1716 = vmatpush2.xpose.msra.mxu0 0.0
        %1717 = vmatprep.subr.mxu0 0.0
        %1718 = vmatpush2.xpose.msra.mxu0 0.0
        %1719 = vmatprep.mubr.f32.mxu0 0.0
        %v1720 = vand.u32 %v1569, 4294901760
        %1721 = vmatmul.mubr.f32.gmra.mxu0 %v1720
        %v1722 = vpop.f32.mrf.mxu0
        %v1723 = vadd.f32 %v1647, %v1722
        %v1724 = vpop.f32.mrf.mxu0
        %1725 = vdwg.mxu0
        %1726 = vmatprep.subr.mxu0 0.0
        %1727 = vmatpush1.xpose.msra.mxu0 0.0
        %1728 = vmatprep.subr.mxu0 0.0
        %1729 = vmatpush1.xpose.msra.mxu0 0.0
        %1730 = vmatprep.subr.mxu0 0.0
        %1731 = vmatpush1.xpose.msra.mxu0 0.0
        %1732 = vmatprep.subr.mxu0 0.0
        %1733 = vmatpush1.xpose.msra.mxu0 0.0
        %1734 = vmatprep.subr.mxu0 0.0
        %1735 = vmatpush1.xpose.msra.mxu0 0.0
        %1736 = vmatprep.subr.mxu0 0.0
        %1737 = vmatpush1.xpose.msra.mxu0 0.0
        %1738 = vmatprep.subr.mxu0 0.0
        %1739 = vmatpush1.xpose.msra.mxu0 0.0
        %1740 = vmatprep.subr.mxu0 0.0
        %1741 = vmatpush1.xpose.msra.mxu0 0.0
        %1742 = vmatprep.subr.mxu0 0.0
        %1743 = vmatpush1.xpose.msra.mxu0 0.0
        %1744 = vmatprep.subr.mxu0 0.0
        %1745 = vmatpush1.xpose.msra.mxu0 0.0
        %1746 = vmatprep.subr.mxu0 0.0
        %1747 = vmatpush1.xpose.msra.mxu0 0.0
        %1748 = vmatprep.subr.mxu0 0.0
        %1749 = vmatpush1.xpose.msra.mxu0 0.0
        %1750 = vmatprep.subr.mxu0 0.0
        %1751 = vmatpush1.xpose.msra.mxu0 0.0
        %1752 = vmatprep.subr.mxu0 0.0
        %1753 = vmatpush1.xpose.msra.mxu0 0.0
        %1754 = vmatprep.subr.mxu0 0.0
        %1755 = vmatpush1.xpose.msra.mxu0 0.0
        %1756 = vmatprep.subr.mxu0 0.0
        %v1757 = vand.u32 %v1572, 4294901760
        %v1758 = vsub.f32 %v1572, %v1757
        %1759 = vmatpush1.xpose.msra.mxu0 %v1758
        %1760 = vmatprep.subr.mxu0 0.0
        %1761 = vmatpush2.xpose.msra.mxu0 0.0
        %1762 = vmatprep.subr.mxu0 0.0
        %1763 = vmatpush2.xpose.msra.mxu0 0.0
        %1764 = vmatprep.subr.mxu0 0.0
        %1765 = vmatpush2.xpose.msra.mxu0 0.0
        %1766 = vmatprep.subr.mxu0 0.0
        %1767 = vmatpush2.xpose.msra.mxu0 0.0
        %1768 = vmatprep.subr.mxu0 0.0
        %1769 = vmatpush2.xpose.msra.mxu0 0.0
        %1770 = vmatprep.subr.mxu0 0.0
        %1771 = vmatpush2.xpose.msra.mxu0 0.0
        %1772 = vmatprep.subr.mxu0 0.0
        %1773 = vmatpush2.xpose.msra.mxu0 0.0
        %1774 = vmatprep.subr.mxu0 0.0
        %1775 = vmatpush2.xpose.msra.mxu0 0.0
        %1776 = vmatprep.subr.mxu0 0.0
        %1777 = vmatpush2.xpose.msra.mxu0 0.0
        %1778 = vmatprep.subr.mxu0 0.0
        %1779 = vmatpush2.xpose.msra.mxu0 0.0
        %1780 = vmatprep.subr.mxu0 0.0
        %1781 = vmatpush2.xpose.msra.mxu0 0.0
        %1782 = vmatprep.subr.mxu0 0.0
        %1783 = vmatpush2.xpose.msra.mxu0 0.0
        %1784 = vmatprep.subr.mxu0 0.0
        %1785 = vmatpush2.xpose.msra.mxu0 0.0
        %1786 = vmatprep.subr.mxu0 0.0
        %1787 = vmatpush2.xpose.msra.mxu0 0.0
        %1788 = vmatprep.subr.mxu0 0.0
        %1789 = vmatpush2.xpose.msra.mxu0 0.0
        %1790 = vmatprep.subr.mxu0 0.0
        %1791 = vmatpush2.xpose.msra.mxu0 0.0
        %1792 = vmatprep.mubr.f32.mxu0 0.0
        %v1793 = vand.u32 %v1569, 4294901760
        %v1794 = vsub.f32 %v1569, %v1793
        %1795 = vmatmul.mubr.f32.gmra.mxu0 %v1794
        %v1796 = vpop.f32.mrf.mxu0
        %v1797 = vadd.f32 %v1723, %v1796
        %v1798 = vpop.f32.mrf.mxu0
        %1799 = vdwg.mxu0
        %1800 = vmatprep.subr.mxu0 0.0
        %1801 = vmatpush1.xpose.msra.mxu0 0.0
        %1802 = vmatprep.subr.mxu0 0.0
        %1803 = vmatpush1.xpose.msra.mxu0 0.0
        %1804 = vmatprep.subr.mxu0 0.0
        %1805 = vmatpush1.xpose.msra.mxu0 0.0
        %1806 = vmatprep.subr.mxu0 0.0
        %1807 = vmatpush1.xpose.msra.mxu0 0.0
        %1808 = vmatprep.subr.mxu0 0.0
        %1809 = vmatpush1.xpose.msra.mxu0 0.0
        %1810 = vmatprep.subr.mxu0 0.0
        %1811 = vmatpush1.xpose.msra.mxu0 0.0
        %1812 = vmatprep.subr.mxu0 0.0
        %1813 = vmatpush1.xpose.msra.mxu0 0.0
        %1814 = vmatprep.subr.mxu0 0.0
        %1815 = vmatpush1.xpose.msra.mxu0 0.0
        %1816 = vmatprep.subr.mxu0 0.0
        %1817 = vmatpush1.xpose.msra.mxu0 0.0
        %1818 = vmatprep.subr.mxu0 0.0
        %1819 = vmatpush1.xpose.msra.mxu0 0.0
        %1820 = vmatprep.subr.mxu0 0.0
        %1821 = vmatpush1.xpose.msra.mxu0 0.0
        %1822 = vmatprep.subr.mxu0 0.0
        %1823 = vmatpush1.xpose.msra.mxu0 0.0
        %1824 = vmatprep.subr.mxu0 0.0
        %1825 = vmatpush1.xpose.msra.mxu0 0.0
        %1826 = vmatprep.subr.mxu0 0.0
        %1827 = vmatpush1.xpose.msra.mxu0 0.0
        %1828 = vmatprep.subr.mxu0 0.0
        %1829 = vmatpush1.xpose.msra.mxu0 0.0
        %1830 = vmatprep.subr.mxu0 0.0
        %v1831 = vand.u32 %v1572, 4294901760
        %1832 = vmatpush1.xpose.msra.mxu0 %v1831
        %1833 = vmatprep.subr.mxu0 0.0
        %1834 = vmatpush2.xpose.msra.mxu0 0.0
        %1835 = vmatprep.subr.mxu0 0.0
        %1836 = vmatpush2.xpose.msra.mxu0 0.0
        %1837 = vmatprep.subr.mxu0 0.0
        %1838 = vmatpush2.xpose.msra.mxu0 0.0
        %1839 = vmatprep.subr.mxu0 0.0
        %1840 = vmatpush2.xpose.msra.mxu0 0.0
        %1841 = vmatprep.subr.mxu0 0.0
        %1842 = vmatpush2.xpose.msra.mxu0 0.0
        %1843 = vmatprep.subr.mxu0 0.0
        %1844 = vmatpush2.xpose.msra.mxu0 0.0
        %1845 = vmatprep.subr.mxu0 0.0
        %1846 = vmatpush2.xpose.msra.mxu0 0.0
        %1847 = vmatprep.subr.mxu0 0.0
        %1848 = vmatpush2.xpose.msra.mxu0 0.0
        %1849 = vmatprep.subr.mxu0 0.0
        %1850 = vmatpush2.xpose.msra.mxu0 0.0
        %1851 = vmatprep.subr.mxu0 0.0
        %1852 = vmatpush2.xpose.msra.mxu0 0.0
        %1853 = vmatprep.subr.mxu0 0.0
        %1854 = vmatpush2.xpose.msra.mxu0 0.0
        %1855 = vmatprep.subr.mxu0 0.0
        %1856 = vmatpush2.xpose.msra.mxu0 0.0
        %1857 = vmatprep.subr.mxu0 0.0
        %1858 = vmatpush2.xpose.msra.mxu0 0.0
        %1859 = vmatprep.subr.mxu0 0.0
        %1860 = vmatpush2.xpose.msra.mxu0 0.0
        %1861 = vmatprep.subr.mxu0 0.0
        %1862 = vmatpush2.xpose.msra.mxu0 0.0
        %1863 = vmatprep.subr.mxu0 0.0
        %1864 = vmatpush2.xpose.msra.mxu0 0.0
        %1865 = vmatprep.mubr.f32.mxu0 0.0
        %v1866 = vand.u32 %v1569, 4294901760
        %v1867 = vsub.f32 %v1569, %v1866
        %v1868 = vand.u32 %v1867, 4294901760
        %1869 = vmatmul.mubr.f32.gmra.mxu0 %v1868
        %v1870 = vpop.f32.mrf.mxu0
        %v1871 = vadd.f32 %v1797, %v1870
        %v1872 = vpop.f32.mrf.mxu0
        %1873 = vdwg.mxu0
        %1874 = vmatprep.subr.mxu0 0.0
        %1875 = vmatpush1.xpose.msra.mxu0 0.0
        %1876 = vmatprep.subr.mxu0 0.0
        %1877 = vmatpush1.xpose.msra.mxu0 0.0
        %1878 = vmatprep.subr.mxu0 0.0
        %1879 = vmatpush1.xpose.msra.mxu0 0.0
        %1880 = vmatprep.subr.mxu0 0.0
        %1881 = vmatpush1.xpose.msra.mxu0 0.0
        %1882 = vmatprep.subr.mxu0 0.0
        %1883 = vmatpush1.xpose.msra.mxu0 0.0
        %1884 = vmatprep.subr.mxu0 0.0
        %1885 = vmatpush1.xpose.msra.mxu0 0.0
        %1886 = vmatprep.subr.mxu0 0.0
        %1887 = vmatpush1.xpose.msra.mxu0 0.0
        %1888 = vmatprep.subr.mxu0 0.0
        %1889 = vmatpush1.xpose.msra.mxu0 0.0
        %1890 = vmatprep.subr.mxu0 0.0
        %1891 = vmatpush1.xpose.msra.mxu0 0.0
        %1892 = vmatprep.subr.mxu0 0.0
        %1893 = vmatpush1.xpose.msra.mxu0 0.0
        %1894 = vmatprep.subr.mxu0 0.0
        %1895 = vmatpush1.xpose.msra.mxu0 0.0
        %1896 = vmatprep.subr.mxu0 0.0
        %1897 = vmatpush1.xpose.msra.mxu0 0.0
        %1898 = vmatprep.subr.mxu0 0.0
        %1899 = vmatpush1.xpose.msra.mxu0 0.0
        %1900 = vmatprep.subr.mxu0 0.0
        %1901 = vmatpush1.xpose.msra.mxu0 0.0
        %1902 = vmatprep.subr.mxu0 0.0
        %1903 = vmatpush1.xpose.msra.mxu0 0.0
        %1904 = vmatprep.subr.mxu0 0.0
        %v1905 = vand.u32 %v1572, 4294901760
        %v1906 = vsub.f32 %v1572, %v1905
        %v1907 = vand.u32 %v1906, 4294901760
        %1908 = vmatpush1.xpose.msra.mxu0 %v1907
        %1909 = vmatprep.subr.mxu0 0.0
        %1910 = vmatpush2.xpose.msra.mxu0 0.0
        %1911 = vmatprep.subr.mxu0 0.0
        %1912 = vmatpush2.xpose.msra.mxu0 0.0
        %1913 = vmatprep.subr.mxu0 0.0
        %1914 = vmatpush2.xpose.msra.mxu0 0.0
        %1915 = vmatprep.subr.mxu0 0.0
        %1916 = vmatpush2.xpose.msra.mxu0 0.0
        %1917 = vmatprep.subr.mxu0 0.0
        %1918 = vmatpush2.xpose.msra.mxu0 0.0
        %1919 = vmatprep.subr.mxu0 0.0
        %1920 = vmatpush2.xpose.msra.mxu0 0.0
        %1921 = vmatprep.subr.mxu0 0.0
        %1922 = vmatpush2.xpose.msra.mxu0 0.0
        %1923 = vmatprep.subr.mxu0 0.0
        %1924 = vmatpush2.xpose.msra.mxu0 0.0
        %1925 = vmatprep.subr.mxu0 0.0
        %1926 = vmatpush2.xpose.msra.mxu0 0.0
        %1927 = vmatprep.subr.mxu0 0.0
        %1928 = vmatpush2.xpose.msra.mxu0 0.0
        %1929 = vmatprep.subr.mxu0 0.0
        %1930 = vmatpush2.xpose.msra.mxu0 0.0
        %1931 = vmatprep.subr.mxu0 0.0
        %1932 = vmatpush2.xpose.msra.mxu0 0.0
        %1933 = vmatprep.subr.mxu0 0.0
        %1934 = vmatpush2.xpose.msra.mxu0 0.0
        %1935 = vmatprep.subr.mxu0 0.0
        %1936 = vmatpush2.xpose.msra.mxu0 0.0
        %1937 = vmatprep.subr.mxu0 0.0
        %1938 = vmatpush2.xpose.msra.mxu0 0.0
        %1939 = vmatprep.subr.mxu0 0.0
        %1940 = vmatpush2.xpose.msra.mxu0 0.0
        %1941 = vmatprep.mubr.f32.mxu0 0.0
        %v1942 = vand.u32 %v1569, 4294901760
        %1943 = vmatmul.mubr.f32.gmra.mxu0 %v1942
        %v1944 = vpop.f32.mrf.mxu0
        %v1945 = vadd.f32 %v1871, %v1944
        %v1946 = vpop.f32.mrf.mxu0
        %1947 = vdwg.mxu0
        %1948 = vmatprep.subr.mxu0 0.0
        %1949 = vmatpush1.xpose.msra.mxu0 0.0
        %1950 = vmatprep.subr.mxu0 0.0
        %1951 = vmatpush1.xpose.msra.mxu0 0.0
        %1952 = vmatprep.subr.mxu0 0.0
        %1953 = vmatpush1.xpose.msra.mxu0 0.0
        %1954 = vmatprep.subr.mxu0 0.0
        %1955 = vmatpush1.xpose.msra.mxu0 0.0
        %1956 = vmatprep.subr.mxu0 0.0
        %1957 = vmatpush1.xpose.msra.mxu0 0.0
        %1958 = vmatprep.subr.mxu0 0.0
        %1959 = vmatpush1.xpose.msra.mxu0 0.0
        %1960 = vmatprep.subr.mxu0 0.0
        %1961 = vmatpush1.xpose.msra.mxu0 0.0
        %1962 = vmatprep.subr.mxu0 0.0
        %1963 = vmatpush1.xpose.msra.mxu0 0.0
        %1964 = vmatprep.subr.mxu0 0.0
        %1965 = vmatpush1.xpose.msra.mxu0 0.0
        %1966 = vmatprep.subr.mxu0 0.0
        %1967 = vmatpush1.xpose.msra.mxu0 0.0
        %1968 = vmatprep.subr.mxu0 0.0
        %1969 = vmatpush1.xpose.msra.mxu0 0.0
        %1970 = vmatprep.subr.mxu0 0.0
        %1971 = vmatpush1.xpose.msra.mxu0 0.0
        %1972 = vmatprep.subr.mxu0 0.0
        %1973 = vmatpush1.xpose.msra.mxu0 0.0
        %1974 = vmatprep.subr.mxu0 0.0
        %1975 = vmatpush1.xpose.msra.mxu0 0.0
        %1976 = vmatprep.subr.mxu0 0.0
        %1977 = vmatpush1.xpose.msra.mxu0 0.0
        %1978 = vmatprep.subr.mxu0 0.0
        %v1979 = vand.u32 %v1572, 4294901760
        %1980 = vmatpush1.xpose.msra.mxu0 %v1979
        %1981 = vmatprep.subr.mxu0 0.0
        %1982 = vmatpush2.xpose.msra.mxu0 0.0
        %1983 = vmatprep.subr.mxu0 0.0
        %1984 = vmatpush2.xpose.msra.mxu0 0.0
        %1985 = vmatprep.subr.mxu0 0.0
        %1986 = vmatpush2.xpose.msra.mxu0 0.0
        %1987 = vmatprep.subr.mxu0 0.0
        %1988 = vmatpush2.xpose.msra.mxu0 0.0
        %1989 = vmatprep.subr.mxu0 0.0
        %1990 = vmatpush2.xpose.msra.mxu0 0.0
        %1991 = vmatprep.subr.mxu0 0.0
        %1992 = vmatpush2.xpose.msra.mxu0 0.0
        %1993 = vmatprep.subr.mxu0 0.0
        %1994 = vmatpush2.xpose.msra.mxu0 0.0
        %1995 = vmatprep.subr.mxu0 0.0
        %1996 = vmatpush2.xpose.msra.mxu0 0.0
        %1997 = vmatprep.subr.mxu0 0.0
        %1998 = vmatpush2.xpose.msra.mxu0 0.0
        %1999 = vmatprep.subr.mxu0 0.0
        %2000 = vmatpush2.xpose.msra.mxu0 0.0
        %2001 = vmatprep.subr.mxu0 0.0
        %2002 = vmatpush2.xpose.msra.mxu0 0.0
        %2003 = vmatprep.subr.mxu0 0.0
        %2004 = vmatpush2.xpose.msra.mxu0 0.0
        %2005 = vmatprep.subr.mxu0 0.0
        %2006 = vmatpush2.xpose.msra.mxu0 0.0
        %2007 = vmatprep.subr.mxu0 0.0
        %2008 = vmatpush2.xpose.msra.mxu0 0.0
        %2009 = vmatprep.subr.mxu0 0.0
        %2010 = vmatpush2.xpose.msra.mxu0 0.0
        %2011 = vmatprep.subr.mxu0 0.0
        %2012 = vmatpush2.xpose.msra.mxu0 0.0
        %2013 = vmatprep.mubr.f32.mxu0 0.0
        %v2014 = vand.u32 %v1569, 4294901760
        %2015 = vmatmul.mubr.f32.gmra.mxu0 %v2014
        %v2016 = vpop.f32.mrf.mxu0
        %v2017 = vadd.f32 %v1945, %v2016
        %v2018 = vpop.f32.mrf.mxu0
        %2019 = vdwg.mxu0
        %vm2020 = vcmask 64512
        %v2021 = vsel %vm2020, %v2017, -inf
        %2022 = vmax.xlane.f32.xlu0 %v2021
        %v2023 = vpop.xlane.xlu0 %2022
        %v2024 = vsub.f32 %v2017, %v2023
        %v2025 = vmul.f32 %v2024, 1.442695
        %v2026 = vpow.pop %v2025
        %v2027 = vsel %vm2020, %v2026, 0.0
        %2028 = vadd.xlane.f32.xlu0 %v2027
        %v2029 = vpop.xlane.xlu0 %2028
        %v2030 = vrcp.pop %v2029
        %v2031 = vmul.f32 %v2026, %v2030
        %v2033 = vsel %vm2020, %v2031, 0
        %2035 = vmatprep.subr.mxu0 0.0
        %2036 = vmatpush1.msra.mxu0 0.0
        %2037 = vmatprep.subr.mxu0 0.0
        %2038 = vmatpush1.msra.mxu0 0.0
        %2039 = vmatprep.subr.mxu0 0.0
        %2040 = vmatpush1.msra.mxu0 0.0
        %2041 = vmatprep.subr.mxu0 0.0
        %2042 = vmatpush1.msra.mxu0 0.0
        %2043 = vmatprep.subr.mxu0 0.0
        %2044 = vmatpush1.msra.mxu0 0.0
        %2045 = vmatprep.subr.mxu0 0.0
        %2046 = vmatpush1.msra.mxu0 0.0
        %2047 = vmatprep.subr.mxu0 0.0
        %2048 = vmatpush1.msra.mxu0 0.0
        %2049 = vmatprep.subr.mxu0 0.0
        %2050 = vmatpush1.msra.mxu0 0.0
        %2051 = vmatprep.subr.mxu0 0.0
        %2052 = vmatpush1.msra.mxu0 0.0
        %2053 = vmatprep.subr.mxu0 0.0
        %2054 = vmatpush1.msra.mxu0 0.0
        %2055 = vmatprep.subr.mxu0 0.0
        %2056 = vmatpush1.msra.mxu0 0.0
        %2057 = vmatprep.subr.mxu0 0.0
        %2058 = vmatpush1.msra.mxu0 0.0
        %2059 = vmatprep.subr.mxu0 0.0
        %2060 = vmatpush1.msra.mxu0 0.0
        %2061 = vmatprep.subr.mxu0 0.0
        %2062 = vmatpush1.msra.mxu0 0.0
        %2063 = vmatprep.subr.mxu0 0.0
        %2064 = vmatpush1.msra.mxu0 0.0
        %2065 = vmatprep.subr.mxu0 0.0
        %v2066 = vand.u32 %v1538, 4294901760
        %2067 = vmatpush1.msra.mxu0 %v2066
        %2068 = vmatprep.subr.mxu0 0.0
        %2069 = vmatpush2.msra.mxu0 0.0
        %2070 = vmatprep.subr.mxu0 0.0
        %2071 = vmatpush2.msra.mxu0 0.0
        %2072 = vmatprep.subr.mxu0 0.0
        %2073 = vmatpush2.msra.mxu0 0.0
        %2074 = vmatprep.subr.mxu0 0.0
        %2075 = vmatpush2.msra.mxu0 0.0
        %2076 = vmatprep.subr.mxu0 0.0
        %2077 = vmatpush2.msra.mxu0 0.0
        %2078 = vmatprep.subr.mxu0 0.0
        %2079 = vmatpush2.msra.mxu0 0.0
        %2080 = vmatprep.subr.mxu0 0.0
        %2081 = vmatpush2.msra.mxu0 0.0
        %2082 = vmatprep.subr.mxu0 0.0
        %2083 = vmatpush2.msra.mxu0 0.0
        %2084 = vmatprep.subr.mxu0 0.0
        %2085 = vmatpush2.msra.mxu0 0.0
        %2086 = vmatprep.subr.mxu0 0.0
        %2087 = vmatpush2.msra.mxu0 0.0
        %2088 = vmatprep.subr.mxu0 0.0
        %2089 = vmatpush2.msra.mxu0 0.0
        %2090 = vmatprep.subr.mxu0 0.0
        %2091 = vmatpush2.msra.mxu0 0.0
        %2092 = vmatprep.subr.mxu0 0.0
        %2093 = vmatpush2.msra.mxu0 0.0
        %2094 = vmatprep.subr.mxu0 0.0
        %2095 = vmatpush2.msra.mxu0 0.0
        %2096 = vmatprep.subr.mxu0 0.0
        %2097 = vmatpush2.msra.mxu0 0.0
        %2098 = vmatprep.subr.mxu0 0.0
        %2099 = vmatpush2.msra.mxu0 0.0
        %2100 = vmatprep.mubr.f32.mxu0 0.0
        %v2101 = vand.u32 %v2033, 4294901760
        %v2102 = vsub.f32 %v2033, %v2101
        %v2103 = vand.u32 %v2102, 4294901760
        %v2104 = vsub.f32 %v2102, %v2103
        %v2105 = vand.u32 %v2104, 4294901760
        %2106 = vmatmul.mubr.f32.gmra.mxu0 %v2105
        %v2107 = vpop.f32.mrf.mxu0
        %v2108 = vadd.f32 0.0, %v2107
        %v2109 = vpop.f32.mrf.mxu0
        %2110 = vdwg.mxu0
        %2111 = vmatprep.subr.mxu0 0.0
        %2112 = vmatpush1.msra.mxu0 0.0
        %2113 = vmatprep.subr.mxu0 0.0
        %2114 = vmatpush1.msra.mxu0 0.0
        %2115 = vmatprep.subr.mxu0 0.0
        %2116 = vmatpush1.msra.mxu0 0.0
        %2117 = vmatprep.subr.mxu0 0.0
        %2118 = vmatpush1.msra.mxu0 0.0
        %2119 = vmatprep.subr.mxu0 0.0
        %2120 = vmatpush1.msra.mxu0 0.0
        %2121 = vmatprep.subr.mxu0 0.0
        %2122 = vmatpush1.msra.mxu0 0.0
        %2123 = vmatprep.subr.mxu0 0.0
        %2124 = vmatpush1.msra.mxu0 0.0
        %2125 = vmatprep.subr.mxu0 0.0
        %2126 = vmatpush1.msra.mxu0 0.0
        %2127 = vmatprep.subr.mxu0 0.0
        %2128 = vmatpush1.msra.mxu0 0.0
        %2129 = vmatprep.subr.mxu0 0.0
        %2130 = vmatpush1.msra.mxu0 0.0
        %2131 = vmatprep.subr.mxu0 0.0
        %2132 = vmatpush1.msra.mxu0 0.0
        %2133 = vmatprep.subr.mxu0 0.0
        %2134 = vmatpush1.msra.mxu0 0.0
        %2135 = vmatprep.subr.mxu0 0.0
        %2136 = vmatpush1.msra.mxu0 0.0
        %2137 = vmatprep.subr.mxu0 0.0
        %2138 = vmatpush1.msra.mxu0 0.0
        %2139 = vmatprep.subr.mxu0 0.0
        %2140 = vmatpush1.msra.mxu0 0.0
        %2141 = vmatprep.subr.mxu0 0.0
        %v2142 = vand.u32 %v1538, 4294901760
        %v2143 = vsub.f32 %v1538, %v2142
        %v2144 = vand.u32 %v2143, 4294901760
        %v2145 = vsub.f32 %v2143, %v2144
        %v2146 = vand.u32 %v2145, 4294901760
        %2147 = vmatpush1.msra.mxu0 %v2146
        %2148 = vmatprep.subr.mxu0 0.0
        %2149 = vmatpush2.msra.mxu0 0.0
        %2150 = vmatprep.subr.mxu0 0.0
        %2151 = vmatpush2.msra.mxu0 0.0
        %2152 = vmatprep.subr.mxu0 0.0
        %2153 = vmatpush2.msra.mxu0 0.0
        %2154 = vmatprep.subr.mxu0 0.0
        %2155 = vmatpush2.msra.mxu0 0.0
        %2156 = vmatprep.subr.mxu0 0.0
        %2157 = vmatpush2.msra.mxu0 0.0
        %2158 = vmatprep.subr.mxu0 0.0
        %2159 = vmatpush2.msra.mxu0 0.0
        %2160 = vmatprep.subr.mxu0 0.0
        %2161 = vmatpush2.msra.mxu0 0.0
        %2162 = vmatprep.subr.mxu0 0.0
        %2163 = vmatpush2.msra.mxu0 0.0
        %2164 = vmatprep.subr.mxu0 0.0
        %2165 = vmatpush2.msra.mxu0 0.0
        %2166 = vmatprep.subr.mxu0 0.0
        %2167 = vmatpush2.msra.mxu0 0.0
        %2168 = vmatprep.subr.mxu0 0.0
        %2169 = vmatpush2.msra.mxu0 0.0
        %2170 = vmatprep.subr.mxu0 0.0
        %2171 = vmatpush2.msra.mxu0 0.0
        %2172 = vmatprep.subr.mxu0 0.0
        %2173 = vmatpush2.msra.mxu0 0.0
        %2174 = vmatprep.subr.mxu0 0.0
        %2175 = vmatpush2.msra.mxu0 0.0
        %2176 = vmatprep.subr.mxu0 0.0
        %2177 = vmatpush2.msra.mxu0 0.0
        %2178 = vmatprep.subr.mxu0 0.0
        %2179 = vmatpush2.msra.mxu0 0.0
        %2180 = vmatprep.mubr.f32.mxu0 0.0
        %v2181 = vand.u32 %v2033, 4294901760
        %2182 = vmatmul.mubr.f32.gmra.mxu0 %v2181
        %v2183 = vpop.f32.mrf.mxu0
        %v2184 = vadd.f32 %v2108, %v2183
        %v2185 = vpop.f32.mrf.mxu0
        %2186 = vdwg.mxu0
        %2187 = vmatprep.subr.mxu0 0.0
        %2188 = vmatpush1.msra.mxu0 0.0
        %2189 = vmatprep.subr.mxu0 0.0
        %2190 = vmatpush1.msra.mxu0 0.0
        %2191 = vmatprep.subr.mxu0 0.0
        %2192 = vmatpush1.msra.mxu0 0.0
        %2193 = vmatprep.subr.mxu0 0.0
        %2194 = vmatpush1.msra.mxu0 0.0
        %2195 = vmatprep.subr.mxu0 0.0
        %2196 = vmatpush1.msra.mxu0 0.0
        %2197 = vmatprep.subr.mxu0 0.0
        %2198 = vmatpush1.msra.mxu0 0.0
        %2199 = vmatprep.subr.mxu0 0.0
        %2200 = vmatpush1.msra.mxu0 0.0
        %2201 = vmatprep.subr.mxu0 0.0
        %2202 = vmatpush1.msra.mxu0 0.0
        %2203 = vmatprep.subr.mxu0 0.0
        %2204 = vmatpush1.msra.mxu0 0.0
        %2205 = vmatprep.subr.mxu0 0.0
        %2206 = vmatpush1.msra.mxu0 0.0
        %2207 = vmatprep.subr.mxu0 0.0
        %2208 = vmatpush1.msra.mxu0 0.0
        %2209 = vmatprep.subr.mxu0 0.0
        %2210 = vmatpush1.msra.mxu0 0.0
        %2211 = vmatprep.subr.mxu0 0.0
        %2212 = vmatpush1.msra.mxu0 0.0
        %2213 = vmatprep.subr.mxu0 0.0
        %2214 = vmatpush1.msra.mxu0 0.0
        %2215 = vmatprep.subr.mxu0 0.0
        %2216 = vmatpush1.msra.mxu0 0.0
        %2217 = vmatprep.subr.mxu0 0.0
        %v2218 = vand.u32 %v1538, 4294901760
        %v2219 = vsub.f32 %v1538, %v2218
        %2220 = vmatpush1.msra.mxu0 %v2219
        %2221 = vmatprep.subr.mxu0 0.0
        %2222 = vmatpush2.msra.mxu0 0.0
        %2223 = vmatprep.subr.mxu0 0.0
        %2224 = vmatpush2.msra.mxu0 0.0
        %2225 = vmatprep.subr.mxu0 0.0
        %2226 = vmatpush2.msra.mxu0 0.0
        %2227 = vmatprep.subr.mxu0 0.0
        %2228 = vmatpush2.msra.mxu0 0.0
        %2229 = vmatprep.subr.mxu0 0.0
        %2230 = vmatpush2.msra.mxu0 0.0
        %2231 = vmatprep.subr.mxu0 0.0
        %2232 = vmatpush2.msra.mxu0 0.0
        %2233 = vmatprep.subr.mxu0 0.0
        %2234 = vmatpush2.msra.mxu0 0.0
        %2235 = vmatprep.subr.mxu0 0.0
        %2236 = vmatpush2.msra.mxu0 0.0
        %2237 = vmatprep.subr.mxu0 0.0
        %2238 = vmatpush2.msra.mxu0 0.0
        %2239 = vmatprep.subr.mxu0 0.0
        %2240 = vmatpush2.msra.mxu0 0.0
        %2241 = vmatprep.subr.mxu0 0.0
        %2242 = vmatpush2.msra.mxu0 0.0
        %2243 = vmatprep.subr.mxu0 0.0
        %2244 = vmatpush2.msra.mxu0 0.0
        %2245 = vmatprep.subr.mxu0 0.0
        %2246 = vmatpush2.msra.mxu0 0.0
        %2247 = vmatprep.subr.mxu0 0.0
        %2248 = vmatpush2.msra.mxu0 0.0
        %2249 = vmatprep.subr.mxu0 0.0
        %2250 = vmatpush2.msra.mxu0 0.0
        %2251 = vmatprep.subr.mxu0 0.0
        %2252 = vmatpush2.msra.mxu0 0.0
        %2253 = vmatprep.mubr.f32.mxu0 0.0
        %v2254 = vand.u32 %v2033, 4294901760
        %v2255 = vsub.f32 %v2033, %v2254
        %2256 = vmatmul.mubr.f32.gmra.mxu0 %v2255
        %v2257 = vpop.f32.mrf.mxu0
        %v2258 = vadd.f32 %v2184, %v2257
        %v2259 = vpop.f32.mrf.mxu0
        %2260 = vdwg.mxu0
        %2261 = vmatprep.subr.mxu0 0.0
        %2262 = vmatpush1.msra.mxu0 0.0
        %2263 = vmatprep.subr.mxu0 0.0
        %2264 = vmatpush1.msra.mxu0 0.0
        %2265 = vmatprep.subr.mxu0 0.0
        %2266 = vmatpush1.msra.mxu0 0.0
        %2267 = vmatprep.subr.mxu0 0.0
        %2268 = vmatpush1.msra.mxu0 0.0
        %2269 = vmatprep.subr.mxu0 0.0
        %2270 = vmatpush1.msra.mxu0 0.0
        %2271 = vmatprep.subr.mxu0 0.0
        %2272 = vmatpush1.msra.mxu0 0.0
        %2273 = vmatprep.subr.mxu0 0.0
        %2274 = vmatpush1.msra.mxu0 0.0
        %2275 = vmatprep.subr.mxu0 0.0
        %2276 = vmatpush1.msra.mxu0 0.0
        %2277 = vmatprep.subr.mxu0 0.0
        %2278 = vmatpush1.msra.mxu0 0.0
        %2279 = vmatprep.subr.mxu0 0.0
        %2280 = vmatpush1.msra.mxu0 0.0
        %2281 = vmatprep.subr.mxu0 0.0
        %2282 = vmatpush1.msra.mxu0 0.0
        %2283 = vmatprep.subr.mxu0 0.0
        %2284 = vmatpush1.msra.mxu0 0.0
        %2285 = vmatprep.subr.mxu0 0.0
        %2286 = vmatpush1.msra.mxu0 0.0
        %2287 = vmatprep.subr.mxu0 0.0
        %2288 = vmatpush1.msra.mxu0 0.0
        %2289 = vmatprep.subr.mxu0 0.0
        %2290 = vmatpush1.msra.mxu0 0.0
        %2291 = vmatprep.subr.mxu0 0.0
        %v2292 = vand.u32 %v1538, 4294901760
        %2293 = vmatpush1.msra.mxu0 %v2292
        %2294 = vmatprep.subr.mxu0 0.0
        %2295 = vmatpush2.msra.mxu0 0.0
        %2296 = vmatprep.subr.mxu0 0.0
        %2297 = vmatpush2.msra.mxu0 0.0
        %2298 = vmatprep.subr.mxu0 0.0
        %2299 = vmatpush2.msra.mxu0 0.0
        %2300 = vmatprep.subr.mxu0 0.0
        %2301 = vmatpush2.msra.mxu0 0.0
        %2302 = vmatprep.subr.mxu0 0.0
        %2303 = vmatpush2.msra.mxu0 0.0
        %2304 = vmatprep.subr.mxu0 0.0
        %2305 = vmatpush2.msra.mxu0 0.0
        %2306 = vmatprep.subr.mxu0 0.0
        %2307 = vmatpush2.msra.mxu0 0.0
        %2308 = vmatprep.subr.mxu0 0.0
        %2309 = vmatpush2.msra.mxu0 0.0
        %2310 = vmatprep.subr.mxu0 0.0
        %2311 = vmatpush2.msra.mxu0 0.0
        %2312 = vmatprep.subr.mxu0 0.0
        %2313 = vmatpush2.msra.mxu0 0.0
        %2314 = vmatprep.subr.mxu0 0.0
        %2315 = vmatpush2.msra.mxu0 0.0
        %2316 = vmatprep.subr.mxu0 0.0
        %2317 = vmatpush2.msra.mxu0 0.0
        %2318 = vmatprep.subr.mxu0 0.0
        %2319 = vmatpush2.msra.mxu0 0.0
        %2320 = vmatprep.subr.mxu0 0.0
        %2321 = vmatpush2.msra.mxu0 0.0
        %2322 = vmatprep.subr.mxu0 0.0
        %2323 = vmatpush2.msra.mxu0 0.0
        %2324 = vmatprep.subr.mxu0 0.0
        %2325 = vmatpush2.msra.mxu0 0.0
        %2326 = vmatprep.mubr.f32.mxu0 0.0
        %v2327 = vand.u32 %v2033, 4294901760
        %v2328 = vsub.f32 %v2033, %v2327
        %v2329 = vand.u32 %v2328, 4294901760
        %2330 = vmatmul.mubr.f32.gmra.mxu0 %v2329
        %v2331 = vpop.f32.mrf.mxu0
        %v2332 = vadd.f32 %v2258, %v2331
        %v2333 = vpop.f32.mrf.mxu0
        %2334 = vdwg.mxu0
        %2335 = vmatprep.subr.mxu0 0.0
        %2336 = vmatpush1.msra.mxu0 0.0
        %2337 = vmatprep.subr.mxu0 0.0
        %2338 = vmatpush1.msra.mxu0 0.0
        %2339 = vmatprep.subr.mxu0 0.0
        %2340 = vmatpush1.msra.mxu0 0.0
        %2341 = vmatprep.subr.mxu0 0.0
        %2342 = vmatpush1.msra.mxu0 0.0
        %2343 = vmatprep.subr.mxu0 0.0
        %2344 = vmatpush1.msra.mxu0 0.0
        %2345 = vmatprep.subr.mxu0 0.0
        %2346 = vmatpush1.msra.mxu0 0.0
        %2347 = vmatprep.subr.mxu0 0.0
        %2348 = vmatpush1.msra.mxu0 0.0
        %2349 = vmatprep.subr.mxu0 0.0
        %2350 = vmatpush1.msra.mxu0 0.0
        %2351 = vmatprep.subr.mxu0 0.0
        %2352 = vmatpush1.msra.mxu0 0.0
        %2353 = vmatprep.subr.mxu0 0.0
        %2354 = vmatpush1.msra.mxu0 0.0
        %2355 = vmatprep.subr.mxu0 0.0
        %2356 = vmatpush1.msra.mxu0 0.0
        %2357 = vmatprep.subr.mxu0 0.0
        %2358 = vmatpush1.msra.mxu0 0.0
        %2359 = vmatprep.subr.mxu0 0.0
        %2360 = vmatpush1.msra.mxu0 0.0
        %2361 = vmatprep.subr.mxu0 0.0
        %2362 = vmatpush1.msra.mxu0 0.0
        %2363 = vmatprep.subr.mxu0 0.0
        %2364 = vmatpush1.msra.mxu0 0.0
        %2365 = vmatprep.subr.mxu0 0.0
        %v2366 = vand.u32 %v1538, 4294901760
        %v2367 = vsub.f32 %v1538, %v2366
        %v2368 = vand.u32 %v2367, 4294901760
        %2369 = vmatpush1.msra.mxu0 %v2368
        %2370 = vmatprep.subr.mxu0 0.0
        %2371 = vmatpush2.msra.mxu0 0.0
        %2372 = vmatprep.subr.mxu0 0.0
        %2373 = vmatpush2.msra.mxu0 0.0
        %2374 = vmatprep.subr.mxu0 0.0
        %2375 = vmatpush2.msra.mxu0 0.0
        %2376 = vmatprep.subr.mxu0 0.0
        %2377 = vmatpush2.msra.mxu0 0.0
        %2378 = vmatprep.subr.mxu0 0.0
        %2379 = vmatpush2.msra.mxu0 0.0
        %2380 = vmatprep.subr.mxu0 0.0
        %2381 = vmatpush2.msra.mxu0 0.0
        %2382 = vmatprep.subr.mxu0 0.0
        %2383 = vmatpush2.msra.mxu0 0.0
        %2384 = vmatprep.subr.mxu0 0.0
        %2385 = vmatpush2.msra.mxu0 0.0
        %2386 = vmatprep.subr.mxu0 0.0
        %2387 = vmatpush2.msra.mxu0 0.0
        %2388 = vmatprep.subr.mxu0 0.0
        %2389 = vmatpush2.msra.mxu0 0.0
        %2390 = vmatprep.subr.mxu0 0.0
        %2391 = vmatpush2.msra.mxu0 0.0
        %2392 = vmatprep.subr.mxu0 0.0
        %2393 = vmatpush2.msra.mxu0 0.0
        %2394 = vmatprep.subr.mxu0 0.0
        %2395 = vmatpush2.msra.mxu0 0.0
        %2396 = vmatprep.subr.mxu0 0.0
        %2397 = vmatpush2.msra.mxu0 0.0
        %2398 = vmatprep.subr.mxu0 0.0
        %2399 = vmatpush2.msra.mxu0 0.0
        %2400 = vmatprep.subr.mxu0 0.0
        %2401 = vmatpush2.msra.mxu0 0.0
        %2402 = vmatprep.mubr.f32.mxu0 0.0
        %v2403 = vand.u32 %v2033, 4294901760
        %2404 = vmatmul.mubr.f32.gmra.mxu0 %v2403
        %v2405 = vpop.f32.mrf.mxu0
        %v2406 = vadd.f32 %v2332, %v2405
        %v2407 = vpop.f32.mrf.mxu0
        %2408 = vdwg.mxu0
        %2409 = vmatprep.subr.mxu0 0.0
        %2410 = vmatpush1.msra.mxu0 0.0
        %2411 = vmatprep.subr.mxu0 0.0
        %2412 = vmatpush1.msra.mxu0 0.0
        %2413 = vmatprep.subr.mxu0 0.0
        %2414 = vmatpush1.msra.mxu0 0.0
        %2415 = vmatprep.subr.mxu0 0.0
        %2416 = vmatpush1.msra.mxu0 0.0
        %2417 = vmatprep.subr.mxu0 0.0
        %2418 = vmatpush1.msra.mxu0 0.0
        %2419 = vmatprep.subr.mxu0 0.0
        %2420 = vmatpush1.msra.mxu0 0.0
        %2421 = vmatprep.subr.mxu0 0.0
        %2422 = vmatpush1.msra.mxu0 0.0
        %2423 = vmatprep.subr.mxu0 0.0
        %2424 = vmatpush1.msra.mxu0 0.0
        %2425 = vmatprep.subr.mxu0 0.0
        %2426 = vmatpush1.msra.mxu0 0.0
        %2427 = vmatprep.subr.mxu0 0.0
        %2428 = vmatpush1.msra.mxu0 0.0
        %2429 = vmatprep.subr.mxu0 0.0
        %2430 = vmatpush1.msra.mxu0 0.0
        %2431 = vmatprep.subr.mxu0 0.0
        %2432 = vmatpush1.msra.mxu0 0.0
        %2433 = vmatprep.subr.mxu0 0.0
        %2434 = vmatpush1.msra.mxu0 0.0
        %2435 = vmatprep.subr.mxu0 0.0
        %2436 = vmatpush1.msra.mxu0 0.0
        %2437 = vmatprep.subr.mxu0 0.0
        %2438 = vmatpush1.msra.mxu0 0.0
        %2439 = vmatprep.subr.mxu0 0.0
        %v2440 = vand.u32 %v1538, 4294901760
        %2441 = vmatpush1.msra.mxu0 %v2440
        %2442 = vmatprep.subr.mxu0 0.0
        %2443 = vmatpush2.msra.mxu0 0.0
        %2444 = vmatprep.subr.mxu0 0.0
        %2445 = vmatpush2.msra.mxu0 0.0
        %2446 = vmatprep.subr.mxu0 0.0
        %2447 = vmatpush2.msra.mxu0 0.0
        %2448 = vmatprep.subr.mxu0 0.0
        %2449 = vmatpush2.msra.mxu0 0.0
        %2450 = vmatprep.subr.mxu0 0.0
        %2451 = vmatpush2.msra.mxu0 0.0
        %2452 = vmatprep.subr.mxu0 0.0
        %2453 = vmatpush2.msra.mxu0 0.0
        %2454 = vmatprep.subr.mxu0 0.0
        %2455 = vmatpush2.msra.mxu0 0.0
        %2456 = vmatprep.subr.mxu0 0.0
        %2457 = vmatpush2.msra.mxu0 0.0
        %2458 = vmatprep.subr.mxu0 0.0
        %2459 = vmatpush2.msra.mxu0 0.0
        %2460 = vmatprep.subr.mxu0 0.0
        %2461 = vmatpush2.msra.mxu0 0.0
        %2462 = vmatprep.subr.mxu0 0.0
        %2463 = vmatpush2.msra.mxu0 0.0
        %2464 = vmatprep.subr.mxu0 0.0
        %2465 = vmatpush2.msra.mxu0 0.0
        %2466 = vmatprep.subr.mxu0 0.0
        %2467 = vmatpush2.msra.mxu0 0.0
        %2468 = vmatprep.subr.mxu0 0.0
        %2469 = vmatpush2.msra.mxu0 0.0
        %2470 = vmatprep.subr.mxu0 0.0
        %2471 = vmatpush2.msra.mxu0 0.0
        %2472 = vmatprep.subr.mxu0 0.0
        %2473 = vmatpush2.msra.mxu0 0.0
        %2474 = vmatprep.mubr.f32.mxu0 0.0
        %v2475 = vand.u32 %v2033, 4294901760
        %2476 = vmatmul.mubr.f32.gmra.mxu0 %v2475
        %v2477 = vpop.f32.mrf.mxu0
        %v2478 = vadd.f32 %v2406, %v2477
        %v2479 = vpop.f32.mrf.mxu0
        %2480 = vdwg.mxu0
        %2481 = vrot.lane.b32.xlu0 %v1555, 112
        %v2482 = vpop.permute.xlu0 %2481
        %2483 = vrot.lane.b32.xlu0 %v1566, 112
        %v2484 = vpop.permute.xlu0 %2483
        %v2485 = vsel %vm1567, %v2482, 0
        %v2487 = vsel %vm1567, %v2484, 0
        %2489 = vmatprep.subr.mxu0 0.0
        %2490 = vmatpush1.xpose.msra.mxu0 0.0
        %2491 = vmatprep.subr.mxu0 0.0
        %2492 = vmatpush1.xpose.msra.mxu0 0.0
        %2493 = vmatprep.subr.mxu0 0.0
        %2494 = vmatpush1.xpose.msra.mxu0 0.0
        %2495 = vmatprep.subr.mxu0 0.0
        %2496 = vmatpush1.xpose.msra.mxu0 0.0
        %2497 = vmatprep.subr.mxu0 0.0
        %2498 = vmatpush1.xpose.msra.mxu0 0.0
        %2499 = vmatprep.subr.mxu0 0.0
        %2500 = vmatpush1.xpose.msra.mxu0 0.0
        %2501 = vmatprep.subr.mxu0 0.0
        %2502 = vmatpush1.xpose.msra.mxu0 0.0
        %2503 = vmatprep.subr.mxu0 0.0
        %2504 = vmatpush1.xpose.msra.mxu0 0.0
        %2505 = vmatprep.subr.mxu0 0.0
        %2506 = vmatpush1.xpose.msra.mxu0 0.0
        %2507 = vmatprep.subr.mxu0 0.0
        %2508 = vmatpush1.xpose.msra.mxu0 0.0
        %2509 = vmatprep.subr.mxu0 0.0
        %2510 = vmatpush1.xpose.msra.mxu0 0.0
        %2511 = vmatprep.subr.mxu0 0.0
        %2512 = vmatpush1.xpose.msra.mxu0 0.0
        %2513 = vmatprep.subr.mxu0 0.0
        %2514 = vmatpush1.xpose.msra.mxu0 0.0
        %2515 = vmatprep.subr.mxu0 0.0
        %2516 = vmatpush1.xpose.msra.mxu0 0.0
        %2517 = vmatprep.subr.mxu0 0.0
        %2518 = vmatpush1.xpose.msra.mxu0 0.0
        %2519 = vmatprep.subr.mxu0 0.0
        %v2520 = vand.u32 %v2487, 4294901760
        %2521 = vmatpush1.xpose.msra.mxu0 %v2520
        %2522 = vmatprep.subr.mxu0 0.0
        %2523 = vmatpush2.xpose.msra.mxu0 0.0
        %2524 = vmatprep.subr.mxu0 0.0
        %2525 = vmatpush2.xpose.msra.mxu0 0.0
        %2526 = vmatprep.subr.mxu0 0.0
        %2527 = vmatpush2.xpose.msra.mxu0 0.0
        %2528 = vmatprep.subr.mxu0 0.0
        %2529 = vmatpush2.xpose.msra.mxu0 0.0
        %2530 = vmatprep.subr.mxu0 0.0
        %2531 = vmatpush2.xpose.msra.mxu0 0.0
        %2532 = vmatprep.subr.mxu0 0.0
        %2533 = vmatpush2.xpose.msra.mxu0 0.0
        %2534 = vmatprep.subr.mxu0 0.0
        %2535 = vmatpush2.xpose.msra.mxu0 0.0
        %2536 = vmatprep.subr.mxu0 0.0
        %2537 = vmatpush2.xpose.msra.mxu0 0.0
        %2538 = vmatprep.subr.mxu0 0.0
        %2539 = vmatpush2.xpose.msra.mxu0 0.0
        %2540 = vmatprep.subr.mxu0 0.0
        %2541 = vmatpush2.xpose.msra.mxu0 0.0
        %2542 = vmatprep.subr.mxu0 0.0
        %2543 = vmatpush2.xpose.msra.mxu0 0.0
        %2544 = vmatprep.subr.mxu0 0.0
        %2545 = vmatpush2.xpose.msra.mxu0 0.0
        %2546 = vmatprep.subr.mxu0 0.0
        %2547 = vmatpush2.xpose.msra.mxu0 0.0
        %2548 = vmatprep.subr.mxu0 0.0
        %2549 = vmatpush2.xpose.msra.mxu0 0.0
        %2550 = vmatprep.subr.mxu0 0.0
        %2551 = vmatpush2.xpose.msra.mxu0 0.0
        %2552 = vmatprep.subr.mxu0 0.0
        %2553 = vmatpush2.xpose.msra.mxu0 0.0
        %2554 = vmatprep.mubr.f32.mxu0 0.0
        %v2555 = vand.u32 %v2485, 4294901760
        %v2556 = vsub.f32 %v2485, %v2555
        %v2557 = vand.u32 %v2556, 4294901760
        %v2558 = vsub.f32 %v2556, %v2557
        %v2559 = vand.u32 %v2558, 4294901760
        %2560 = vmatmul.mubr.f32.gmra.mxu0 %v2559
        %v2561 = vpop.f32.mrf.mxu0
        %v2562 = vadd.f32 0.0, %v2561
        %v2563 = vpop.f32.mrf.mxu0
        %2564 = vdwg.mxu0
        %2565 = vmatprep.subr.mxu0 0.0
        %2566 = vmatpush1.xpose.msra.mxu0 0.0
        %2567 = vmatprep.subr.mxu0 0.0
        %2568 = vmatpush1.xpose.msra.mxu0 0.0
        %2569 = vmatprep.subr.mxu0 0.0
        %2570 = vmatpush1.xpose.msra.mxu0 0.0
        %2571 = vmatprep.subr.mxu0 0.0
        %2572 = vmatpush1.xpose.msra.mxu0 0.0
        %2573 = vmatprep.subr.mxu0 0.0
        %2574 = vmatpush1.xpose.msra.mxu0 0.0
        %2575 = vmatprep.subr.mxu0 0.0
        %2576 = vmatpush1.xpose.msra.mxu0 0.0
        %2577 = vmatprep.subr.mxu0 0.0
        %2578 = vmatpush1.xpose.msra.mxu0 0.0
        %2579 = vmatprep.subr.mxu0 0.0
        %2580 = vmatpush1.xpose.msra.mxu0 0.0
        %2581 = vmatprep.subr.mxu0 0.0
        %2582 = vmatpush1.xpose.msra.mxu0 0.0
        %2583 = vmatprep.subr.mxu0 0.0
        %2584 = vmatpush1.xpose.msra.mxu0 0.0
        %2585 = vmatprep.subr.mxu0 0.0
        %2586 = vmatpush1.xpose.msra.mxu0 0.0
        %2587 = vmatprep.subr.mxu0 0.0
        %2588 = vmatpush1.xpose.msra.mxu0 0.0
        %2589 = vmatprep.subr.mxu0 0.0
        %2590 = vmatpush1.xpose.msra.mxu0 0.0
        %2591 = vmatprep.subr.mxu0 0.0
        %2592 = vmatpush1.xpose.msra.mxu0 0.0
        %2593 = vmatprep.subr.mxu0 0.0
        %2594 = vmatpush1.xpose.msra.mxu0 0.0
        %2595 = vmatprep.subr.mxu0 0.0
        %v2596 = vand.u32 %v2487, 4294901760
        %v2597 = vsub.f32 %v2487, %v2596
        %v2598 = vand.u32 %v2597, 4294901760
        %v2599 = vsub.f32 %v2597, %v2598
        %v2600 = vand.u32 %v2599, 4294901760
        %2601 = vmatpush1.xpose.msra.mxu0 %v2600
        %2602 = vmatprep.subr.mxu0 0.0
        %2603 = vmatpush2.xpose.msra.mxu0 0.0
        %2604 = vmatprep.subr.mxu0 0.0
        %2605 = vmatpush2.xpose.msra.mxu0 0.0
        %2606 = vmatprep.subr.mxu0 0.0
        %2607 = vmatpush2.xpose.msra.mxu0 0.0
        %2608 = vmatprep.subr.mxu0 0.0
        %2609 = vmatpush2.xpose.msra.mxu0 0.0
        %2610 = vmatprep.subr.mxu0 0.0
        %2611 = vmatpush2.xpose.msra.mxu0 0.0
        %2612 = vmatprep.subr.mxu0 0.0
        %2613 = vmatpush2.xpose.msra.mxu0 0.0
        %2614 = vmatprep.subr.mxu0 0.0
        %2615 = vmatpush2.xpose.msra.mxu0 0.0
        %2616 = vmatprep.subr.mxu0 0.0
        %2617 = vmatpush2.xpose.msra.mxu0 0.0
        %2618 = vmatprep.subr.mxu0 0.0
        %2619 = vmatpush2.xpose.msra.mxu0 0.0
        %2620 = vmatprep.subr.mxu0 0.0
        %2621 = vmatpush2.xpose.msra.mxu0 0.0
        %2622 = vmatprep.subr.mxu0 0.0
        %2623 = vmatpush2.xpose.msra.mxu0 0.0
        %2624 = vmatprep.subr.mxu0 0.0
        %2625 = vmatpush2.xpose.msra.mxu0 0.0
        %2626 = vmatprep.subr.mxu0 0.0
        %2627 = vmatpush2.xpose.msra.mxu0 0.0
        %2628 = vmatprep.subr.mxu0 0.0
        %2629 = vmatpush2.xpose.msra.mxu0 0.0
        %2630 = vmatprep.subr.mxu0 0.0
        %2631 = vmatpush2.xpose.msra.mxu0 0.0
        %2632 = vmatprep.subr.mxu0 0.0
        %2633 = vmatpush2.xpose.msra.mxu0 0.0
        %2634 = vmatprep.mubr.f32.mxu0 0.0
        %v2635 = vand.u32 %v2485, 4294901760
        %2636 = vmatmul.mubr.f32.gmra.mxu0 %v2635
        %v2637 = vpop.f32.mrf.mxu0
        %v2638 = vadd.f32 %v2562, %v2637
        %v2639 = vpop.f32.mrf.mxu0
        %2640 = vdwg.mxu0
        %2641 = vmatprep.subr.mxu0 0.0
        %2642 = vmatpush1.xpose.msra.mxu0 0.0
        %2643 = vmatprep.subr.mxu0 0.0
        %2644 = vmatpush1.xpose.msra.mxu0 0.0
        %2645 = vmatprep.subr.mxu0 0.0
        %2646 = vmatpush1.xpose.msra.mxu0 0.0
        %2647 = vmatprep.subr.mxu0 0.0
        %2648 = vmatpush1.xpose.msra.mxu0 0.0
        %2649 = vmatprep.subr.mxu0 0.0
        %2650 = vmatpush1.xpose.msra.mxu0 0.0
        %2651 = vmatprep.subr.mxu0 0.0
        %2652 = vmatpush1.xpose.msra.mxu0 0.0
        %2653 = vmatprep.subr.mxu0 0.0
        %2654 = vmatpush1.xpose.msra.mxu0 0.0
        %2655 = vmatprep.subr.mxu0 0.0
        %2656 = vmatpush1.xpose.msra.mxu0 0.0
        %2657 = vmatprep.subr.mxu0 0.0
        %2658 = vmatpush1.xpose.msra.mxu0 0.0
        %2659 = vmatprep.subr.mxu0 0.0
        %2660 = vmatpush1.xpose.msra.mxu0 0.0
        %2661 = vmatprep.subr.mxu0 0.0
        %2662 = vmatpush1.xpose.msra.mxu0 0.0
        %2663 = vmatprep.subr.mxu0 0.0
        %2664 = vmatpush1.xpose.msra.mxu0 0.0
        %2665 = vmatprep.subr.mxu0 0.0
        %2666 = vmatpush1.xpose.msra.mxu0 0.0
        %2667 = vmatprep.subr.mxu0 0.0
        %2668 = vmatpush1.xpose.msra.mxu0 0.0
        %2669 = vmatprep.subr.mxu0 0.0
        %2670 = vmatpush1.xpose.msra.mxu0 0.0
        %2671 = vmatprep.subr.mxu0 0.0
        %v2672 = vand.u32 %v2487, 4294901760
        %v2673 = vsub.f32 %v2487, %v2672
        %2674 = vmatpush1.xpose.msra.mxu0 %v2673
        %2675 = vmatprep.subr.mxu0 0.0
        %2676 = vmatpush2.xpose.msra.mxu0 0.0
        %2677 = vmatprep.subr.mxu0 0.0
        %2678 = vmatpush2.xpose.msra.mxu0 0.0
        %2679 = vmatprep.subr.mxu0 0.0
        %2680 = vmatpush2.xpose.msra.mxu0 0.0
        %2681 = vmatprep.subr.mxu0 0.0
        %2682 = vmatpush2.xpose.msra.mxu0 0.0
        %2683 = vmatprep.subr.mxu0 0.0
        %2684 = vmatpush2.xpose.msra.mxu0 0.0
        %2685 = vmatprep.subr.mxu0 0.0
        %2686 = vmatpush2.xpose.msra.mxu0 0.0
        %2687 = vmatprep.subr.mxu0 0.0
        %2688 = vmatpush2.xpose.msra.mxu0 0.0
        %2689 = vmatprep.subr.mxu0 0.0
        %2690 = vmatpush2.xpose.msra.mxu0 0.0
        %2691 = vmatprep.subr.mxu0 0.0
        %2692 = vmatpush2.xpose.msra.mxu0 0.0
        %2693 = vmatprep.subr.mxu0 0.0
        %2694 = vmatpush2.xpose.msra.mxu0 0.0
        %2695 = vmatprep.subr.mxu0 0.0
        %2696 = vmatpush2.xpose.msra.mxu0 0.0
        %2697 = vmatprep.subr.mxu0 0.0
        %2698 = vmatpush2.xpose.msra.mxu0 0.0
        %2699 = vmatprep.subr.mxu0 0.0
        %2700 = vmatpush2.xpose.msra.mxu0 0.0
        %2701 = vmatprep.subr.mxu0 0.0
        %2702 = vmatpush2.xpose.msra.mxu0 0.0
        %2703 = vmatprep.subr.mxu0 0.0
        %2704 = vmatpush2.xpose.msra.mxu0 0.0
        %2705 = vmatprep.subr.mxu0 0.0
        %2706 = vmatpush2.xpose.msra.mxu0 0.0
        %2707 = vmatprep.mubr.f32.mxu0 0.0
        %v2708 = vand.u32 %v2485, 4294901760
        %v2709 = vsub.f32 %v2485, %v2708
        %2710 = vmatmul.mubr.f32.gmra.mxu0 %v2709
        %v2711 = vpop.f32.mrf.mxu0
        %v2712 = vadd.f32 %v2638, %v2711
        %v2713 = vpop.f32.mrf.mxu0
        %2714 = vdwg.mxu0
        %2715 = vmatprep.subr.mxu0 0.0
        %2716 = vmatpush1.xpose.msra.mxu0 0.0
        %2717 = vmatprep.subr.mxu0 0.0
        %2718 = vmatpush1.xpose.msra.mxu0 0.0
        %2719 = vmatprep.subr.mxu0 0.0
        %2720 = vmatpush1.xpose.msra.mxu0 0.0
        %2721 = vmatprep.subr.mxu0 0.0
        %2722 = vmatpush1.xpose.msra.mxu0 0.0
        %2723 = vmatprep.subr.mxu0 0.0
        %2724 = vmatpush1.xpose.msra.mxu0 0.0
        %2725 = vmatprep.subr.mxu0 0.0
        %2726 = vmatpush1.xpose.msra.mxu0 0.0
        %2727 = vmatprep.subr.mxu0 0.0
        %2728 = vmatpush1.xpose.msra.mxu0 0.0
        %2729 = vmatprep.subr.mxu0 0.0
        %2730 = vmatpush1.xpose.msra.mxu0 0.0
        %2731 = vmatprep.subr.mxu0 0.0
        %2732 = vmatpush1.xpose.msra.mxu0 0.0
        %2733 = vmatprep.subr.mxu0 0.0
        %2734 = vmatpush1.xpose.msra.mxu0 0.0
        %2735 = vmatprep.subr.mxu0 0.0
        %2736 = vmatpush1.xpose.msra.mxu0 0.0
        %2737 = vmatprep.subr.mxu0 0.0
        %2738 = vmatpush1.xpose.msra.mxu0 0.0
        %2739 = vmatprep.subr.mxu0 0.0
        %2740 = vmatpush1.xpose.msra.mxu0 0.0
        %2741 = vmatprep.subr.mxu0 0.0
        %2742 = vmatpush1.xpose.msra.mxu0 0.0
        %2743 = vmatprep.subr.mxu0 0.0
        %2744 = vmatpush1.xpose.msra.mxu0 0.0
        %2745 = vmatprep.subr.mxu0 0.0
        %v2746 = vand.u32 %v2487, 4294901760
        %2747 = vmatpush1.xpose.msra.mxu0 %v2746
        %2748 = vmatprep.subr.mxu0 0.0
        %2749 = vmatpush2.xpose.msra.mxu0 0.0
        %2750 = vmatprep.subr.mxu0 0.0
        %2751 = vmatpush2.xpose.msra.mxu0 0.0
        %2752 = vmatprep.subr.mxu0 0.0
        %2753 = vmatpush2.xpose.msra.mxu0 0.0
        %2754 = vmatprep.subr.mxu0 0.0
        %2755 = vmatpush2.xpose.msra.mxu0 0.0
        %2756 = vmatprep.subr.mxu0 0.0
        %2757 = vmatpush2.xpose.msra.mxu0 0.0
        %2758 = vmatprep.subr.mxu0 0.0
        %2759 = vmatpush2.xpose.msra.mxu0 0.0
        %2760 = vmatprep.subr.mxu0 0.0
        %2761 = vmatpush2.xpose.msra.mxu0 0.0
        %2762 = vmatprep.subr.mxu0 0.0
        %2763 = vmatpush2.xpose.msra.mxu0 0.0
        %2764 = vmatprep.subr.mxu0 0.0
        %2765 = vmatpush2.xpose.msra.mxu0 0.0
        %2766 = vmatprep.subr.mxu0 0.0
        %2767 = vmatpush2.xpose.msra.mxu0 0.0
        %2768 = vmatprep.subr.mxu0 0.0
        %2769 = vmatpush2.xpose.msra.mxu0 0.0
        %2770 = vmatprep.subr.mxu0 0.0
        %2771 = vmatpush2.xpose.msra.mxu0 0.0
        %2772 = vmatprep.subr.mxu0 0.0
        %2773 = vmatpush2.xpose.msra.mxu0 0.0
        %2774 = vmatprep.subr.mxu0 0.0
        %2775 = vmatpush2.xpose.msra.mxu0 0.0
        %2776 = vmatprep.subr.mxu0 0.0
        %2777 = vmatpush2.xpose.msra.mxu0 0.0
        %2778 = vmatprep.subr.mxu0 0.0
        %2779 = vmatpush2.xpose.msra.mxu0 0.0
        %2780 = vmatprep.mubr.f32.mxu0 0.0
        %v2781 = vand.u32 %v2485, 4294901760
        %v2782 = vsub.f32 %v2485, %v2781
        %v2783 = vand.u32 %v2782, 4294901760
        %2784 = vmatmul.mubr.f32.gmra.mxu0 %v2783
        %v2785 = vpop.f32.mrf.mxu0
        %v2786 = vadd.f32 %v2712, %v2785
        %v2787 = vpop.f32.mrf.mxu0
        %2788 = vdwg.mxu0
        %2789 = vmatprep.subr.mxu0 0.0
        %2790 = vmatpush1.xpose.msra.mxu0 0.0
        %2791 = vmatprep.subr.mxu0 0.0
        %2792 = vmatpush1.xpose.msra.mxu0 0.0
        %2793 = vmatprep.subr.mxu0 0.0
        %2794 = vmatpush1.xpose.msra.mxu0 0.0
        %2795 = vmatprep.subr.mxu0 0.0
        %2796 = vmatpush1.xpose.msra.mxu0 0.0
        %2797 = vmatprep.subr.mxu0 0.0
        %2798 = vmatpush1.xpose.msra.mxu0 0.0
        %2799 = vmatprep.subr.mxu0 0.0
        %2800 = vmatpush1.xpose.msra.mxu0 0.0
        %2801 = vmatprep.subr.mxu0 0.0
        %2802 = vmatpush1.xpose.msra.mxu0 0.0
        %2803 = vmatprep.subr.mxu0 0.0
        %2804 = vmatpush1.xpose.msra.mxu0 0.0
        %2805 = vmatprep.subr.mxu0 0.0
        %2806 = vmatpush1.xpose.msra.mxu0 0.0
        %2807 = vmatprep.subr.mxu0 0.0
        %2808 = vmatpush1.xpose.msra.mxu0 0.0
        %2809 = vmatprep.subr.mxu0 0.0
        %2810 = vmatpush1.xpose.msra.mxu0 0.0
        %2811 = vmatprep.subr.mxu0 0.0
        %2812 = vmatpush1.xpose.msra.mxu0 0.0
        %2813 = vmatprep.subr.mxu0 0.0
        %2814 = vmatpush1.xpose.msra.mxu0 0.0
        %2815 = vmatprep.subr.mxu0 0.0
        %2816 = vmatpush1.xpose.msra.mxu0 0.0
        %2817 = vmatprep.subr.mxu0 0.0
        %2818 = vmatpush1.xpose.msra.mxu0 0.0
        %2819 = vmatprep.subr.mxu0 0.0
        %v2820 = vand.u32 %v2487, 4294901760
        %v2821 = vsub.f32 %v2487, %v2820
        %v2822 = vand.u32 %v2821, 4294901760
        %2823 = vmatpush1.xpose.msra.mxu0 %v2822
        %2824 = vmatprep.subr.mxu0 0.0
        %2825 = vmatpush2.xpose.msra.mxu0 0.0
        %2826 = vmatprep.subr.mxu0 0.0
        %2827 = vmatpush2.xpose.msra.mxu0 0.0
        %2828 = vmatprep.subr.mxu0 0.0
        %2829 = vmatpush2.xpose.msra.mxu0 0.0
        %2830 = vmatprep.subr.mxu0 0.0
        %2831 = vmatpush2.xpose.msra.mxu0 0.0
        %2832 = vmatprep.subr.mxu0 0.0
        %2833 = vmatpush2.xpose.msra.mxu0 0.0
        %2834 = vmatprep.subr.mxu0 0.0
        %2835 = vmatpush2.xpose.msra.mxu0 0.0
        %2836 = vmatprep.subr.mxu0 0.0
        %2837 = vmatpush2.xpose.msra.mxu0 0.0
        %2838 = vmatprep.subr.mxu0 0.0
        %2839 = vmatpush2.xpose.msra.mxu0 0.0
        %2840 = vmatprep.subr.mxu0 0.0
        %2841 = vmatpush2.xpose.msra.mxu0 0.0
        %2842 = vmatprep.subr.mxu0 0.0
        %2843 = vmatpush2.xpose.msra.mxu0 0.0
        %2844 = vmatprep.subr.mxu0 0.0
        %2845 = vmatpush2.xpose.msra.mxu0 0.0
        %2846 = vmatprep.subr.mxu0 0.0
        %2847 = vmatpush2.xpose.msra.mxu0 0.0
        %2848 = vmatprep.subr.mxu0 0.0
        %2849 = vmatpush2.xpose.msra.mxu0 0.0
        %2850 = vmatprep.subr.mxu0 0.0
        %2851 = vmatpush2.xpose.msra.mxu0 0.0
        %2852 = vmatprep.subr.mxu0 0.0
        %2853 = vmatpush2.xpose.msra.mxu0 0.0
        %2854 = vmatprep.subr.mxu0 0.0
        %2855 = vmatpush2.xpose.msra.mxu0 0.0
        %2856 = vmatprep.mubr.f32.mxu0 0.0
        %v2857 = vand.u32 %v2485, 4294901760
        %2858 = vmatmul.mubr.f32.gmra.mxu0 %v2857
        %v2859 = vpop.f32.mrf.mxu0
        %v2860 = vadd.f32 %v2786, %v2859
        %v2861 = vpop.f32.mrf.mxu0
        %2862 = vdwg.mxu0
        %2863 = vmatprep.subr.mxu0 0.0
        %2864 = vmatpush1.xpose.msra.mxu0 0.0
        %2865 = vmatprep.subr.mxu0 0.0
        %2866 = vmatpush1.xpose.msra.mxu0 0.0
        %2867 = vmatprep.subr.mxu0 0.0
        %2868 = vmatpush1.xpose.msra.mxu0 0.0
        %2869 = vmatprep.subr.mxu0 0.0
        %2870 = vmatpush1.xpose.msra.mxu0 0.0
        %2871 = vmatprep.subr.mxu0 0.0
        %2872 = vmatpush1.xpose.msra.mxu0 0.0
        %2873 = vmatprep.subr.mxu0 0.0
        %2874 = vmatpush1.xpose.msra.mxu0 0.0
        %2875 = vmatprep.subr.mxu0 0.0
        %2876 = vmatpush1.xpose.msra.mxu0 0.0
        %2877 = vmatprep.subr.mxu0 0.0
        %2878 = vmatpush1.xpose.msra.mxu0 0.0
        %2879 = vmatprep.subr.mxu0 0.0
        %2880 = vmatpush1.xpose.msra.mxu0 0.0
        %2881 = vmatprep.subr.mxu0 0.0
        %2882 = vmatpush1.xpose.msra.mxu0 0.0
        %2883 = vmatprep.subr.mxu0 0.0
        %2884 = vmatpush1.xpose.msra.mxu0 0.0
        %2885 = vmatprep.subr.mxu0 0.0
        %2886 = vmatpush1.xpose.msra.mxu0 0.0
        %2887 = vmatprep.subr.mxu0 0.0
        %2888 = vmatpush1.xpose.msra.mxu0 0.0
        %2889 = vmatprep.subr.mxu0 0.0
        %2890 = vmatpush1.xpose.msra.mxu0 0.0
        %2891 = vmatprep.subr.mxu0 0.0
        %2892 = vmatpush1.xpose.msra.mxu0 0.0
        %2893 = vmatprep.subr.mxu0 0.0
        %v2894 = vand.u32 %v2487, 4294901760
        %2895 = vmatpush1.xpose.msra.mxu0 %v2894
        %2896 = vmatprep.subr.mxu0 0.0
        %2897 = vmatpush2.xpose.msra.mxu0 0.0
        %2898 = vmatprep.subr.mxu0 0.0
        %2899 = vmatpush2.xpose.msra.mxu0 0.0
        %2900 = vmatprep.subr.mxu0 0.0
        %2901 = vmatpush2.xpose.msra.mxu0 0.0
        %2902 = vmatprep.subr.mxu0 0.0
        %2903 = vmatpush2.xpose.msra.mxu0 0.0
        %2904 = vmatprep.subr.mxu0 0.0
        %2905 = vmatpush2.xpose.msra.mxu0 0.0
        %2906 = vmatprep.subr.mxu0 0.0
        %2907 = vmatpush2.xpose.msra.mxu0 0.0
        %2908 = vmatprep.subr.mxu0 0.0
        %2909 = vmatpush2.xpose.msra.mxu0 0.0
        %2910 = vmatprep.subr.mxu0 0.0
        %2911 = vmatpush2.xpose.msra.mxu0 0.0
        %2912 = vmatprep.subr.mxu0 0.0
        %2913 = vmatpush2.xpose.msra.mxu0 0.0
        %2914 = vmatprep.subr.mxu0 0.0
        %2915 = vmatpush2.xpose.msra.mxu0 0.0
        %2916 = vmatprep.subr.mxu0 0.0
        %2917 = vmatpush2.xpose.msra.mxu0 0.0
        %2918 = vmatprep.subr.mxu0 0.0
        %2919 = vmatpush2.xpose.msra.mxu0 0.0
        %2920 = vmatprep.subr.mxu0 0.0
        %2921 = vmatpush2.xpose.msra.mxu0 0.0
        %2922 = vmatprep.subr.mxu0 0.0
        %2923 = vmatpush2.xpose.msra.mxu0 0.0
        %2924 = vmatprep.subr.mxu0 0.0
        %2925 = vmatpush2.xpose.msra.mxu0 0.0
        %2926 = vmatprep.subr.mxu0 0.0
        %2927 = vmatpush2.xpose.msra.mxu0 0.0
        %2928 = vmatprep.mubr.f32.mxu0 0.0
        %v2929 = vand.u32 %v2485, 4294901760
        %2930 = vmatmul.mubr.f32.gmra.mxu0 %v2929
        %v2931 = vpop.f32.mrf.mxu0
        %v2932 = vadd.f32 %v2860, %v2931
        %v2933 = vpop.f32.mrf.mxu0
        %2934 = vdwg.mxu0
        %v2935 = vsel %vm2020, %v2932, -inf
        %2936 = vmax.xlane.f32.xlu0 %v2935
        %v2937 = vpop.xlane.xlu0 %2936
        %v2938 = vsub.f32 %v2932, %v2937
        %v2939 = vmul.f32 %v2938, 1.442695
        %v2940 = vpow.pop %v2939
        %v2941 = vsel %vm2020, %v2940, 0.0
        %2942 = vadd.xlane.f32.xlu0 %v2941
        %v2943 = vpop.xlane.xlu0 %2942
        %v2944 = vrcp.pop %v2943
        %v2945 = vmul.f32 %v2940, %v2944
        %2947 = vrot.lane.b32.xlu0 %v1538, 112
        %v2948 = vpop.permute.xlu0 %2947
        %v2951 = vsel %vm2020, %v2945, 0
        %2953 = vmatprep.subr.mxu0 0.0
        %2954 = vmatpush1.msra.mxu0 0.0
        %2955 = vmatprep.subr.mxu0 0.0
        %2956 = vmatpush1.msra.mxu0 0.0
        %2957 = vmatprep.subr.mxu0 0.0
        %2958 = vmatpush1.msra.mxu0 0.0
        %2959 = vmatprep.subr.mxu0 0.0
        %2960 = vmatpush1.msra.mxu0 0.0
        %2961 = vmatprep.subr.mxu0 0.0
        %2962 = vmatpush1.msra.mxu0 0.0
        %2963 = vmatprep.subr.mxu0 0.0
        %2964 = vmatpush1.msra.mxu0 0.0
        %2965 = vmatprep.subr.mxu0 0.0
        %2966 = vmatpush1.msra.mxu0 0.0
        %2967 = vmatprep.subr.mxu0 0.0
        %2968 = vmatpush1.msra.mxu0 0.0
        %2969 = vmatprep.subr.mxu0 0.0
        %2970 = vmatpush1.msra.mxu0 0.0
        %2971 = vmatprep.subr.mxu0 0.0
        %2972 = vmatpush1.msra.mxu0 0.0
        %2973 = vmatprep.subr.mxu0 0.0
        %2974 = vmatpush1.msra.mxu0 0.0
        %2975 = vmatprep.subr.mxu0 0.0
        %2976 = vmatpush1.msra.mxu0 0.0
        %2977 = vmatprep.subr.mxu0 0.0
        %2978 = vmatpush1.msra.mxu0 0.0
        %2979 = vmatprep.subr.mxu0 0.0
        %2980 = vmatpush1.msra.mxu0 0.0
        %2981 = vmatprep.subr.mxu0 0.0
        %2982 = vmatpush1.msra.mxu0 0.0
        %2983 = vmatprep.subr.mxu0 0.0
        %v2984 = vand.u32 %v2948, 4294901760
        %2985 = vmatpush1.msra.mxu0 %v2984
        %2986 = vmatprep.subr.mxu0 0.0
        %2987 = vmatpush2.msra.mxu0 0.0
        %2988 = vmatprep.subr.mxu0 0.0
        %2989 = vmatpush2.msra.mxu0 0.0
        %2990 = vmatprep.subr.mxu0 0.0
        %2991 = vmatpush2.msra.mxu0 0.0
        %2992 = vmatprep.subr.mxu0 0.0
        %2993 = vmatpush2.msra.mxu0 0.0
        %2994 = vmatprep.subr.mxu0 0.0
        %2995 = vmatpush2.msra.mxu0 0.0
        %2996 = vmatprep.subr.mxu0 0.0
        %2997 = vmatpush2.msra.mxu0 0.0
        %2998 = vmatprep.subr.mxu0 0.0
        %2999 = vmatpush2.msra.mxu0 0.0
        %3000 = vmatprep.subr.mxu0 0.0
        %3001 = vmatpush2.msra.mxu0 0.0
        %3002 = vmatprep.subr.mxu0 0.0
        %3003 = vmatpush2.msra.mxu0 0.0
        %3004 = vmatprep.subr.mxu0 0.0
        %3005 = vmatpush2.msra.mxu0 0.0
        %3006 = vmatprep.subr.mxu0 0.0
        %3007 = vmatpush2.msra.mxu0 0.0
        %3008 = vmatprep.subr.mxu0 0.0
        %3009 = vmatpush2.msra.mxu0 0.0
        %3010 = vmatprep.subr.mxu0 0.0
        %3011 = vmatpush2.msra.mxu0 0.0
        %3012 = vmatprep.subr.mxu0 0.0
        %3013 = vmatpush2.msra.mxu0 0.0
        %3014 = vmatprep.subr.mxu0 0.0
        %3015 = vmatpush2.msra.mxu0 0.0
        %3016 = vmatprep.subr.mxu0 0.0
        %3017 = vmatpush2.msra.mxu0 0.0
        %3018 = vmatprep.mubr.f32.mxu0 0.0
        %v3019 = vand.u32 %v2951, 4294901760
        %v3020 = vsub.f32 %v2951, %v3019
        %v3021 = vand.u32 %v3020, 4294901760
        %v3022 = vsub.f32 %v3020, %v3021
        %v3023 = vand.u32 %v3022, 4294901760
        %3024 = vmatmul.mubr.f32.gmra.mxu0 %v3023
        %v3025 = vpop.f32.mrf.mxu0
        %v3026 = vadd.f32 0.0, %v3025
        %v3027 = vpop.f32.mrf.mxu0
        %3028 = vdwg.mxu0
        %3029 = vmatprep.subr.mxu0 0.0
        %3030 = vmatpush1.msra.mxu0 0.0
        %3031 = vmatprep.subr.mxu0 0.0
        %3032 = vmatpush1.msra.mxu0 0.0
        %3033 = vmatprep.subr.mxu0 0.0
        %3034 = vmatpush1.msra.mxu0 0.0
        %3035 = vmatprep.subr.mxu0 0.0
        %3036 = vmatpush1.msra.mxu0 0.0
        %3037 = vmatprep.subr.mxu0 0.0
        %3038 = vmatpush1.msra.mxu0 0.0
        %3039 = vmatprep.subr.mxu0 0.0
        %3040 = vmatpush1.msra.mxu0 0.0
        %3041 = vmatprep.subr.mxu0 0.0
        %3042 = vmatpush1.msra.mxu0 0.0
        %3043 = vmatprep.subr.mxu0 0.0
        %3044 = vmatpush1.msra.mxu0 0.0
        %3045 = vmatprep.subr.mxu0 0.0
        %3046 = vmatpush1.msra.mxu0 0.0
        %3047 = vmatprep.subr.mxu0 0.0
        %3048 = vmatpush1.msra.mxu0 0.0
        %3049 = vmatprep.subr.mxu0 0.0
        %3050 = vmatpush1.msra.mxu0 0.0
        %3051 = vmatprep.subr.mxu0 0.0
        %3052 = vmatpush1.msra.mxu0 0.0
        %3053 = vmatprep.subr.mxu0 0.0
        %3054 = vmatpush1.msra.mxu0 0.0
        %3055 = vmatprep.subr.mxu0 0.0
        %3056 = vmatpush1.msra.mxu0 0.0
        %3057 = vmatprep.subr.mxu0 0.0
        %3058 = vmatpush1.msra.mxu0 0.0
        %3059 = vmatprep.subr.mxu0 0.0
        %v3060 = vand.u32 %v2948, 4294901760
        %v3061 = vsub.f32 %v2948, %v3060
        %v3062 = vand.u32 %v3061, 4294901760
        %v3063 = vsub.f32 %v3061, %v3062
        %v3064 = vand.u32 %v3063, 4294901760
        %3065 = vmatpush1.msra.mxu0 %v3064
        %3066 = vmatprep.subr.mxu0 0.0
        %3067 = vmatpush2.msra.mxu0 0.0
        %3068 = vmatprep.subr.mxu0 0.0
        %3069 = vmatpush2.msra.mxu0 0.0
        %3070 = vmatprep.subr.mxu0 0.0
        %3071 = vmatpush2.msra.mxu0 0.0
        %3072 = vmatprep.subr.mxu0 0.0
        %3073 = vmatpush2.msra.mxu0 0.0
        %3074 = vmatprep.subr.mxu0 0.0
        %3075 = vmatpush2.msra.mxu0 0.0
        %3076 = vmatprep.subr.mxu0 0.0
        %3077 = vmatpush2.msra.mxu0 0.0
        %3078 = vmatprep.subr.mxu0 0.0
        %3079 = vmatpush2.msra.mxu0 0.0
        %3080 = vmatprep.subr.mxu0 0.0
        %3081 = vmatpush2.msra.mxu0 0.0
        %3082 = vmatprep.subr.mxu0 0.0
        %3083 = vmatpush2.msra.mxu0 0.0
        %3084 = vmatprep.subr.mxu0 0.0
        %3085 = vmatpush2.msra.mxu0 0.0
        %3086 = vmatprep.subr.mxu0 0.0
        %3087 = vmatpush2.msra.mxu0 0.0
        %3088 = vmatprep.subr.mxu0 0.0
        %3089 = vmatpush2.msra.mxu0 0.0
        %3090 = vmatprep.subr.mxu0 0.0
        %3091 = vmatpush2.msra.mxu0 0.0
        %3092 = vmatprep.subr.mxu0 0.0
        %3093 = vmatpush2.msra.mxu0 0.0
        %3094 = vmatprep.subr.mxu0 0.0
        %3095 = vmatpush2.msra.mxu0 0.0
        %3096 = vmatprep.subr.mxu0 0.0
        %3097 = vmatpush2.msra.mxu0 0.0
        %3098 = vmatprep.mubr.f32.mxu0 0.0
        %v3099 = vand.u32 %v2951, 4294901760
        %3100 = vmatmul.mubr.f32.gmra.mxu0 %v3099
        %v3101 = vpop.f32.mrf.mxu0
        %v3102 = vadd.f32 %v3026, %v3101
        %v3103 = vpop.f32.mrf.mxu0
        %3104 = vdwg.mxu0
        %3105 = vmatprep.subr.mxu0 0.0
        %3106 = vmatpush1.msra.mxu0 0.0
        %3107 = vmatprep.subr.mxu0 0.0
        %3108 = vmatpush1.msra.mxu0 0.0
        %3109 = vmatprep.subr.mxu0 0.0
        %3110 = vmatpush1.msra.mxu0 0.0
        %3111 = vmatprep.subr.mxu0 0.0
        %3112 = vmatpush1.msra.mxu0 0.0
        %3113 = vmatprep.subr.mxu0 0.0
        %3114 = vmatpush1.msra.mxu0 0.0
        %3115 = vmatprep.subr.mxu0 0.0
        %3116 = vmatpush1.msra.mxu0 0.0
        %3117 = vmatprep.subr.mxu0 0.0
        %3118 = vmatpush1.msra.mxu0 0.0
        %3119 = vmatprep.subr.mxu0 0.0
        %3120 = vmatpush1.msra.mxu0 0.0
        %3121 = vmatprep.subr.mxu0 0.0
        %3122 = vmatpush1.msra.mxu0 0.0
        %3123 = vmatprep.subr.mxu0 0.0
        %3124 = vmatpush1.msra.mxu0 0.0
        %3125 = vmatprep.subr.mxu0 0.0
        %3126 = vmatpush1.msra.mxu0 0.0
        %3127 = vmatprep.subr.mxu0 0.0
        %3128 = vmatpush1.msra.mxu0 0.0
        %3129 = vmatprep.subr.mxu0 0.0
        %3130 = vmatpush1.msra.mxu0 0.0
        %3131 = vmatprep.subr.mxu0 0.0
        %3132 = vmatpush1.msra.mxu0 0.0
        %3133 = vmatprep.subr.mxu0 0.0
        %3134 = vmatpush1.msra.mxu0 0.0
        %3135 = vmatprep.subr.mxu0 0.0
        %v3136 = vand.u32 %v2948, 4294901760
        %v3137 = vsub.f32 %v2948, %v3136
        %3138 = vmatpush1.msra.mxu0 %v3137
        %3139 = vmatprep.subr.mxu0 0.0
        %3140 = vmatpush2.msra.mxu0 0.0
        %3141 = vmatprep.subr.mxu0 0.0
        %3142 = vmatpush2.msra.mxu0 0.0
        %3143 = vmatprep.subr.mxu0 0.0
        %3144 = vmatpush2.msra.mxu0 0.0
        %3145 = vmatprep.subr.mxu0 0.0
        %3146 = vmatpush2.msra.mxu0 0.0
        %3147 = vmatprep.subr.mxu0 0.0
        %3148 = vmatpush2.msra.mxu0 0.0
        %3149 = vmatprep.subr.mxu0 0.0
        %3150 = vmatpush2.msra.mxu0 0.0
        %3151 = vmatprep.subr.mxu0 0.0
        %3152 = vmatpush2.msra.mxu0 0.0
        %3153 = vmatprep.subr.mxu0 0.0
        %3154 = vmatpush2.msra.mxu0 0.0
        %3155 = vmatprep.subr.mxu0 0.0
        %3156 = vmatpush2.msra.mxu0 0.0
        %3157 = vmatprep.subr.mxu0 0.0
        %3158 = vmatpush2.msra.mxu0 0.0
        %3159 = vmatprep.subr.mxu0 0.0
        %3160 = vmatpush2.msra.mxu0 0.0
        %3161 = vmatprep.subr.mxu0 0.0
        %3162 = vmatpush2.msra.mxu0 0.0
        %3163 = vmatprep.subr.mxu0 0.0
        %3164 = vmatpush2.msra.mxu0 0.0
        %3165 = vmatprep.subr.mxu0 0.0
        %3166 = vmatpush2.msra.mxu0 0.0
        %3167 = vmatprep.subr.mxu0 0.0
        %3168 = vmatpush2.msra.mxu0 0.0
        %3169 = vmatprep.subr.mxu0 0.0
        %3170 = vmatpush2.msra.mxu0 0.0
        %3171 = vmatprep.mubr.f32.mxu0 0.0
        %v3172 = vand.u32 %v2951, 4294901760
        %v3173 = vsub.f32 %v2951, %v3172
        %3174 = vmatmul.mubr.f32.gmra.mxu0 %v3173
        %v3175 = vpop.f32.mrf.mxu0
        %v3176 = vadd.f32 %v3102, %v3175
        %v3177 = vpop.f32.mrf.mxu0
        %3178 = vdwg.mxu0
        %3179 = vmatprep.subr.mxu0 0.0
        %3180 = vmatpush1.msra.mxu0 0.0
        %3181 = vmatprep.subr.mxu0 0.0
        %3182 = vmatpush1.msra.mxu0 0.0
        %3183 = vmatprep.subr.mxu0 0.0
        %3184 = vmatpush1.msra.mxu0 0.0
        %3185 = vmatprep.subr.mxu0 0.0
        %3186 = vmatpush1.msra.mxu0 0.0
        %3187 = vmatprep.subr.mxu0 0.0
        %3188 = vmatpush1.msra.mxu0 0.0
        %3189 = vmatprep.subr.mxu0 0.0
        %3190 = vmatpush1.msra.mxu0 0.0
        %3191 = vmatprep.subr.mxu0 0.0
        %3192 = vmatpush1.msra.mxu0 0.0
        %3193 = vmatprep.subr.mxu0 0.0
        %3194 = vmatpush1.msra.mxu0 0.0
        %3195 = vmatprep.subr.mxu0 0.0
        %3196 = vmatpush1.msra.mxu0 0.0
        %3197 = vmatprep.subr.mxu0 0.0
        %3198 = vmatpush1.msra.mxu0 0.0
        %3199 = vmatprep.subr.mxu0 0.0
        %3200 = vmatpush1.msra.mxu0 0.0
        %3201 = vmatprep.subr.mxu0 0.0
        %3202 = vmatpush1.msra.mxu0 0.0
        %3203 = vmatprep.subr.mxu0 0.0
        %3204 = vmatpush1.msra.mxu0 0.0
        %3205 = vmatprep.subr.mxu0 0.0
        %3206 = vmatpush1.msra.mxu0 0.0
        %3207 = vmatprep.subr.mxu0 0.0
        %3208 = vmatpush1.msra.mxu0 0.0
        %3209 = vmatprep.subr.mxu0 0.0
        %v3210 = vand.u32 %v2948, 4294901760
        %3211 = vmatpush1.msra.mxu0 %v3210
        %3212 = vmatprep.subr.mxu0 0.0
        %3213 = vmatpush2.msra.mxu0 0.0
        %3214 = vmatprep.subr.mxu0 0.0
        %3215 = vmatpush2.msra.mxu0 0.0
        %3216 = vmatprep.subr.mxu0 0.0
        %3217 = vmatpush2.msra.mxu0 0.0
        %3218 = vmatprep.subr.mxu0 0.0
        %3219 = vmatpush2.msra.mxu0 0.0
        %3220 = vmatprep.subr.mxu0 0.0
        %3221 = vmatpush2.msra.mxu0 0.0
        %3222 = vmatprep.subr.mxu0 0.0
        %3223 = vmatpush2.msra.mxu0 0.0
        %3224 = vmatprep.subr.mxu0 0.0
        %3225 = vmatpush2.msra.mxu0 0.0
        %3226 = vmatprep.subr.mxu0 0.0
        %3227 = vmatpush2.msra.mxu0 0.0
        %3228 = vmatprep.subr.mxu0 0.0
        %3229 = vmatpush2.msra.mxu0 0.0
        %3230 = vmatprep.subr.mxu0 0.0
        %3231 = vmatpush2.msra.mxu0 0.0
        %3232 = vmatprep.subr.mxu0 0.0
        %3233 = vmatpush2.msra.mxu0 0.0
        %3234 = vmatprep.subr.mxu0 0.0
        %3235 = vmatpush2.msra.mxu0 0.0
        %3236 = vmatprep.subr.mxu0 0.0
        %3237 = vmatpush2.msra.mxu0 0.0
        %3238 = vmatprep.subr.mxu0 0.0
        %3239 = vmatpush2.msra.mxu0 0.0
        %3240 = vmatprep.subr.mxu0 0.0
        %3241 = vmatpush2.msra.mxu0 0.0
        %3242 = vmatprep.subr.mxu0 0.0
        %3243 = vmatpush2.msra.mxu0 0.0
        %3244 = vmatprep.mubr.f32.mxu0 0.0
        %v3245 = vand.u32 %v2951, 4294901760
        %v3246 = vsub.f32 %v2951, %v3245
        %v3247 = vand.u32 %v3246, 4294901760
        %3248 = vmatmul.mubr.f32.gmra.mxu0 %v3247
        %v3249 = vpop.f32.mrf.mxu0
        %v3250 = vadd.f32 %v3176, %v3249
        %v3251 = vpop.f32.mrf.mxu0
        %3252 = vdwg.mxu0
        %3253 = vmatprep.subr.mxu0 0.0
        %3254 = vmatpush1.msra.mxu0 0.0
        %3255 = vmatprep.subr.mxu0 0.0
        %3256 = vmatpush1.msra.mxu0 0.0
        %3257 = vmatprep.subr.mxu0 0.0
        %3258 = vmatpush1.msra.mxu0 0.0
        %3259 = vmatprep.subr.mxu0 0.0
        %3260 = vmatpush1.msra.mxu0 0.0
        %3261 = vmatprep.subr.mxu0 0.0
        %3262 = vmatpush1.msra.mxu0 0.0
        %3263 = vmatprep.subr.mxu0 0.0
        %3264 = vmatpush1.msra.mxu0 0.0
        %3265 = vmatprep.subr.mxu0 0.0
        %3266 = vmatpush1.msra.mxu0 0.0
        %3267 = vmatprep.subr.mxu0 0.0
        %3268 = vmatpush1.msra.mxu0 0.0
        %3269 = vmatprep.subr.mxu0 0.0
        %3270 = vmatpush1.msra.mxu0 0.0
        %3271 = vmatprep.subr.mxu0 0.0
        %3272 = vmatpush1.msra.mxu0 0.0
        %3273 = vmatprep.subr.mxu0 0.0
        %3274 = vmatpush1.msra.mxu0 0.0
        %3275 = vmatprep.subr.mxu0 0.0
        %3276 = vmatpush1.msra.mxu0 0.0
        %3277 = vmatprep.subr.mxu0 0.0
        %3278 = vmatpush1.msra.mxu0 0.0
        %3279 = vmatprep.subr.mxu0 0.0
        %3280 = vmatpush1.msra.mxu0 0.0
        %3281 = vmatprep.subr.mxu0 0.0
        %3282 = vmatpush1.msra.mxu0 0.0
        %3283 = vmatprep.subr.mxu0 0.0
        %v3284 = vand.u32 %v2948, 4294901760
        %v3285 = vsub.f32 %v2948, %v3284
        %v3286 = vand.u32 %v3285, 4294901760
        %3287 = vmatpush1.msra.mxu0 %v3286
        %3288 = vmatprep.subr.mxu0 0.0
        %3289 = vmatpush2.msra.mxu0 0.0
        %3290 = vmatprep.subr.mxu0 0.0
        %3291 = vmatpush2.msra.mxu0 0.0
        %3292 = vmatprep.subr.mxu0 0.0
        %3293 = vmatpush2.msra.mxu0 0.0
        %3294 = vmatprep.subr.mxu0 0.0
        %3295 = vmatpush2.msra.mxu0 0.0
        %3296 = vmatprep.subr.mxu0 0.0
        %3297 = vmatpush2.msra.mxu0 0.0
        %3298 = vmatprep.subr.mxu0 0.0
        %3299 = vmatpush2.msra.mxu0 0.0
        %3300 = vmatprep.subr.mxu0 0.0
        %3301 = vmatpush2.msra.mxu0 0.0
        %3302 = vmatprep.subr.mxu0 0.0
        %3303 = vmatpush2.msra.mxu0 0.0
        %3304 = vmatprep.subr.mxu0 0.0
        %3305 = vmatpush2.msra.mxu0 0.0
        %3306 = vmatprep.subr.mxu0 0.0
        %3307 = vmatpush2.msra.mxu0 0.0
        %3308 = vmatprep.subr.mxu0 0.0
        %3309 = vmatpush2.msra.mxu0 0.0
        %3310 = vmatprep.subr.mxu0 0.0
        %3311 = vmatpush2.msra.mxu0 0.0
        %3312 = vmatprep.subr.mxu0 0.0
        %3313 = vmatpush2.msra.mxu0 0.0
        %3314 = vmatprep.subr.mxu0 0.0
        %3315 = vmatpush2.msra.mxu0 0.0
        %3316 = vmatprep.subr.mxu0 0.0
        %3317 = vmatpush2.msra.mxu0 0.0
        %3318 = vmatprep.subr.mxu0 0.0
        %3319 = vmatpush2.msra.mxu0 0.0
        %3320 = vmatprep.mubr.f32.mxu0 0.0
        %v3321 = vand.u32 %v2951, 4294901760
        %3322 = vmatmul.mubr.f32.gmra.mxu0 %v3321
        %v3323 = vpop.f32.mrf.mxu0
        %v3324 = vadd.f32 %v3250, %v3323
        %v3325 = vpop.f32.mrf.mxu0
        %3326 = vdwg.mxu0
        %3327 = vmatprep.subr.mxu0 0.0
        %3328 = vmatpush1.msra.mxu0 0.0
        %3329 = vmatprep.subr.mxu0 0.0
        %3330 = vmatpush1.msra.mxu0 0.0
        %3331 = vmatprep.subr.mxu0 0.0
        %3332 = vmatpush1.msra.mxu0 0.0
        %3333 = vmatprep.subr.mxu0 0.0
        %3334 = vmatpush1.msra.mxu0 0.0
        %3335 = vmatprep.subr.mxu0 0.0
        %3336 = vmatpush1.msra.mxu0 0.0
        %3337 = vmatprep.subr.mxu0 0.0
        %3338 = vmatpush1.msra.mxu0 0.0
        %3339 = vmatprep.subr.mxu0 0.0
        %3340 = vmatpush1.msra.mxu0 0.0
        %3341 = vmatprep.subr.mxu0 0.0
        %3342 = vmatpush1.msra.mxu0 0.0
        %3343 = vmatprep.subr.mxu0 0.0
        %3344 = vmatpush1.msra.mxu0 0.0
        %3345 = vmatprep.subr.mxu0 0.0
        %3346 = vmatpush1.msra.mxu0 0.0
        %3347 = vmatprep.subr.mxu0 0.0
        %3348 = vmatpush1.msra.mxu0 0.0
        %3349 = vmatprep.subr.mxu0 0.0
        %3350 = vmatpush1.msra.mxu0 0.0
        %3351 = vmatprep.subr.mxu0 0.0
        %3352 = vmatpush1.msra.mxu0 0.0
        %3353 = vmatprep.subr.mxu0 0.0
        %3354 = vmatpush1.msra.mxu0 0.0
        %3355 = vmatprep.subr.mxu0 0.0
        %3356 = vmatpush1.msra.mxu0 0.0
        %3357 = vmatprep.subr.mxu0 0.0
        %v3358 = vand.u32 %v2948, 4294901760
        %3359 = vmatpush1.msra.mxu0 %v3358
        %3360 = vmatprep.subr.mxu0 0.0
        %3361 = vmatpush2.msra.mxu0 0.0
        %3362 = vmatprep.subr.mxu0 0.0
        %3363 = vmatpush2.msra.mxu0 0.0
        %3364 = vmatprep.subr.mxu0 0.0
        %3365 = vmatpush2.msra.mxu0 0.0
        %3366 = vmatprep.subr.mxu0 0.0
        %3367 = vmatpush2.msra.mxu0 0.0
        %3368 = vmatprep.subr.mxu0 0.0
        %3369 = vmatpush2.msra.mxu0 0.0
        %3370 = vmatprep.subr.mxu0 0.0
        %3371 = vmatpush2.msra.mxu0 0.0
        %3372 = vmatprep.subr.mxu0 0.0
        %3373 = vmatpush2.msra.mxu0 0.0
        %3374 = vmatprep.subr.mxu0 0.0
        %3375 = vmatpush2.msra.mxu0 0.0
        %3376 = vmatprep.subr.mxu0 0.0
        %3377 = vmatpush2.msra.mxu0 0.0
        %3378 = vmatprep.subr.mxu0 0.0
        %3379 = vmatpush2.msra.mxu0 0.0
        %3380 = vmatprep.subr.mxu0 0.0
        %3381 = vmatpush2.msra.mxu0 0.0
        %3382 = vmatprep.subr.mxu0 0.0
        %3383 = vmatpush2.msra.mxu0 0.0
        %3384 = vmatprep.subr.mxu0 0.0
        %3385 = vmatpush2.msra.mxu0 0.0
        %3386 = vmatprep.subr.mxu0 0.0
        %3387 = vmatpush2.msra.mxu0 0.0
        %3388 = vmatprep.subr.mxu0 0.0
        %3389 = vmatpush2.msra.mxu0 0.0
        %3390 = vmatprep.subr.mxu0 0.0
        %3391 = vmatpush2.msra.mxu0 0.0
        %3392 = vmatprep.mubr.f32.mxu0 0.0
        %v3393 = vand.u32 %v2951, 4294901760
        %3394 = vmatmul.mubr.f32.gmra.mxu0 %v3393
        %v3395 = vpop.f32.mrf.mxu0
        %v3396 = vadd.f32 %v3324, %v3395
        %v3397 = vpop.f32.mrf.mxu0
        %3398 = vdwg.mxu0
        %3399 = vrot.lane.b32.xlu0 %v1555, 96
        %v3400 = vpop.permute.xlu0 %3399
        %3401 = vrot.lane.b32.xlu0 %v1566, 96
        %v3402 = vpop.permute.xlu0 %3401
        %v3403 = vsel %vm1567, %v3400, 0
        %v3405 = vsel %vm1567, %v3402, 0
        %3407 = vmatprep.subr.mxu0 0.0
        %3408 = vmatpush1.xpose.msra.mxu0 0.0
        %3409 = vmatprep.subr.mxu0 0.0
        %3410 = vmatpush1.xpose.msra.mxu0 0.0
        %3411 = vmatprep.subr.mxu0 0.0
        %3412 = vmatpush1.xpose.msra.mxu0 0.0
        %3413 = vmatprep.subr.mxu0 0.0
        %3414 = vmatpush1.xpose.msra.mxu0 0.0
        %3415 = vmatprep.subr.mxu0 0.0
        %3416 = vmatpush1.xpose.msra.mxu0 0.0
        %3417 = vmatprep.subr.mxu0 0.0
        %3418 = vmatpush1.xpose.msra.mxu0 0.0
        %3419 = vmatprep.subr.mxu0 0.0
        %3420 = vmatpush1.xpose.msra.mxu0 0.0
        %3421 = vmatprep.subr.mxu0 0.0
        %3422 = vmatpush1.xpose.msra.mxu0 0.0
        %3423 = vmatprep.subr.mxu0 0.0
        %3424 = vmatpush1.xpose.msra.mxu0 0.0
        %3425 = vmatprep.subr.mxu0 0.0
        %3426 = vmatpush1.xpose.msra.mxu0 0.0
        %3427 = vmatprep.subr.mxu0 0.0
        %3428 = vmatpush1.xpose.msra.mxu0 0.0
        %3429 = vmatprep.subr.mxu0 0.0
        %3430 = vmatpush1.xpose.msra.mxu0 0.0
        %3431 = vmatprep.subr.mxu0 0.0
        %3432 = vmatpush1.xpose.msra.mxu0 0.0
        %3433 = vmatprep.subr.mxu0 0.0
        %3434 = vmatpush1.xpose.msra.mxu0 0.0
        %3435 = vmatprep.subr.mxu0 0.0
        %3436 = vmatpush1.xpose.msra.mxu0 0.0
        %3437 = vmatprep.subr.mxu0 0.0
        %v3438 = vand.u32 %v3405, 4294901760
        %3439 = vmatpush1.xpose.msra.mxu0 %v3438
        %3440 = vmatprep.subr.mxu0 0.0
        %3441 = vmatpush2.xpose.msra.mxu0 0.0
        %3442 = vmatprep.subr.mxu0 0.0
        %3443 = vmatpush2.xpose.msra.mxu0 0.0
        %3444 = vmatprep.subr.mxu0 0.0
        %3445 = vmatpush2.xpose.msra.mxu0 0.0
        %3446 = vmatprep.subr.mxu0 0.0
        %3447 = vmatpush2.xpose.msra.mxu0 0.0
        %3448 = vmatprep.subr.mxu0 0.0
        %3449 = vmatpush2.xpose.msra.mxu0 0.0
        %3450 = vmatprep.subr.mxu0 0.0
        %3451 = vmatpush2.xpose.msra.mxu0 0.0
        %3452 = vmatprep.subr.mxu0 0.0
        %3453 = vmatpush2.xpose.msra.mxu0 0.0
        %3454 = vmatprep.subr.mxu0 0.0
        %3455 = vmatpush2.xpose.msra.mxu0 0.0
        %3456 = vmatprep.subr.mxu0 0.0
        %3457 = vmatpush2.xpose.msra.mxu0 0.0
        %3458 = vmatprep.subr.mxu0 0.0
        %3459 = vmatpush2.xpose.msra.mxu0 0.0
        %3460 = vmatprep.subr.mxu0 0.0
        %3461 = vmatpush2.xpose.msra.mxu0 0.0
        %3462 = vmatprep.subr.mxu0 0.0
        %3463 = vmatpush2.xpose.msra.mxu0 0.0
        %3464 = vmatprep.subr.mxu0 0.0
        %3465 = vmatpush2.xpose.msra.mxu0 0.0
        %3466 = vmatprep.subr.mxu0 0.0
        %3467 = vmatpush2.xpose.msra.mxu0 0.0
        %3468 = vmatprep.subr.mxu0 0.0
        %3469 = vmatpush2.xpose.msra.mxu0 0.0
        %3470 = vmatprep.subr.mxu0 0.0
        %3471 = vmatpush2.xpose.msra.mxu0 0.0
        %3472 = vmatprep.mubr.f32.mxu0 0.0
        %v3473 = vand.u32 %v3403, 4294901760
        %v3474 = vsub.f32 %v3403, %v3473
        %v3475 = vand.u32 %v3474, 4294901760
        %v3476 = vsub.f32 %v3474, %v3475
        %v3477 = vand.u32 %v3476, 4294901760
        %3478 = vmatmul.mubr.f32.gmra.mxu0 %v3477
        %v3479 = vpop.f32.mrf.mxu0
        %v3480 = vadd.f32 0.0, %v3479
        %v3481 = vpop.f32.mrf.mxu0
        %3482 = vdwg.mxu0
        %3483 = vmatprep.subr.mxu0 0.0
        %3484 = vmatpush1.xpose.msra.mxu0 0.0
        %3485 = vmatprep.subr.mxu0 0.0
        %3486 = vmatpush1.xpose.msra.mxu0 0.0
        %3487 = vmatprep.subr.mxu0 0.0
        %3488 = vmatpush1.xpose.msra.mxu0 0.0
        %3489 = vmatprep.subr.mxu0 0.0
        %3490 = vmatpush1.xpose.msra.mxu0 0.0
        %3491 = vmatprep.subr.mxu0 0.0
        %3492 = vmatpush1.xpose.msra.mxu0 0.0
        %3493 = vmatprep.subr.mxu0 0.0
        %3494 = vmatpush1.xpose.msra.mxu0 0.0
        %3495 = vmatprep.subr.mxu0 0.0
        %3496 = vmatpush1.xpose.msra.mxu0 0.0
        %3497 = vmatprep.subr.mxu0 0.0
        %3498 = vmatpush1.xpose.msra.mxu0 0.0
        %3499 = vmatprep.subr.mxu0 0.0
        %3500 = vmatpush1.xpose.msra.mxu0 0.0
        %3501 = vmatprep.subr.mxu0 0.0
        %3502 = vmatpush1.xpose.msra.mxu0 0.0
        %3503 = vmatprep.subr.mxu0 0.0
        %3504 = vmatpush1.xpose.msra.mxu0 0.0
        %3505 = vmatprep.subr.mxu0 0.0
        %3506 = vmatpush1.xpose.msra.mxu0 0.0
        %3507 = vmatprep.subr.mxu0 0.0
        %3508 = vmatpush1.xpose.msra.mxu0 0.0
        %3509 = vmatprep.subr.mxu0 0.0
        %3510 = vmatpush1.xpose.msra.mxu0 0.0
        %3511 = vmatprep.subr.mxu0 0.0
        %3512 = vmatpush1.xpose.msra.mxu0 0.0
        %3513 = vmatprep.subr.mxu0 0.0
        %v3514 = vand.u32 %v3405, 4294901760
        %v3515 = vsub.f32 %v3405, %v3514
        %v3516 = vand.u32 %v3515, 4294901760
        %v3517 = vsub.f32 %v3515, %v3516
        %v3518 = vand.u32 %v3517, 4294901760
        %3519 = vmatpush1.xpose.msra.mxu0 %v3518
        %3520 = vmatprep.subr.mxu0 0.0
        %3521 = vmatpush2.xpose.msra.mxu0 0.0
        %3522 = vmatprep.subr.mxu0 0.0
        %3523 = vmatpush2.xpose.msra.mxu0 0.0
        %3524 = vmatprep.subr.mxu0 0.0
        %3525 = vmatpush2.xpose.msra.mxu0 0.0
        %3526 = vmatprep.subr.mxu0 0.0
        %3527 = vmatpush2.xpose.msra.mxu0 0.0
        %3528 = vmatprep.subr.mxu0 0.0
        %3529 = vmatpush2.xpose.msra.mxu0 0.0
        %3530 = vmatprep.subr.mxu0 0.0
        %3531 = vmatpush2.xpose.msra.mxu0 0.0
        %3532 = vmatprep.subr.mxu0 0.0
        %3533 = vmatpush2.xpose.msra.mxu0 0.0
        %3534 = vmatprep.subr.mxu0 0.0
        %3535 = vmatpush2.xpose.msra.mxu0 0.0
        %3536 = vmatprep.subr.mxu0 0.0
        %3537 = vmatpush2.xpose.msra.mxu0 0.0
        %3538 = vmatprep.subr.mxu0 0.0
        %3539 = vmatpush2.xpose.msra.mxu0 0.0
        %3540 = vmatprep.subr.mxu0 0.0
        %3541 = vmatpush2.xpose.msra.mxu0 0.0
        %3542 = vmatprep.subr.mxu0 0.0
        %3543 = vmatpush2.xpose.msra.mxu0 0.0
        %3544 = vmatprep.subr.mxu0 0.0
        %3545 = vmatpush2.xpose.msra.mxu0 0.0
        %3546 = vmatprep.subr.mxu0 0.0
        %3547 = vmatpush2.xpose.msra.mxu0 0.0
        %3548 = vmatprep.subr.mxu0 0.0
        %3549 = vmatpush2.xpose.msra.mxu0 0.0
        %3550 = vmatprep.subr.mxu0 0.0
        %3551 = vmatpush2.xpose.msra.mxu0 0.0
        %3552 = vmatprep.mubr.f32.mxu0 0.0
        %v3553 = vand.u32 %v3403, 4294901760
        %3554 = vmatmul.mubr.f32.gmra.mxu0 %v3553
        %v3555 = vpop.f32.mrf.mxu0
        %v3556 = vadd.f32 %v3480, %v3555
        %v3557 = vpop.f32.mrf.mxu0
        %3558 = vdwg.mxu0
        %3559 = vmatprep.subr.mxu0 0.0
        %3560 = vmatpush1.xpose.msra.mxu0 0.0
        %3561 = vmatprep.subr.mxu0 0.0
        %3562 = vmatpush1.xpose.msra.mxu0 0.0
        %3563 = vmatprep.subr.mxu0 0.0
        %3564 = vmatpush1.xpose.msra.mxu0 0.0
        %3565 = vmatprep.subr.mxu0 0.0
        %3566 = vmatpush1.xpose.msra.mxu0 0.0
        %3567 = vmatprep.subr.mxu0 0.0
        %3568 = vmatpush1.xpose.msra.mxu0 0.0
        %3569 = vmatprep.subr.mxu0 0.0
        %3570 = vmatpush1.xpose.msra.mxu0 0.0
        %3571 = vmatprep.subr.mxu0 0.0
        %3572 = vmatpush1.xpose.msra.mxu0 0.0
        %3573 = vmatprep.subr.mxu0 0.0
        %3574 = vmatpush1.xpose.msra.mxu0 0.0
        %3575 = vmatprep.subr.mxu0 0.0
        %3576 = vmatpush1.xpose.msra.mxu0 0.0
        %3577 = vmatprep.subr.mxu0 0.0
        %3578 = vmatpush1.xpose.msra.mxu0 0.0
        %3579 = vmatprep.subr.mxu0 0.0
        %3580 = vmatpush1.xpose.msra.mxu0 0.0
        %3581 = vmatprep.subr.mxu0 0.0
        %3582 = vmatpush1.xpose.msra.mxu0 0.0
        %3583 = vmatprep.subr.mxu0 0.0
        %3584 = vmatpush1.xpose.msra.mxu0 0.0
        %3585 = vmatprep.subr.mxu0 0.0
        %3586 = vmatpush1.xpose.msra.mxu0 0.0
        %3587 = vmatprep.subr.mxu0 0.0
        %3588 = vmatpush1.xpose.msra.mxu0 0.0
        %3589 = vmatprep.subr.mxu0 0.0
        %v3590 = vand.u32 %v3405, 4294901760
        %v3591 = vsub.f32 %v3405, %v3590
        %3592 = vmatpush1.xpose.msra.mxu0 %v3591
        %3593 = vmatprep.subr.mxu0 0.0
        %3594 = vmatpush2.xpose.msra.mxu0 0.0
        %3595 = vmatprep.subr.mxu0 0.0
        %3596 = vmatpush2.xpose.msra.mxu0 0.0
        %3597 = vmatprep.subr.mxu0 0.0
        %3598 = vmatpush2.xpose.msra.mxu0 0.0
        %3599 = vmatprep.subr.mxu0 0.0
        %3600 = vmatpush2.xpose.msra.mxu0 0.0
        %3601 = vmatprep.subr.mxu0 0.0
        %3602 = vmatpush2.xpose.msra.mxu0 0.0
        %3603 = vmatprep.subr.mxu0 0.0
        %3604 = vmatpush2.xpose.msra.mxu0 0.0
        %3605 = vmatprep.subr.mxu0 0.0
        %3606 = vmatpush2.xpose.msra.mxu0 0.0
        %3607 = vmatprep.subr.mxu0 0.0
        %3608 = vmatpush2.xpose.msra.mxu0 0.0
        %3609 = vmatprep.subr.mxu0 0.0
        %3610 = vmatpush2.xpose.msra.mxu0 0.0
        %3611 = vmatprep.subr.mxu0 0.0
        %3612 = vmatpush2.xpose.msra.mxu0 0.0
        %3613 = vmatprep.subr.mxu0 0.0
        %3614 = vmatpush2.xpose.msra.mxu0 0.0
        %3615 = vmatprep.subr.mxu0 0.0
        %3616 = vmatpush2.xpose.msra.mxu0 0.0
        %3617 = vmatprep.subr.mxu0 0.0
        %3618 = vmatpush2.xpose.msra.mxu0 0.0
        %3619 = vmatprep.subr.mxu0 0.0
        %3620 = vmatpush2.xpose.msra.mxu0 0.0
        %3621 = vmatprep.subr.mxu0 0.0
        %3622 = vmatpush2.xpose.msra.mxu0 0.0
        %3623 = vmatprep.subr.mxu0 0.0
        %3624 = vmatpush2.xpose.msra.mxu0 0.0
        %3625 = vmatprep.mubr.f32.mxu0 0.0
        %v3626 = vand.u32 %v3403, 4294901760
        %v3627 = vsub.f32 %v3403, %v3626
        %3628 = vmatmul.mubr.f32.gmra.mxu0 %v3627
        %v3629 = vpop.f32.mrf.mxu0
        %v3630 = vadd.f32 %v3556, %v3629
        %v3631 = vpop.f32.mrf.mxu0
        %3632 = vdwg.mxu0
        %3633 = vmatprep.subr.mxu0 0.0
        %3634 = vmatpush1.xpose.msra.mxu0 0.0
        %3635 = vmatprep.subr.mxu0 0.0
        %3636 = vmatpush1.xpose.msra.mxu0 0.0
        %3637 = vmatprep.subr.mxu0 0.0
        %3638 = vmatpush1.xpose.msra.mxu0 0.0
        %3639 = vmatprep.subr.mxu0 0.0
        %3640 = vmatpush1.xpose.msra.mxu0 0.0
        %3641 = vmatprep.subr.mxu0 0.0
        %3642 = vmatpush1.xpose.msra.mxu0 0.0
        %3643 = vmatprep.subr.mxu0 0.0
        %3644 = vmatpush1.xpose.msra.mxu0 0.0
        %3645 = vmatprep.subr.mxu0 0.0
        %3646 = vmatpush1.xpose.msra.mxu0 0.0
        %3647 = vmatprep.subr.mxu0 0.0
        %3648 = vmatpush1.xpose.msra.mxu0 0.0
        %3649 = vmatprep.subr.mxu0 0.0
        %3650 = vmatpush1.xpose.msra.mxu0 0.0
        %3651 = vmatprep.subr.mxu0 0.0
        %3652 = vmatpush1.xpose.msra.mxu0 0.0
        %3653 = vmatprep.subr.mxu0 0.0
        %3654 = vmatpush1.xpose.msra.mxu0 0.0
        %3655 = vmatprep.subr.mxu0 0.0
        %3656 = vmatpush1.xpose.msra.mxu0 0.0
        %3657 = vmatprep.subr.mxu0 0.0
        %3658 = vmatpush1.xpose.msra.mxu0 0.0
        %3659 = vmatprep.subr.mxu0 0.0
        %3660 = vmatpush1.xpose.msra.mxu0 0.0
        %3661 = vmatprep.subr.mxu0 0.0
        %3662 = vmatpush1.xpose.msra.mxu0 0.0
        %3663 = vmatprep.subr.mxu0 0.0
        %v3664 = vand.u32 %v3405, 4294901760
        %3665 = vmatpush1.xpose.msra.mxu0 %v3664
        %3666 = vmatprep.subr.mxu0 0.0
        %3667 = vmatpush2.xpose.msra.mxu0 0.0
        %3668 = vmatprep.subr.mxu0 0.0
        %3669 = vmatpush2.xpose.msra.mxu0 0.0
        %3670 = vmatprep.subr.mxu0 0.0
        %3671 = vmatpush2.xpose.msra.mxu0 0.0
        %3672 = vmatprep.subr.mxu0 0.0
        %3673 = vmatpush2.xpose.msra.mxu0 0.0
        %3674 = vmatprep.subr.mxu0 0.0
        %3675 = vmatpush2.xpose.msra.mxu0 0.0
        %3676 = vmatprep.subr.mxu0 0.0
        %3677 = vmatpush2.xpose.msra.mxu0 0.0
        %3678 = vmatprep.subr.mxu0 0.0
        %3679 = vmatpush2.xpose.msra.mxu0 0.0
        %3680 = vmatprep.subr.mxu0 0.0
        %3681 = vmatpush2.xpose.msra.mxu0 0.0
        %3682 = vmatprep.subr.mxu0 0.0
        %3683 = vmatpush2.xpose.msra.mxu0 0.0
        %3684 = vmatprep.subr.mxu0 0.0
        %3685 = vmatpush2.xpose.msra.mxu0 0.0
        %3686 = vmatprep.subr.mxu0 0.0
        %3687 = vmatpush2.xpose.msra.mxu0 0.0
        %3688 = vmatprep.subr.mxu0 0.0
        %3689 = vmatpush2.xpose.msra.mxu0 0.0
        %3690 = vmatprep.subr.mxu0 0.0
        %3691 = vmatpush2.xpose.msra.mxu0 0.0
        %3692 = vmatprep.subr.mxu0 0.0
        %3693 = vmatpush2.xpose.msra.mxu0 0.0
        %3694 = vmatprep.subr.mxu0 0.0
        %3695 = vmatpush2.xpose.msra.mxu0 0.0
        %3696 = vmatprep.subr.mxu0 0.0
        %3697 = vmatpush2.xpose.msra.mxu0 0.0
        %3698 = vmatprep.mubr.f32.mxu0 0.0
        %v3699 = vand.u32 %v3403, 4294901760
        %v3700 = vsub.f32 %v3403, %v3699
        %v3701 = vand.u32 %v3700, 4294901760
        %3702 = vmatmul.mubr.f32.gmra.mxu0 %v3701
        %v3703 = vpop.f32.mrf.mxu0
        %v3704 = vadd.f32 %v3630, %v3703
        %v3705 = vpop.f32.mrf.mxu0
        %3706 = vdwg.mxu0
        %3707 = vmatprep.subr.mxu0 0.0
        %3708 = vmatpush1.xpose.msra.mxu0 0.0
        %3709 = vmatprep.subr.mxu0 0.0
        %3710 = vmatpush1.xpose.msra.mxu0 0.0
        %3711 = vmatprep.subr.mxu0 0.0
        %3712 = vmatpush1.xpose.msra.mxu0 0.0
        %3713 = vmatprep.subr.mxu0 0.0
        %3714 = vmatpush1.xpose.msra.mxu0 0.0
        %3715 = vmatprep.subr.mxu0 0.0
        %3716 = vmatpush1.xpose.msra.mxu0 0.0
        %3717 = vmatprep.subr.mxu0 0.0
        %3718 = vmatpush1.xpose.msra.mxu0 0.0
        %3719 = vmatprep.subr.mxu0 0.0
        %3720 = vmatpush1.xpose.msra.mxu0 0.0
        %3721 = vmatprep.subr.mxu0 0.0
        %3722 = vmatpush1.xpose.msra.mxu0 0.0
        %3723 = vmatprep.subr.mxu0 0.0
        %3724 = vmatpush1.xpose.msra.mxu0 0.0
        %3725 = vmatprep.subr.mxu0 0.0
        %3726 = vmatpush1.xpose.msra.mxu0 0.0
        %3727 = vmatprep.subr.mxu0 0.0
        %3728 = vmatpush1.xpose.msra.mxu0 0.0
        %3729 = vmatprep.subr.mxu0 0.0
        %3730 = vmatpush1.xpose.msra.mxu0 0.0
        %3731 = vmatprep.subr.mxu0 0.0
        %3732 = vmatpush1.xpose.msra.mxu0 0.0
        %3733 = vmatprep.subr.mxu0 0.0
        %3734 = vmatpush1.xpose.msra.mxu0 0.0
        %3735 = vmatprep.subr.mxu0 0.0
        %3736 = vmatpush1.xpose.msra.mxu0 0.0
        %3737 = vmatprep.subr.mxu0 0.0
        %v3738 = vand.u32 %v3405, 4294901760
        %v3739 = vsub.f32 %v3405, %v3738
        %v3740 = vand.u32 %v3739, 4294901760
        %3741 = vmatpush1.xpose.msra.mxu0 %v3740
        %3742 = vmatprep.subr.mxu0 0.0
        %3743 = vmatpush2.xpose.msra.mxu0 0.0
        %3744 = vmatprep.subr.mxu0 0.0
        %3745 = vmatpush2.xpose.msra.mxu0 0.0
        %3746 = vmatprep.subr.mxu0 0.0
        %3747 = vmatpush2.xpose.msra.mxu0 0.0
        %3748 = vmatprep.subr.mxu0 0.0
        %3749 = vmatpush2.xpose.msra.mxu0 0.0
        %3750 = vmatprep.subr.mxu0 0.0
        %3751 = vmatpush2.xpose.msra.mxu0 0.0
        %3752 = vmatprep.subr.mxu0 0.0
        %3753 = vmatpush2.xpose.msra.mxu0 0.0
        %3754 = vmatprep.subr.mxu0 0.0
        %3755 = vmatpush2.xpose.msra.mxu0 0.0
        %3756 = vmatprep.subr.mxu0 0.0
        %3757 = vmatpush2.xpose.msra.mxu0 0.0
        %3758 = vmatprep.subr.mxu0 0.0
        %3759 = vmatpush2.xpose.msra.mxu0 0.0
        %3760 = vmatprep.subr.mxu0 0.0
        %3761 = vmatpush2.xpose.msra.mxu0 0.0
        %3762 = vmatprep.subr.mxu0 0.0
        %3763 = vmatpush2.xpose.msra.mxu0 0.0
        %3764 = vmatprep.subr.mxu0 0.0
        %3765 = vmatpush2.xpose.msra.mxu0 0.0
        %3766 = vmatprep.subr.mxu0 0.0
        %3767 = vmatpush2.xpose.msra.mxu0 0.0
        %3768 = vmatprep.subr.mxu0 0.0
        %3769 = vmatpush2.xpose.msra.mxu0 0.0
        %3770 = vmatprep.subr.mxu0 0.0
        %3771 = vmatpush2.xpose.msra.mxu0 0.0
        %3772 = vmatprep.subr.mxu0 0.0
        %3773 = vmatpush2.xpose.msra.mxu0 0.0
        %3774 = vmatprep.mubr.f32.mxu0 0.0
        %v3775 = vand.u32 %v3403, 4294901760
        %3776 = vmatmul.mubr.f32.gmra.mxu0 %v3775
        %v3777 = vpop.f32.mrf.mxu0
        %v3778 = vadd.f32 %v3704, %v3777
        %v3779 = vpop.f32.mrf.mxu0
        %3780 = vdwg.mxu0
        %3781 = vmatprep.subr.mxu0 0.0
        %3782 = vmatpush1.xpose.msra.mxu0 0.0
        %3783 = vmatprep.subr.mxu0 0.0
        %3784 = vmatpush1.xpose.msra.mxu0 0.0
        %3785 = vmatprep.subr.mxu0 0.0
        %3786 = vmatpush1.xpose.msra.mxu0 0.0
        %3787 = vmatprep.subr.mxu0 0.0
        %3788 = vmatpush1.xpose.msra.mxu0 0.0
        %3789 = vmatprep.subr.mxu0 0.0
        %3790 = vmatpush1.xpose.msra.mxu0 0.0
        %3791 = vmatprep.subr.mxu0 0.0
        %3792 = vmatpush1.xpose.msra.mxu0 0.0
        %3793 = vmatprep.subr.mxu0 0.0
        %3794 = vmatpush1.xpose.msra.mxu0 0.0
        %3795 = vmatprep.subr.mxu0 0.0
        %3796 = vmatpush1.xpose.msra.mxu0 0.0
        %3797 = vmatprep.subr.mxu0 0.0
        %3798 = vmatpush1.xpose.msra.mxu0 0.0
        %3799 = vmatprep.subr.mxu0 0.0
        %3800 = vmatpush1.xpose.msra.mxu0 0.0
        %3801 = vmatprep.subr.mxu0 0.0
        %3802 = vmatpush1.xpose.msra.mxu0 0.0
        %3803 = vmatprep.subr.mxu0 0.0
        %3804 = vmatpush1.xpose.msra.mxu0 0.0
        %3805 = vmatprep.subr.mxu0 0.0
        %3806 = vmatpush1.xpose.msra.mxu0 0.0
        %3807 = vmatprep.subr.mxu0 0.0
        %3808 = vmatpush1.xpose.msra.mxu0 0.0
        %3809 = vmatprep.subr.mxu0 0.0
        %3810 = vmatpush1.xpose.msra.mxu0 0.0
        %3811 = vmatprep.subr.mxu0 0.0
        %v3812 = vand.u32 %v3405, 4294901760
        %3813 = vmatpush1.xpose.msra.mxu0 %v3812
        %3814 = vmatprep.subr.mxu0 0.0
        %3815 = vmatpush2.xpose.msra.mxu0 0.0
        %3816 = vmatprep.subr.mxu0 0.0
        %3817 = vmatpush2.xpose.msra.mxu0 0.0
        %3818 = vmatprep.subr.mxu0 0.0
        %3819 = vmatpush2.xpose.msra.mxu0 0.0
        %3820 = vmatprep.subr.mxu0 0.0
        %3821 = vmatpush2.xpose.msra.mxu0 0.0
        %3822 = vmatprep.subr.mxu0 0.0
        %3823 = vmatpush2.xpose.msra.mxu0 0.0
        %3824 = vmatprep.subr.mxu0 0.0
        %3825 = vmatpush2.xpose.msra.mxu0 0.0
        %3826 = vmatprep.subr.mxu0 0.0
        %3827 = vmatpush2.xpose.msra.mxu0 0.0
        %3828 = vmatprep.subr.mxu0 0.0
        %3829 = vmatpush2.xpose.msra.mxu0 0.0
        %3830 = vmatprep.subr.mxu0 0.0
        %3831 = vmatpush2.xpose.msra.mxu0 0.0
        %3832 = vmatprep.subr.mxu0 0.0
        %3833 = vmatpush2.xpose.msra.mxu0 0.0
        %3834 = vmatprep.subr.mxu0 0.0
        %3835 = vmatpush2.xpose.msra.mxu0 0.0
        %3836 = vmatprep.subr.mxu0 0.0
        %3837 = vmatpush2.xpose.msra.mxu0 0.0
        %3838 = vmatprep.subr.mxu0 0.0
        %3839 = vmatpush2.xpose.msra.mxu0 0.0
        %3840 = vmatprep.subr.mxu0 0.0
        %3841 = vmatpush2.xpose.msra.mxu0 0.0
        %3842 = vmatprep.subr.mxu0 0.0
        %3843 = vmatpush2.xpose.msra.mxu0 0.0
        %3844 = vmatprep.subr.mxu0 0.0
        %3845 = vmatpush2.xpose.msra.mxu0 0.0
        %3846 = vmatprep.mubr.f32.mxu0 0.0
        %v3847 = vand.u32 %v3403, 4294901760
        %3848 = vmatmul.mubr.f32.gmra.mxu0 %v3847
        %v3849 = vpop.f32.mrf.mxu0
        %v3850 = vadd.f32 %v3778, %v3849
        %v3851 = vpop.f32.mrf.mxu0
        %3852 = vdwg.mxu0
        %v3853 = vsel %vm2020, %v3850, -inf
        %3854 = vmax.xlane.f32.xlu0 %v3853
        %v3855 = vpop.xlane.xlu0 %3854
        %v3856 = vsub.f32 %v3850, %v3855
        %v3857 = vmul.f32 %v3856, 1.442695
        %v3858 = vpow.pop %v3857
        %v3859 = vsel %vm2020, %v3858, 0.0
        %3860 = vadd.xlane.f32.xlu0 %v3859
        %v3861 = vpop.xlane.xlu0 %3860
        %v3862 = vrcp.pop %v3861
        %v3863 = vmul.f32 %v3858, %v3862
        %3864 = vrot.lane.b32.xlu0 %v1538, 96
        %v3865 = vpop.permute.xlu0 %3864
        %v3868 = vsel %vm2020, %v3863, 0
        %3870 = vmatprep.subr.mxu0 0.0
        %3871 = vmatpush1.msra.mxu0 0.0
        %3872 = vmatprep.subr.mxu0 0.0
        %3873 = vmatpush1.msra.mxu0 0.0
        %3874 = vmatprep.subr.mxu0 0.0
        %3875 = vmatpush1.msra.mxu0 0.0
        %3876 = vmatprep.subr.mxu0 0.0
        %3877 = vmatpush1.msra.mxu0 0.0
        %3878 = vmatprep.subr.mxu0 0.0
        %3879 = vmatpush1.msra.mxu0 0.0
        %3880 = vmatprep.subr.mxu0 0.0
        %3881 = vmatpush1.msra.mxu0 0.0
        %3882 = vmatprep.subr.mxu0 0.0
        %3883 = vmatpush1.msra.mxu0 0.0
        %3884 = vmatprep.subr.mxu0 0.0
        %3885 = vmatpush1.msra.mxu0 0.0
        %3886 = vmatprep.subr.mxu0 0.0
        %3887 = vmatpush1.msra.mxu0 0.0
        %3888 = vmatprep.subr.mxu0 0.0
        %3889 = vmatpush1.msra.mxu0 0.0
        %3890 = vmatprep.subr.mxu0 0.0
        %3891 = vmatpush1.msra.mxu0 0.0
        %3892 = vmatprep.subr.mxu0 0.0
        %3893 = vmatpush1.msra.mxu0 0.0
        %3894 = vmatprep.subr.mxu0 0.0
        %3895 = vmatpush1.msra.mxu0 0.0
        %3896 = vmatprep.subr.mxu0 0.0
        %3897 = vmatpush1.msra.mxu0 0.0
        %3898 = vmatprep.subr.mxu0 0.0
        %3899 = vmatpush1.msra.mxu0 0.0
        %3900 = vmatprep.subr.mxu0 0.0
        %v3901 = vand.u32 %v3865, 4294901760
        %3902 = vmatpush1.msra.mxu0 %v3901
        %3903 = vmatprep.subr.mxu0 0.0
        %3904 = vmatpush2.msra.mxu0 0.0
        %3905 = vmatprep.subr.mxu0 0.0
        %3906 = vmatpush2.msra.mxu0 0.0
        %3907 = vmatprep.subr.mxu0 0.0
        %3908 = vmatpush2.msra.mxu0 0.0
        %3909 = vmatprep.subr.mxu0 0.0
        %3910 = vmatpush2.msra.mxu0 0.0
        %3911 = vmatprep.subr.mxu0 0.0
        %3912 = vmatpush2.msra.mxu0 0.0
        %3913 = vmatprep.subr.mxu0 0.0
        %3914 = vmatpush2.msra.mxu0 0.0
        %3915 = vmatprep.subr.mxu0 0.0
        %3916 = vmatpush2.msra.mxu0 0.0
        %3917 = vmatprep.subr.mxu0 0.0
        %3918 = vmatpush2.msra.mxu0 0.0
        %3919 = vmatprep.subr.mxu0 0.0
        %3920 = vmatpush2.msra.mxu0 0.0
        %3921 = vmatprep.subr.mxu0 0.0
        %3922 = vmatpush2.msra.mxu0 0.0
        %3923 = vmatprep.subr.mxu0 0.0
        %3924 = vmatpush2.msra.mxu0 0.0
        %3925 = vmatprep.subr.mxu0 0.0
        %3926 = vmatpush2.msra.mxu0 0.0
        %3927 = vmatprep.subr.mxu0 0.0
        %3928 = vmatpush2.msra.mxu0 0.0
        %3929 = vmatprep.subr.mxu0 0.0
        %3930 = vmatpush2.msra.mxu0 0.0
        %3931 = vmatprep.subr.mxu0 0.0
        %3932 = vmatpush2.msra.mxu0 0.0
        %3933 = vmatprep.subr.mxu0 0.0
        %3934 = vmatpush2.msra.mxu0 0.0
        %3935 = vmatprep.mubr.f32.mxu0 0.0
        %v3936 = vand.u32 %v3868, 4294901760
        %v3937 = vsub.f32 %v3868, %v3936
        %v3938 = vand.u32 %v3937, 4294901760
        %v3939 = vsub.f32 %v3937, %v3938
        %v3940 = vand.u32 %v3939, 4294901760
        %3941 = vmatmul.mubr.f32.gmra.mxu0 %v3940
        %v3942 = vpop.f32.mrf.mxu0
        %v3943 = vadd.f32 0.0, %v3942
        %v3944 = vpop.f32.mrf.mxu0
        %3945 = vdwg.mxu0
        %3946 = vmatprep.subr.mxu0 0.0
        %3947 = vmatpush1.msra.mxu0 0.0
        %3948 = vmatprep.subr.mxu0 0.0
        %3949 = vmatpush1.msra.mxu0 0.0
        %3950 = vmatprep.subr.mxu0 0.0
        %3951 = vmatpush1.msra.mxu0 0.0
        %3952 = vmatprep.subr.mxu0 0.0
        %3953 = vmatpush1.msra.mxu0 0.0
        %3954 = vmatprep.subr.mxu0 0.0
        %3955 = vmatpush1.msra.mxu0 0.0
        %3956 = vmatprep.subr.mxu0 0.0
        %3957 = vmatpush1.msra.mxu0 0.0
        %3958 = vmatprep.subr.mxu0 0.0
        %3959 = vmatpush1.msra.mxu0 0.0
        %3960 = vmatprep.subr.mxu0 0.0
        %3961 = vmatpush1.msra.mxu0 0.0
        %3962 = vmatprep.subr.mxu0 0.0
        %3963 = vmatpush1.msra.mxu0 0.0
        %3964 = vmatprep.subr.mxu0 0.0
        %3965 = vmatpush1.msra.mxu0 0.0
        %3966 = vmatprep.subr.mxu0 0.0
        %3967 = vmatpush1.msra.mxu0 0.0
        %3968 = vmatprep.subr.mxu0 0.0
        %3969 = vmatpush1.msra.mxu0 0.0
        %3970 = vmatprep.subr.mxu0 0.0
        %3971 = vmatpush1.msra.mxu0 0.0
        %3972 = vmatprep.subr.mxu0 0.0
        %3973 = vmatpush1.msra.mxu0 0.0
        %3974 = vmatprep.subr.mxu0 0.0
        %3975 = vmatpush1.msra.mxu0 0.0
        %3976 = vmatprep.subr.mxu0 0.0
        %v3977 = vand.u32 %v3865, 4294901760
        %v3978 = vsub.f32 %v3865, %v3977
        %v3979 = vand.u32 %v3978, 4294901760
        %v3980 = vsub.f32 %v3978, %v3979
        %v3981 = vand.u32 %v3980, 4294901760
        %3982 = vmatpush1.msra.mxu0 %v3981
        %3983 = vmatprep.subr.mxu0 0.0
        %3984 = vmatpush2.msra.mxu0 0.0
        %3985 = vmatprep.subr.mxu0 0.0
        %3986 = vmatpush2.msra.mxu0 0.0
        %3987 = vmatprep.subr.mxu0 0.0
        %3988 = vmatpush2.msra.mxu0 0.0
        %3989 = vmatprep.subr.mxu0 0.0
        %3990 = vmatpush2.msra.mxu0 0.0
        %3991 = vmatprep.subr.mxu0 0.0
        %3992 = vmatpush2.msra.mxu0 0.0
        %3993 = vmatprep.subr.mxu0 0.0
        %3994 = vmatpush2.msra.mxu0 0.0
        %3995 = vmatprep.subr.mxu0 0.0
        %3996 = vmatpush2.msra.mxu0 0.0
        %3997 = vmatprep.subr.mxu0 0.0
        %3998 = vmatpush2.msra.mxu0 0.0
        %3999 = vmatprep.subr.mxu0 0.0
        %4000 = vmatpush2.msra.mxu0 0.0
        %4001 = vmatprep.subr.mxu0 0.0
        %4002 = vmatpush2.msra.mxu0 0.0
        %4003 = vmatprep.subr.mxu0 0.0
        %4004 = vmatpush2.msra.mxu0 0.0
        %4005 = vmatprep.subr.mxu0 0.0
        %4006 = vmatpush2.msra.mxu0 0.0
        %4007 = vmatprep.subr.mxu0 0.0
        %4008 = vmatpush2.msra.mxu0 0.0
        %4009 = vmatprep.subr.mxu0 0.0
        %4010 = vmatpush2.msra.mxu0 0.0
        %4011 = vmatprep.subr.mxu0 0.0
        %4012 = vmatpush2.msra.mxu0 0.0
        %4013 = vmatprep.subr.mxu0 0.0
        %4014 = vmatpush2.msra.mxu0 0.0
        %4015 = vmatprep.mubr.f32.mxu0 0.0
        %v4016 = vand.u32 %v3868, 4294901760
        %4017 = vmatmul.mubr.f32.gmra.mxu0 %v4016
        %v4018 = vpop.f32.mrf.mxu0
        %v4019 = vadd.f32 %v3943, %v4018
        %v4020 = vpop.f32.mrf.mxu0
        %4021 = vdwg.mxu0
        %4022 = vmatprep.subr.mxu0 0.0
        %4023 = vmatpush1.msra.mxu0 0.0
        %4024 = vmatprep.subr.mxu0 0.0
        %4025 = vmatpush1.msra.mxu0 0.0
        %4026 = vmatprep.subr.mxu0 0.0
        %4027 = vmatpush1.msra.mxu0 0.0
        %4028 = vmatprep.subr.mxu0 0.0
        %4029 = vmatpush1.msra.mxu0 0.0
        %4030 = vmatprep.subr.mxu0 0.0
        %4031 = vmatpush1.msra.mxu0 0.0
        %4032 = vmatprep.subr.mxu0 0.0
        %4033 = vmatpush1.msra.mxu0 0.0
        %4034 = vmatprep.subr.mxu0 0.0
        %4035 = vmatpush1.msra.mxu0 0.0
        %4036 = vmatprep.subr.mxu0 0.0
        %4037 = vmatpush1.msra.mxu0 0.0
        %4038 = vmatprep.subr.mxu0 0.0
        %4039 = vmatpush1.msra.mxu0 0.0
        %4040 = vmatprep.subr.mxu0 0.0
        %4041 = vmatpush1.msra.mxu0 0.0
        %4042 = vmatprep.subr.mxu0 0.0
        %4043 = vmatpush1.msra.mxu0 0.0
        %4044 = vmatprep.subr.mxu0 0.0
        %4045 = vmatpush1.msra.mxu0 0.0
        %4046 = vmatprep.subr.mxu0 0.0
        %4047 = vmatpush1.msra.mxu0 0.0
        %4048 = vmatprep.subr.mxu0 0.0
        %4049 = vmatpush1.msra.mxu0 0.0
        %4050 = vmatprep.subr.mxu0 0.0
        %4051 = vmatpush1.msra.mxu0 0.0
        %4052 = vmatprep.subr.mxu0 0.0
        %v4053 = vand.u32 %v3865, 4294901760
        %v4054 = vsub.f32 %v3865, %v4053
        %4055 = vmatpush1.msra.mxu0 %v4054
        %4056 = vmatprep.subr.mxu0 0.0
        %4057 = vmatpush2.msra.mxu0 0.0
        %4058 = vmatprep.subr.mxu0 0.0
        %4059 = vmatpush2.msra.mxu0 0.0
        %4060 = vmatprep.subr.mxu0 0.0
        %4061 = vmatpush2.msra.mxu0 0.0
        %4062 = vmatprep.subr.mxu0 0.0
        %4063 = vmatpush2.msra.mxu0 0.0
        %4064 = vmatprep.subr.mxu0 0.0
        %4065 = vmatpush2.msra.mxu0 0.0
        %4066 = vmatprep.subr.mxu0 0.0
        %4067 = vmatpush2.msra.mxu0 0.0
        %4068 = vmatprep.subr.mxu0 0.0
        %4069 = vmatpush2.msra.mxu0 0.0
        %4070 = vmatprep.subr.mxu0 0.0
        %4071 = vmatpush2.msra.mxu0 0.0
        %4072 = vmatprep.subr.mxu0 0.0
        %4073 = vmatpush2.msra.mxu0 0.0
        %4074 = vmatprep.subr.mxu0 0.0
        %4075 = vmatpush2.msra.mxu0 0.0
        %4076 = vmatprep.subr.mxu0 0.0
        %4077 = vmatpush2.msra.mxu0 0.0
        %4078 = vmatprep.subr.mxu0 0.0
        %4079 = vmatpush2.msra.mxu0 0.0
        %4080 = vmatprep.subr.mxu0 0.0
        %4081 = vmatpush2.msra.mxu0 0.0
        %4082 = vmatprep.subr.mxu0 0.0
        %4083 = vmatpush2.msra.mxu0 0.0
        %4084 = vmatprep.subr.mxu0 0.0
        %4085 = vmatpush2.msra.mxu0 0.0
        %4086 = vmatprep.subr.mxu0 0.0
        %4087 = vmatpush2.msra.mxu0 0.0
        %4088 = vmatprep.mubr.f32.mxu0 0.0
        %v4089 = vand.u32 %v3868, 4294901760
        %v4090 = vsub.f32 %v3868, %v4089
        %4091 = vmatmul.mubr.f32.gmra.mxu0 %v4090
        %v4092 = vpop.f32.mrf.mxu0
        %v4093 = vadd.f32 %v4019, %v4092
        %v4094 = vpop.f32.mrf.mxu0
        %4095 = vdwg.mxu0
        %4096 = vmatprep.subr.mxu0 0.0
        %4097 = vmatpush1.msra.mxu0 0.0
        %4098 = vmatprep.subr.mxu0 0.0
        %4099 = vmatpush1.msra.mxu0 0.0
        %4100 = vmatprep.subr.mxu0 0.0
        %4101 = vmatpush1.msra.mxu0 0.0
        %4102 = vmatprep.subr.mxu0 0.0
        %4103 = vmatpush1.msra.mxu0 0.0
        %4104 = vmatprep.subr.mxu0 0.0
        %4105 = vmatpush1.msra.mxu0 0.0
        %4106 = vmatprep.subr.mxu0 0.0
        %4107 = vmatpush1.msra.mxu0 0.0
        %4108 = vmatprep.subr.mxu0 0.0
        %4109 = vmatpush1.msra.mxu0 0.0
        %4110 = vmatprep.subr.mxu0 0.0
        %4111 = vmatpush1.msra.mxu0 0.0
        %4112 = vmatprep.subr.mxu0 0.0
        %4113 = vmatpush1.msra.mxu0 0.0
        %4114 = vmatprep.subr.mxu0 0.0
        %4115 = vmatpush1.msra.mxu0 0.0
        %4116 = vmatprep.subr.mxu0 0.0
        %4117 = vmatpush1.msra.mxu0 0.0
        %4118 = vmatprep.subr.mxu0 0.0
        %4119 = vmatpush1.msra.mxu0 0.0
        %4120 = vmatprep.subr.mxu0 0.0
        %4121 = vmatpush1.msra.mxu0 0.0
        %4122 = vmatprep.subr.mxu0 0.0
        %4123 = vmatpush1.msra.mxu0 0.0
        %4124 = vmatprep.subr.mxu0 0.0
        %4125 = vmatpush1.msra.mxu0 0.0
        %4126 = vmatprep.subr.mxu0 0.0
        %v4127 = vand.u32 %v3865, 4294901760
        %4128 = vmatpush1.msra.mxu0 %v4127
        %4129 = vmatprep.subr.mxu0 0.0
        %4130 = vmatpush2.msra.mxu0 0.0
        %4131 = vmatprep.subr.mxu0 0.0
        %4132 = vmatpush2.msra.mxu0 0.0
        %4133 = vmatprep.subr.mxu0 0.0
        %4134 = vmatpush2.msra.mxu0 0.0
        %4135 = vmatprep.subr.mxu0 0.0
        %4136 = vmatpush2.msra.mxu0 0.0
        %4137 = vmatprep.subr.mxu0 0.0
        %4138 = vmatpush2.msra.mxu0 0.0
        %4139 = vmatprep.subr.mxu0 0.0
        %4140 = vmatpush2.msra.mxu0 0.0
        %4141 = vmatprep.subr.mxu0 0.0
        %4142 = vmatpush2.msra.mxu0 0.0
        %4143 = vmatprep.subr.mxu0 0.0
        %4144 = vmatpush2.msra.mxu0 0.0
        %4145 = vmatprep.subr.mxu0 0.0
        %4146 = vmatpush2.msra.mxu0 0.0
        %4147 = vmatprep.subr.mxu0 0.0
        %4148 = vmatpush2.msra.mxu0 0.0
        %4149 = vmatprep.subr.mxu0 0.0
        %4150 = vmatpush2.msra.mxu0 0.0
        %4151 = vmatprep.subr.mxu0 0.0
        %4152 = vmatpush2.msra.mxu0 0.0
        %4153 = vmatprep.subr.mxu0 0.0
        %4154 = vmatpush2.msra.mxu0 0.0
        %4155 = vmatprep.subr.mxu0 0.0
        %4156 = vmatpush2.msra.mxu0 0.0
        %4157 = vmatprep.subr.mxu0 0.0
        %4158 = vmatpush2.msra.mxu0 0.0
        %4159 = vmatprep.subr.mxu0 0.0
        %4160 = vmatpush2.msra.mxu0 0.0
        %4161 = vmatprep.mubr.f32.mxu0 0.0
        %v4162 = vand.u32 %v3868, 4294901760
        %v4163 = vsub.f32 %v3868, %v4162
        %v4164 = vand.u32 %v4163, 4294901760
        %4165 = vmatmul.mubr.f32.gmra.mxu0 %v4164
        %v4166 = vpop.f32.mrf.mxu0
        %v4167 = vadd.f32 %v4093, %v4166
        %v4168 = vpop.f32.mrf.mxu0
        %4169 = vdwg.mxu0
        %4170 = vmatprep.subr.mxu0 0.0
        %4171 = vmatpush1.msra.mxu0 0.0
        %4172 = vmatprep.subr.mxu0 0.0
        %4173 = vmatpush1.msra.mxu0 0.0
        %4174 = vmatprep.subr.mxu0 0.0
        %4175 = vmatpush1.msra.mxu0 0.0
        %4176 = vmatprep.subr.mxu0 0.0
        %4177 = vmatpush1.msra.mxu0 0.0
        %4178 = vmatprep.subr.mxu0 0.0
        %4179 = vmatpush1.msra.mxu0 0.0
        %4180 = vmatprep.subr.mxu0 0.0
        %4181 = vmatpush1.msra.mxu0 0.0
        %4182 = vmatprep.subr.mxu0 0.0
        %4183 = vmatpush1.msra.mxu0 0.0
        %4184 = vmatprep.subr.mxu0 0.0
        %4185 = vmatpush1.msra.mxu0 0.0
        %4186 = vmatprep.subr.mxu0 0.0
        %4187 = vmatpush1.msra.mxu0 0.0
        %4188 = vmatprep.subr.mxu0 0.0
        %4189 = vmatpush1.msra.mxu0 0.0
        %4190 = vmatprep.subr.mxu0 0.0
        %4191 = vmatpush1.msra.mxu0 0.0
        %4192 = vmatprep.subr.mxu0 0.0
        %4193 = vmatpush1.msra.mxu0 0.0
        %4194 = vmatprep.subr.mxu0 0.0
        %4195 = vmatpush1.msra.mxu0 0.0
        %4196 = vmatprep.subr.mxu0 0.0
        %4197 = vmatpush1.msra.mxu0 0.0
        %4198 = vmatprep.subr.mxu0 0.0
        %4199 = vmatpush1.msra.mxu0 0.0
        %4200 = vmatprep.subr.mxu0 0.0
        %v4201 = vand.u32 %v3865, 4294901760
        %v4202 = vsub.f32 %v3865, %v4201
        %v4203 = vand.u32 %v4202, 4294901760
        %4204 = vmatpush1.msra.mxu0 %v4203
        %4205 = vmatprep.subr.mxu0 0.0
        %4206 = vmatpush2.msra.mxu0 0.0
        %4207 = vmatprep.subr.mxu0 0.0
        %4208 = vmatpush2.msra.mxu0 0.0
        %4209 = vmatprep.subr.mxu0 0.0
        %4210 = vmatpush2.msra.mxu0 0.0
        %4211 = vmatprep.subr.mxu0 0.0
        %4212 = vmatpush2.msra.mxu0 0.0
        %4213 = vmatprep.subr.mxu0 0.0
        %4214 = vmatpush2.msra.mxu0 0.0
        %4215 = vmatprep.subr.mxu0 0.0
        %4216 = vmatpush2.msra.mxu0 0.0
        %4217 = vmatprep.subr.mxu0 0.0
        %4218 = vmatpush2.msra.mxu0 0.0
        %4219 = vmatprep.subr.mxu0 0.0
        %4220 = vmatpush2.msra.mxu0 0.0
        %4221 = vmatprep.subr.mxu0 0.0
        %4222 = vmatpush2.msra.mxu0 0.0
        %4223 = vmatprep.subr.mxu0 0.0
        %4224 = vmatpush2.msra.mxu0 0.0
        %4225 = vmatprep.subr.mxu0 0.0
        %4226 = vmatpush2.msra.mxu0 0.0
        %4227 = vmatprep.subr.mxu0 0.0
        %4228 = vmatpush2.msra.mxu0 0.0
        %4229 = vmatprep.subr.mxu0 0.0
        %4230 = vmatpush2.msra.mxu0 0.0
        %4231 = vmatprep.subr.mxu0 0.0
        %4232 = vmatpush2.msra.mxu0 0.0
        %4233 = vmatprep.subr.mxu0 0.0
        %4234 = vmatpush2.msra.mxu0 0.0
        %4235 = vmatprep.subr.mxu0 0.0
        %4236 = vmatpush2.msra.mxu0 0.0
        %4237 = vmatprep.mubr.f32.mxu0 0.0
        %v4238 = vand.u32 %v3868, 4294901760
        %4239 = vmatmul.mubr.f32.gmra.mxu0 %v4238
        %v4240 = vpop.f32.mrf.mxu0
        %v4241 = vadd.f32 %v4167, %v4240
        %v4242 = vpop.f32.mrf.mxu0
        %4243 = vdwg.mxu0
        %4244 = vmatprep.subr.mxu0 0.0
        %4245 = vmatpush1.msra.mxu0 0.0
        %4246 = vmatprep.subr.mxu0 0.0
        %4247 = vmatpush1.msra.mxu0 0.0
        %4248 = vmatprep.subr.mxu0 0.0
        %4249 = vmatpush1.msra.mxu0 0.0
        %4250 = vmatprep.subr.mxu0 0.0
        %4251 = vmatpush1.msra.mxu0 0.0
        %4252 = vmatprep.subr.mxu0 0.0
        %4253 = vmatpush1.msra.mxu0 0.0
        %4254 = vmatprep.subr.mxu0 0.0
        %4255 = vmatpush1.msra.mxu0 0.0
        %4256 = vmatprep.subr.mxu0 0.0
        %4257 = vmatpush1.msra.mxu0 0.0
        %4258 = vmatprep.subr.mxu0 0.0
        %4259 = vmatpush1.msra.mxu0 0.0
        %4260 = vmatprep.subr.mxu0 0.0
        %4261 = vmatpush1.msra.mxu0 0.0
        %4262 = vmatprep.subr.mxu0 0.0
        %4263 = vmatpush1.msra.mxu0 0.0
        %4264 = vmatprep.subr.mxu0 0.0
        %4265 = vmatpush1.msra.mxu0 0.0
        %4266 = vmatprep.subr.mxu0 0.0
        %4267 = vmatpush1.msra.mxu0 0.0
        %4268 = vmatprep.subr.mxu0 0.0
        %4269 = vmatpush1.msra.mxu0 0.0
        %4270 = vmatprep.subr.mxu0 0.0
        %4271 = vmatpush1.msra.mxu0 0.0
        %4272 = vmatprep.subr.mxu0 0.0
        %4273 = vmatpush1.msra.mxu0 0.0
        %4274 = vmatprep.subr.mxu0 0.0
        %v4275 = vand.u32 %v3865, 4294901760
        %4276 = vmatpush1.msra.mxu0 %v4275
        %4277 = vmatprep.subr.mxu0 0.0
        %4278 = vmatpush2.msra.mxu0 0.0
        %4279 = vmatprep.subr.mxu0 0.0
        %4280 = vmatpush2.msra.mxu0 0.0
        %4281 = vmatprep.subr.mxu0 0.0
        %4282 = vmatpush2.msra.mxu0 0.0
        %4283 = vmatprep.subr.mxu0 0.0
        %4284 = vmatpush2.msra.mxu0 0.0
        %4285 = vmatprep.subr.mxu0 0.0
        %4286 = vmatpush2.msra.mxu0 0.0
        %4287 = vmatprep.subr.mxu0 0.0
        %4288 = vmatpush2.msra.mxu0 0.0
        %4289 = vmatprep.subr.mxu0 0.0
        %4290 = vmatpush2.msra.mxu0 0.0
        %4291 = vmatprep.subr.mxu0 0.0
        %4292 = vmatpush2.msra.mxu0 0.0
        %4293 = vmatprep.subr.mxu0 0.0
        %4294 = vmatpush2.msra.mxu0 0.0
        %4295 = vmatprep.subr.mxu0 0.0
        %4296 = vmatpush2.msra.mxu0 0.0
        %4297 = vmatprep.subr.mxu0 0.0
        %4298 = vmatpush2.msra.mxu0 0.0
        %4299 = vmatprep.subr.mxu0 0.0
        %4300 = vmatpush2.msra.mxu0 0.0
        %4301 = vmatprep.subr.mxu0 0.0
        %4302 = vmatpush2.msra.mxu0 0.0
        %4303 = vmatprep.subr.mxu0 0.0
        %4304 = vmatpush2.msra.mxu0 0.0
        %4305 = vmatprep.subr.mxu0 0.0
        %4306 = vmatpush2.msra.mxu0 0.0
        %4307 = vmatprep.subr.mxu0 0.0
        %4308 = vmatpush2.msra.mxu0 0.0
        %4309 = vmatprep.mubr.f32.mxu0 0.0
        %v4310 = vand.u32 %v3868, 4294901760
        %4311 = vmatmul.mubr.f32.gmra.mxu0 %v4310
        %v4312 = vpop.f32.mrf.mxu0
        %v4313 = vadd.f32 %v4241, %v4312
        %v4314 = vpop.f32.mrf.mxu0
        %4315 = vdwg.mxu0
        %4316 = vrot.lane.b32.xlu0 %v1555, 80
        %v4317 = vpop.permute.xlu0 %4316
        %4318 = vrot.lane.b32.xlu0 %v1566, 80
        %v4319 = vpop.permute.xlu0 %4318
        %v4320 = vsel %vm1567, %v4317, 0
        %v4322 = vsel %vm1567, %v4319, 0
        %4324 = vmatprep.subr.mxu0 0.0
        %4325 = vmatpush1.xpose.msra.mxu0 0.0
        %4326 = vmatprep.subr.mxu0 0.0
        %4327 = vmatpush1.xpose.msra.mxu0 0.0
        %4328 = vmatprep.subr.mxu0 0.0
        %4329 = vmatpush1.xpose.msra.mxu0 0.0
        %4330 = vmatprep.subr.mxu0 0.0
        %4331 = vmatpush1.xpose.msra.mxu0 0.0
        %4332 = vmatprep.subr.mxu0 0.0
        %4333 = vmatpush1.xpose.msra.mxu0 0.0
        %4334 = vmatprep.subr.mxu0 0.0
        %4335 = vmatpush1.xpose.msra.mxu0 0.0
        %4336 = vmatprep.subr.mxu0 0.0
        %4337 = vmatpush1.xpose.msra.mxu0 0.0
        %4338 = vmatprep.subr.mxu0 0.0
        %4339 = vmatpush1.xpose.msra.mxu0 0.0
        %4340 = vmatprep.subr.mxu0 0.0
        %4341 = vmatpush1.xpose.msra.mxu0 0.0
        %4342 = vmatprep.subr.mxu0 0.0
        %4343 = vmatpush1.xpose.msra.mxu0 0.0
        %4344 = vmatprep.subr.mxu0 0.0
        %4345 = vmatpush1.xpose.msra.mxu0 0.0
        %4346 = vmatprep.subr.mxu0 0.0
        %4347 = vmatpush1.xpose.msra.mxu0 0.0
        %4348 = vmatprep.subr.mxu0 0.0
        %4349 = vmatpush1.xpose.msra.mxu0 0.0
        %4350 = vmatprep.subr.mxu0 0.0
        %4351 = vmatpush1.xpose.msra.mxu0 0.0
        %4352 = vmatprep.subr.mxu0 0.0
        %4353 = vmatpush1.xpose.msra.mxu0 0.0
        %4354 = vmatprep.subr.mxu0 0.0
        %v4355 = vand.u32 %v4322, 4294901760
        %4356 = vmatpush1.xpose.msra.mxu0 %v4355
        %4357 = vmatprep.subr.mxu0 0.0
        %4358 = vmatpush2.xpose.msra.mxu0 0.0
        %4359 = vmatprep.subr.mxu0 0.0
        %4360 = vmatpush2.xpose.msra.mxu0 0.0
        %4361 = vmatprep.subr.mxu0 0.0
        %4362 = vmatpush2.xpose.msra.mxu0 0.0
        %4363 = vmatprep.subr.mxu0 0.0
        %4364 = vmatpush2.xpose.msra.mxu0 0.0
        %4365 = vmatprep.subr.mxu0 0.0
        %4366 = vmatpush2.xpose.msra.mxu0 0.0
        %4367 = vmatprep.subr.mxu0 0.0
        %4368 = vmatpush2.xpose.msra.mxu0 0.0
        %4369 = vmatprep.subr.mxu0 0.0
        %4370 = vmatpush2.xpose.msra.mxu0 0.0
        %4371 = vmatprep.subr.mxu0 0.0
        %4372 = vmatpush2.xpose.msra.mxu0 0.0
        %4373 = vmatprep.subr.mxu0 0.0
        %4374 = vmatpush2.xpose.msra.mxu0 0.0
        %4375 = vmatprep.subr.mxu0 0.0
        %4376 = vmatpush2.xpose.msra.mxu0 0.0
        %4377 = vmatprep.subr.mxu0 0.0
        %4378 = vmatpush2.xpose.msra.mxu0 0.0
        %4379 = vmatprep.subr.mxu0 0.0
        %4380 = vmatpush2.xpose.msra.mxu0 0.0
        %4381 = vmatprep.subr.mxu0 0.0
        %4382 = vmatpush2.xpose.msra.mxu0 0.0
        %4383 = vmatprep.subr.mxu0 0.0
        %4384 = vmatpush2.xpose.msra.mxu0 0.0
        %4385 = vmatprep.subr.mxu0 0.0
        %4386 = vmatpush2.xpose.msra.mxu0 0.0
        %4387 = vmatprep.subr.mxu0 0.0
        %4388 = vmatpush2.xpose.msra.mxu0 0.0
        %4389 = vmatprep.mubr.f32.mxu0 0.0
        %v4390 = vand.u32 %v4320, 4294901760
        %v4391 = vsub.f32 %v4320, %v4390
        %v4392 = vand.u32 %v4391, 4294901760
        %v4393 = vsub.f32 %v4391, %v4392
        %v4394 = vand.u32 %v4393, 4294901760
        %4395 = vmatmul.mubr.f32.gmra.mxu0 %v4394
        %v4396 = vpop.f32.mrf.mxu0
        %v4397 = vadd.f32 0.0, %v4396
        %v4398 = vpop.f32.mrf.mxu0
        %4399 = vdwg.mxu0
        %4400 = vmatprep.subr.mxu0 0.0
        %4401 = vmatpush1.xpose.msra.mxu0 0.0
        %4402 = vmatprep.subr.mxu0 0.0
        %4403 = vmatpush1.xpose.msra.mxu0 0.0
        %4404 = vmatprep.subr.mxu0 0.0
        %4405 = vmatpush1.xpose.msra.mxu0 0.0
        %4406 = vmatprep.subr.mxu0 0.0
        %4407 = vmatpush1.xpose.msra.mxu0 0.0
        %4408 = vmatprep.subr.mxu0 0.0
        %4409 = vmatpush1.xpose.msra.mxu0 0.0
        %4410 = vmatprep.subr.mxu0 0.0
        %4411 = vmatpush1.xpose.msra.mxu0 0.0
        %4412 = vmatprep.subr.mxu0 0.0
        %4413 = vmatpush1.xpose.msra.mxu0 0.0
        %4414 = vmatprep.subr.mxu0 0.0
        %4415 = vmatpush1.xpose.msra.mxu0 0.0
        %4416 = vmatprep.subr.mxu0 0.0
        %4417 = vmatpush1.xpose.msra.mxu0 0.0
        %4418 = vmatprep.subr.mxu0 0.0
        %4419 = vmatpush1.xpose.msra.mxu0 0.0
        %4420 = vmatprep.subr.mxu0 0.0
        %4421 = vmatpush1.xpose.msra.mxu0 0.0
        %4422 = vmatprep.subr.mxu0 0.0
        %4423 = vmatpush1.xpose.msra.mxu0 0.0
        %4424 = vmatprep.subr.mxu0 0.0
        %4425 = vmatpush1.xpose.msra.mxu0 0.0
        %4426 = vmatprep.subr.mxu0 0.0
        %4427 = vmatpush1.xpose.msra.mxu0 0.0
        %4428 = vmatprep.subr.mxu0 0.0
        %4429 = vmatpush1.xpose.msra.mxu0 0.0
        %4430 = vmatprep.subr.mxu0 0.0
        %v4431 = vand.u32 %v4322, 4294901760
        %v4432 = vsub.f32 %v4322, %v4431
        %v4433 = vand.u32 %v4432, 4294901760
        %v4434 = vsub.f32 %v4432, %v4433
        %v4435 = vand.u32 %v4434, 4294901760
        %4436 = vmatpush1.xpose.msra.mxu0 %v4435
        %4437 = vmatprep.subr.mxu0 0.0
        %4438 = vmatpush2.xpose.msra.mxu0 0.0
        %4439 = vmatprep.subr.mxu0 0.0
        %4440 = vmatpush2.xpose.msra.mxu0 0.0
        %4441 = vmatprep.subr.mxu0 0.0
        %4442 = vmatpush2.xpose.msra.mxu0 0.0
        %4443 = vmatprep.subr.mxu0 0.0
        %4444 = vmatpush2.xpose.msra.mxu0 0.0
        %4445 = vmatprep.subr.mxu0 0.0
        %4446 = vmatpush2.xpose.msra.mxu0 0.0
        %4447 = vmatprep.subr.mxu0 0.0
        %4448 = vmatpush2.xpose.msra.mxu0 0.0
        %4449 = vmatprep.subr.mxu0 0.0
        %4450 = vmatpush2.xpose.msra.mxu0 0.0
        %4451 = vmatprep.subr.mxu0 0.0
        %4452 = vmatpush2.xpose.msra.mxu0 0.0
        %4453 = vmatprep.subr.mxu0 0.0
        %4454 = vmatpush2.xpose.msra.mxu0 0.0
        %4455 = vmatprep.subr.mxu0 0.0
        %4456 = vmatpush2.xpose.msra.mxu0 0.0
        %4457 = vmatprep.subr.mxu0 0.0
        %4458 = vmatpush2.xpose.msra.mxu0 0.0
        %4459 = vmatprep.subr.mxu0 0.0
        %4460 = vmatpush2.xpose.msra.mxu0 0.0
        %4461 = vmatprep.subr.mxu0 0.0
        %4462 = vmatpush2.xpose.msra.mxu0 0.0
        %4463 = vmatprep.subr.mxu0 0.0
        %4464 = vmatpush2.xpose.msra.mxu0 0.0
        %4465 = vmatprep.subr.mxu0 0.0
        %4466 = vmatpush2.xpose.msra.mxu0 0.0
        %4467 = vmatprep.subr.mxu0 0.0
        %4468 = vmatpush2.xpose.msra.mxu0 0.0
        %4469 = vmatprep.mubr.f32.mxu0 0.0
        %v4470 = vand.u32 %v4320, 4294901760
        %4471 = vmatmul.mubr.f32.gmra.mxu0 %v4470
        %v4472 = vpop.f32.mrf.mxu0
        %v4473 = vadd.f32 %v4397, %v4472
        %v4474 = vpop.f32.mrf.mxu0
        %4475 = vdwg.mxu0
        %4476 = vmatprep.subr.mxu0 0.0
        %4477 = vmatpush1.xpose.msra.mxu0 0.0
        %4478 = vmatprep.subr.mxu0 0.0
        %4479 = vmatpush1.xpose.msra.mxu0 0.0
        %4480 = vmatprep.subr.mxu0 0.0
        %4481 = vmatpush1.xpose.msra.mxu0 0.0
        %4482 = vmatprep.subr.mxu0 0.0
        %4483 = vmatpush1.xpose.msra.mxu0 0.0
        %4484 = vmatprep.subr.mxu0 0.0
        %4485 = vmatpush1.xpose.msra.mxu0 0.0
        %4486 = vmatprep.subr.mxu0 0.0
        %4487 = vmatpush1.xpose.msra.mxu0 0.0
        %4488 = vmatprep.subr.mxu0 0.0
        %4489 = vmatpush1.xpose.msra.mxu0 0.0
        %4490 = vmatprep.subr.mxu0 0.0
        %4491 = vmatpush1.xpose.msra.mxu0 0.0
        %4492 = vmatprep.subr.mxu0 0.0
        %4493 = vmatpush1.xpose.msra.mxu0 0.0
        %4494 = vmatprep.subr.mxu0 0.0
        %4495 = vmatpush1.xpose.msra.mxu0 0.0
        %4496 = vmatprep.subr.mxu0 0.0
        %4497 = vmatpush1.xpose.msra.mxu0 0.0
        %4498 = vmatprep.subr.mxu0 0.0
        %4499 = vmatpush1.xpose.msra.mxu0 0.0
        %4500 = vmatprep.subr.mxu0 0.0
        %4501 = vmatpush1.xpose.msra.mxu0 0.0
        %4502 = vmatprep.subr.mxu0 0.0
        %4503 = vmatpush1.xpose.msra.mxu0 0.0
        %4504 = vmatprep.subr.mxu0 0.0
        %4505 = vmatpush1.xpose.msra.mxu0 0.0
        %4506 = vmatprep.subr.mxu0 0.0
        %v4507 = vand.u32 %v4322, 4294901760
        %v4508 = vsub.f32 %v4322, %v4507
        %4509 = vmatpush1.xpose.msra.mxu0 %v4508
        %4510 = vmatprep.subr.mxu0 0.0
        %4511 = vmatpush2.xpose.msra.mxu0 0.0
        %4512 = vmatprep.subr.mxu0 0.0
        %4513 = vmatpush2.xpose.msra.mxu0 0.0
        %4514 = vmatprep.subr.mxu0 0.0
        %4515 = vmatpush2.xpose.msra.mxu0 0.0
        %4516 = vmatprep.subr.mxu0 0.0
        %4517 = vmatpush2.xpose.msra.mxu0 0.0
        %4518 = vmatprep.subr.mxu0 0.0
        %4519 = vmatpush2.xpose.msra.mxu0 0.0
        %4520 = vmatprep.subr.mxu0 0.0
        %4521 = vmatpush2.xpose.msra.mxu0 0.0
        %4522 = vmatprep.subr.mxu0 0.0
        %4523 = vmatpush2.xpose.msra.mxu0 0.0
        %4524 = vmatprep.subr.mxu0 0.0
        %4525 = vmatpush2.xpose.msra.mxu0 0.0
        %4526 = vmatprep.subr.mxu0 0.0
        %4527 = vmatpush2.xpose.msra.mxu0 0.0
        %4528 = vmatprep.subr.mxu0 0.0
        %4529 = vmatpush2.xpose.msra.mxu0 0.0
        %4530 = vmatprep.subr.mxu0 0.0
        %4531 = vmatpush2.xpose.msra.mxu0 0.0
        %4532 = vmatprep.subr.mxu0 0.0
        %4533 = vmatpush2.xpose.msra.mxu0 0.0
        %4534 = vmatprep.subr.mxu0 0.0
        %4535 = vmatpush2.xpose.msra.mxu0 0.0
        %4536 = vmatprep.subr.mxu0 0.0
        %4537 = vmatpush2.xpose.msra.mxu0 0.0
        %4538 = vmatprep.subr.mxu0 0.0
        %4539 = vmatpush2.xpose.msra.mxu0 0.0
        %4540 = vmatprep.subr.mxu0 0.0
        %4541 = vmatpush2.xpose.msra.mxu0 0.0
        %4542 = vmatprep.mubr.f32.mxu0 0.0
        %v4543 = vand.u32 %v4320, 4294901760
        %v4544 = vsub.f32 %v4320, %v4543
        %4545 = vmatmul.mubr.f32.gmra.mxu0 %v4544
        %v4546 = vpop.f32.mrf.mxu0
        %v4547 = vadd.f32 %v4473, %v4546
        %v4548 = vpop.f32.mrf.mxu0
        %4549 = vdwg.mxu0
        %4550 = vmatprep.subr.mxu0 0.0
        %4551 = vmatpush1.xpose.msra.mxu0 0.0
        %4552 = vmatprep.subr.mxu0 0.0
        %4553 = vmatpush1.xpose.msra.mxu0 0.0
        %4554 = vmatprep.subr.mxu0 0.0
        %4555 = vmatpush1.xpose.msra.mxu0 0.0
        %4556 = vmatprep.subr.mxu0 0.0
        %4557 = vmatpush1.xpose.msra.mxu0 0.0
        %4558 = vmatprep.subr.mxu0 0.0
        %4559 = vmatpush1.xpose.msra.mxu0 0.0
        %4560 = vmatprep.subr.mxu0 0.0
        %4561 = vmatpush1.xpose.msra.mxu0 0.0
        %4562 = vmatprep.subr.mxu0 0.0
        %4563 = vmatpush1.xpose.msra.mxu0 0.0
        %4564 = vmatprep.subr.mxu0 0.0
        %4565 = vmatpush1.xpose.msra.mxu0 0.0
        %4566 = vmatprep.subr.mxu0 0.0
        %4567 = vmatpush1.xpose.msra.mxu0 0.0
        %4568 = vmatprep.subr.mxu0 0.0
        %4569 = vmatpush1.xpose.msra.mxu0 0.0
        %4570 = vmatprep.subr.mxu0 0.0
        %4571 = vmatpush1.xpose.msra.mxu0 0.0
        %4572 = vmatprep.subr.mxu0 0.0
        %4573 = vmatpush1.xpose.msra.mxu0 0.0
        %4574 = vmatprep.subr.mxu0 0.0
        %4575 = vmatpush1.xpose.msra.mxu0 0.0
        %4576 = vmatprep.subr.mxu0 0.0
        %4577 = vmatpush1.xpose.msra.mxu0 0.0
        %4578 = vmatprep.subr.mxu0 0.0
        %4579 = vmatpush1.xpose.msra.mxu0 0.0
        %4580 = vmatprep.subr.mxu0 0.0
        %v4581 = vand.u32 %v4322, 4294901760
        %4582 = vmatpush1.xpose.msra.mxu0 %v4581
        %4583 = vmatprep.subr.mxu0 0.0
        %4584 = vmatpush2.xpose.msra.mxu0 0.0
        %4585 = vmatprep.subr.mxu0 0.0
        %4586 = vmatpush2.xpose.msra.mxu0 0.0
        %4587 = vmatprep.subr.mxu0 0.0
        %4588 = vmatpush2.xpose.msra.mxu0 0.0
        %4589 = vmatprep.subr.mxu0 0.0
        %4590 = vmatpush2.xpose.msra.mxu0 0.0
        %4591 = vmatprep.subr.mxu0 0.0
        %4592 = vmatpush2.xpose.msra.mxu0 0.0
        %4593 = vmatprep.subr.mxu0 0.0
        %4594 = vmatpush2.xpose.msra.mxu0 0.0
        %4595 = vmatprep.subr.mxu0 0.0
        %4596 = vmatpush2.xpose.msra.mxu0 0.0
        %4597 = vmatprep.subr.mxu0 0.0
        %4598 = vmatpush2.xpose.msra.mxu0 0.0
        %4599 = vmatprep.subr.mxu0 0.0
        %4600 = vmatpush2.xpose.msra.mxu0 0.0
        %4601 = vmatprep.subr.mxu0 0.0
        %4602 = vmatpush2.xpose.msra.mxu0 0.0
        %4603 = vmatprep.subr.mxu0 0.0
        %4604 = vmatpush2.xpose.msra.mxu0 0.0
        %4605 = vmatprep.subr.mxu0 0.0
        %4606 = vmatpush2.xpose.msra.mxu0 0.0
        %4607 = vmatprep.subr.mxu0 0.0
        %4608 = vmatpush2.xpose.msra.mxu0 0.0
        %4609 = vmatprep.subr.mxu0 0.0
        %4610 = vmatpush2.xpose.msra.mxu0 0.0
        %4611 = vmatprep.subr.mxu0 0.0
        %4612 = vmatpush2.xpose.msra.mxu0 0.0
        %4613 = vmatprep.subr.mxu0 0.0
        %4614 = vmatpush2.xpose.msra.mxu0 0.0
        %4615 = vmatprep.mubr.f32.mxu0 0.0
        %v4616 = vand.u32 %v4320, 4294901760
        %v4617 = vsub.f32 %v4320, %v4616
        %v4618 = vand.u32 %v4617, 4294901760
        %4619 = vmatmul.mubr.f32.gmra.mxu0 %v4618
        %v4620 = vpop.f32.mrf.mxu0
        %v4621 = vadd.f32 %v4547, %v4620
        %v4622 = vpop.f32.mrf.mxu0
        %4623 = vdwg.mxu0
        %4624 = vmatprep.subr.mxu0 0.0
        %4625 = vmatpush1.xpose.msra.mxu0 0.0
        %4626 = vmatprep.subr.mxu0 0.0
        %4627 = vmatpush1.xpose.msra.mxu0 0.0
        %4628 = vmatprep.subr.mxu0 0.0
        %4629 = vmatpush1.xpose.msra.mxu0 0.0
        %4630 = vmatprep.subr.mxu0 0.0
        %4631 = vmatpush1.xpose.msra.mxu0 0.0
        %4632 = vmatprep.subr.mxu0 0.0
        %4633 = vmatpush1.xpose.msra.mxu0 0.0
        %4634 = vmatprep.subr.mxu0 0.0
        %4635 = vmatpush1.xpose.msra.mxu0 0.0
        %4636 = vmatprep.subr.mxu0 0.0
        %4637 = vmatpush1.xpose.msra.mxu0 0.0
        %4638 = vmatprep.subr.mxu0 0.0
        %4639 = vmatpush1.xpose.msra.mxu0 0.0
        %4640 = vmatprep.subr.mxu0 0.0
        %4641 = vmatpush1.xpose.msra.mxu0 0.0
        %4642 = vmatprep.subr.mxu0 0.0
        %4643 = vmatpush1.xpose.msra.mxu0 0.0
        %4644 = vmatprep.subr.mxu0 0.0
        %4645 = vmatpush1.xpose.msra.mxu0 0.0
        %4646 = vmatprep.subr.mxu0 0.0
        %4647 = vmatpush1.xpose.msra.mxu0 0.0
        %4648 = vmatprep.subr.mxu0 0.0
        %4649 = vmatpush1.xpose.msra.mxu0 0.0
        %4650 = vmatprep.subr.mxu0 0.0
        %4651 = vmatpush1.xpose.msra.mxu0 0.0
        %4652 = vmatprep.subr.mxu0 0.0
        %4653 = vmatpush1.xpose.msra.mxu0 0.0
        %4654 = vmatprep.subr.mxu0 0.0
        %v4655 = vand.u32 %v4322, 4294901760
        %v4656 = vsub.f32 %v4322, %v4655
        %v4657 = vand.u32 %v4656, 4294901760
        %4658 = vmatpush1.xpose.msra.mxu0 %v4657
        %4659 = vmatprep.subr.mxu0 0.0
        %4660 = vmatpush2.xpose.msra.mxu0 0.0
        %4661 = vmatprep.subr.mxu0 0.0
        %4662 = vmatpush2.xpose.msra.mxu0 0.0
        %4663 = vmatprep.subr.mxu0 0.0
        %4664 = vmatpush2.xpose.msra.mxu0 0.0
        %4665 = vmatprep.subr.mxu0 0.0
        %4666 = vmatpush2.xpose.msra.mxu0 0.0
        %4667 = vmatprep.subr.mxu0 0.0
        %4668 = vmatpush2.xpose.msra.mxu0 0.0
        %4669 = vmatprep.subr.mxu0 0.0
        %4670 = vmatpush2.xpose.msra.mxu0 0.0
        %4671 = vmatprep.subr.mxu0 0.0
        %4672 = vmatpush2.xpose.msra.mxu0 0.0
        %4673 = vmatprep.subr.mxu0 0.0
        %4674 = vmatpush2.xpose.msra.mxu0 0.0
        %4675 = vmatprep.subr.mxu0 0.0
        %4676 = vmatpush2.xpose.msra.mxu0 0.0
        %4677 = vmatprep.subr.mxu0 0.0
        %4678 = vmatpush2.xpose.msra.mxu0 0.0
        %4679 = vmatprep.subr.mxu0 0.0
        %4680 = vmatpush2.xpose.msra.mxu0 0.0
        %4681 = vmatprep.subr.mxu0 0.0
        %4682 = vmatpush2.xpose.msra.mxu0 0.0
        %4683 = vmatprep.subr.mxu0 0.0
        %4684 = vmatpush2.xpose.msra.mxu0 0.0
        %4685 = vmatprep.subr.mxu0 0.0
        %4686 = vmatpush2.xpose.msra.mxu0 0.0
        %4687 = vmatprep.subr.mxu0 0.0
        %4688 = vmatpush2.xpose.msra.mxu0 0.0
        %4689 = vmatprep.subr.mxu0 0.0
        %4690 = vmatpush2.xpose.msra.mxu0 0.0
        %4691 = vmatprep.mubr.f32.mxu0 0.0
        %v4692 = vand.u32 %v4320, 4294901760
        %4693 = vmatmul.mubr.f32.gmra.mxu0 %v4692
        %v4694 = vpop.f32.mrf.mxu0
        %v4695 = vadd.f32 %v4621, %v4694
        %v4696 = vpop.f32.mrf.mxu0
        %4697 = vdwg.mxu0
        %4698 = vmatprep.subr.mxu0 0.0
        %4699 = vmatpush1.xpose.msra.mxu0 0.0
        %4700 = vmatprep.subr.mxu0 0.0
        %4701 = vmatpush1.xpose.msra.mxu0 0.0
        %4702 = vmatprep.subr.mxu0 0.0
        %4703 = vmatpush1.xpose.msra.mxu0 0.0
        %4704 = vmatprep.subr.mxu0 0.0
        %4705 = vmatpush1.xpose.msra.mxu0 0.0
        %4706 = vmatprep.subr.mxu0 0.0
        %4707 = vmatpush1.xpose.msra.mxu0 0.0
        %4708 = vmatprep.subr.mxu0 0.0
        %4709 = vmatpush1.xpose.msra.mxu0 0.0
        %4710 = vmatprep.subr.mxu0 0.0
        %4711 = vmatpush1.xpose.msra.mxu0 0.0
        %4712 = vmatprep.subr.mxu0 0.0
        %4713 = vmatpush1.xpose.msra.mxu0 0.0
        %4714 = vmatprep.subr.mxu0 0.0
        %4715 = vmatpush1.xpose.msra.mxu0 0.0
        %4716 = vmatprep.subr.mxu0 0.0
        %4717 = vmatpush1.xpose.msra.mxu0 0.0
        %4718 = vmatprep.subr.mxu0 0.0
        %4719 = vmatpush1.xpose.msra.mxu0 0.0
        %4720 = vmatprep.subr.mxu0 0.0
        %4721 = vmatpush1.xpose.msra.mxu0 0.0
        %4722 = vmatprep.subr.mxu0 0.0
        %4723 = vmatpush1.xpose.msra.mxu0 0.0
        %4724 = vmatprep.subr.mxu0 0.0
        %4725 = vmatpush1.xpose.msra.mxu0 0.0
        %4726 = vmatprep.subr.mxu0 0.0
        %4727 = vmatpush1.xpose.msra.mxu0 0.0
        %4728 = vmatprep.subr.mxu0 0.0
        %v4729 = vand.u32 %v4322, 4294901760
        %4730 = vmatpush1.xpose.msra.mxu0 %v4729
        %4731 = vmatprep.subr.mxu0 0.0
        %4732 = vmatpush2.xpose.msra.mxu0 0.0
        %4733 = vmatprep.subr.mxu0 0.0
        %4734 = vmatpush2.xpose.msra.mxu0 0.0
        %4735 = vmatprep.subr.mxu0 0.0
        %4736 = vmatpush2.xpose.msra.mxu0 0.0
        %4737 = vmatprep.subr.mxu0 0.0
        %4738 = vmatpush2.xpose.msra.mxu0 0.0
        %4739 = vmatprep.subr.mxu0 0.0
        %4740 = vmatpush2.xpose.msra.mxu0 0.0
        %4741 = vmatprep.subr.mxu0 0.0
        %4742 = vmatpush2.xpose.msra.mxu0 0.0
        %4743 = vmatprep.subr.mxu0 0.0
        %4744 = vmatpush2.xpose.msra.mxu0 0.0
        %4745 = vmatprep.subr.mxu0 0.0
        %4746 = vmatpush2.xpose.msra.mxu0 0.0
        %4747 = vmatprep.subr.mxu0 0.0
        %4748 = vmatpush2.xpose.msra.mxu0 0.0
        %4749 = vmatprep.subr.mxu0 0.0
        %4750 = vmatpush2.xpose.msra.mxu0 0.0
        %4751 = vmatprep.subr.mxu0 0.0
        %4752 = vmatpush2.xpose.msra.mxu0 0.0
        %4753 = vmatprep.subr.mxu0 0.0
        %4754 = vmatpush2.xpose.msra.mxu0 0.0
        %4755 = vmatprep.subr.mxu0 0.0
        %4756 = vmatpush2.xpose.msra.mxu0 0.0
        %4757 = vmatprep.subr.mxu0 0.0
        %4758 = vmatpush2.xpose.msra.mxu0 0.0
        %4759 = vmatprep.subr.mxu0 0.0
        %4760 = vmatpush2.xpose.msra.mxu0 0.0
        %4761 = vmatprep.subr.mxu0 0.0
        %4762 = vmatpush2.xpose.msra.mxu0 0.0
        %4763 = vmatprep.mubr.f32.mxu0 0.0
        %v4764 = vand.u32 %v4320, 4294901760
        %4765 = vmatmul.mubr.f32.gmra.mxu0 %v4764
        %v4766 = vpop.f32.mrf.mxu0
        %v4767 = vadd.f32 %v4695, %v4766
        %v4768 = vpop.f32.mrf.mxu0
        %4769 = vdwg.mxu0
        %v4770 = vsel %vm2020, %v4767, -inf
        %4771 = vmax.xlane.f32.xlu0 %v4770
        %v4772 = vpop.xlane.xlu0 %4771
        %v4773 = vsub.f32 %v4767, %v4772
        %v4774 = vmul.f32 %v4773, 1.442695
        %v4775 = vpow.pop %v4774
        %v4776 = vsel %vm2020, %v4775, 0.0
        %4777 = vadd.xlane.f32.xlu0 %v4776
        %v4778 = vpop.xlane.xlu0 %4777
        %v4779 = vrcp.pop %v4778
        %v4780 = vmul.f32 %v4775, %v4779
        %4781 = vrot.lane.b32.xlu0 %v1538, 80
        %v4782 = vpop.permute.xlu0 %4781
        %v4785 = vsel %vm2020, %v4780, 0
        %4787 = vmatprep.subr.mxu0 0.0
        %4788 = vmatpush1.msra.mxu0 0.0
        %4789 = vmatprep.subr.mxu0 0.0
        %4790 = vmatpush1.msra.mxu0 0.0
        %4791 = vmatprep.subr.mxu0 0.0
        %4792 = vmatpush1.msra.mxu0 0.0
        %4793 = vmatprep.subr.mxu0 0.0
        %4794 = vmatpush1.msra.mxu0 0.0
        %4795 = vmatprep.subr.mxu0 0.0
        %4796 = vmatpush1.msra.mxu0 0.0
        %4797 = vmatprep.subr.mxu0 0.0
        %4798 = vmatpush1.msra.mxu0 0.0
        %4799 = vmatprep.subr.mxu0 0.0
        %4800 = vmatpush1.msra.mxu0 0.0
        %4801 = vmatprep.subr.mxu0 0.0
        %4802 = vmatpush1.msra.mxu0 0.0
        %4803 = vmatprep.subr.mxu0 0.0
        %4804 = vmatpush1.msra.mxu0 0.0
        %4805 = vmatprep.subr.mxu0 0.0
        %4806 = vmatpush1.msra.mxu0 0.0
        %4807 = vmatprep.subr.mxu0 0.0
        %4808 = vmatpush1.msra.mxu0 0.0
        %4809 = vmatprep.subr.mxu0 0.0
        %4810 = vmatpush1.msra.mxu0 0.0
        %4811 = vmatprep.subr.mxu0 0.0
        %4812 = vmatpush1.msra.mxu0 0.0
        %4813 = vmatprep.subr.mxu0 0.0
        %4814 = vmatpush1.msra.mxu0 0.0
        %4815 = vmatprep.subr.mxu0 0.0
        %4816 = vmatpush1.msra.mxu0 0.0
        %4817 = vmatprep.subr.mxu0 0.0
        %v4818 = vand.u32 %v4782, 4294901760
        %4819 = vmatpush1.msra.mxu0 %v4818
        %4820 = vmatprep.subr.mxu0 0.0
        %4821 = vmatpush2.msra.mxu0 0.0
        %4822 = vmatprep.subr.mxu0 0.0
        %4823 = vmatpush2.msra.mxu0 0.0
        %4824 = vmatprep.subr.mxu0 0.0
        %4825 = vmatpush2.msra.mxu0 0.0
        %4826 = vmatprep.subr.mxu0 0.0
        %4827 = vmatpush2.msra.mxu0 0.0
        %4828 = vmatprep.subr.mxu0 0.0
        %4829 = vmatpush2.msra.mxu0 0.0
        %4830 = vmatprep.subr.mxu0 0.0
        %4831 = vmatpush2.msra.mxu0 0.0
        %4832 = vmatprep.subr.mxu0 0.0
        %4833 = vmatpush2.msra.mxu0 0.0
        %4834 = vmatprep.subr.mxu0 0.0
        %4835 = vmatpush2.msra.mxu0 0.0
        %4836 = vmatprep.subr.mxu0 0.0
        %4837 = vmatpush2.msra.mxu0 0.0
        %4838 = vmatprep.subr.mxu0 0.0
        %4839 = vmatpush2.msra.mxu0 0.0
        %4840 = vmatprep.subr.mxu0 0.0
        %4841 = vmatpush2.msra.mxu0 0.0
        %4842 = vmatprep.subr.mxu0 0.0
        %4843 = vmatpush2.msra.mxu0 0.0
        %4844 = vmatprep.subr.mxu0 0.0
        %4845 = vmatpush2.msra.mxu0 0.0
        %4846 = vmatprep.subr.mxu0 0.0
        %4847 = vmatpush2.msra.mxu0 0.0
        %4848 = vmatprep.subr.mxu0 0.0
        %4849 = vmatpush2.msra.mxu0 0.0
        %4850 = vmatprep.subr.mxu0 0.0
        %4851 = vmatpush2.msra.mxu0 0.0
        %4852 = vmatprep.mubr.f32.mxu0 0.0
        %v4853 = vand.u32 %v4785, 4294901760
        %v4854 = vsub.f32 %v4785, %v4853
        %v4855 = vand.u32 %v4854, 4294901760
        %v4856 = vsub.f32 %v4854, %v4855
        %v4857 = vand.u32 %v4856, 4294901760
        %4858 = vmatmul.mubr.f32.gmra.mxu0 %v4857
        %v4859 = vpop.f32.mrf.mxu0
        %v4860 = vadd.f32 0.0, %v4859
        %v4861 = vpop.f32.mrf.mxu0
        %4862 = vdwg.mxu0
        %4863 = vmatprep.subr.mxu0 0.0
        %4864 = vmatpush1.msra.mxu0 0.0
        %4865 = vmatprep.subr.mxu0 0.0
        %4866 = vmatpush1.msra.mxu0 0.0
        %4867 = vmatprep.subr.mxu0 0.0
        %4868 = vmatpush1.msra.mxu0 0.0
        %4869 = vmatprep.subr.mxu0 0.0
        %4870 = vmatpush1.msra.mxu0 0.0
        %4871 = vmatprep.subr.mxu0 0.0
        %4872 = vmatpush1.msra.mxu0 0.0
        %4873 = vmatprep.subr.mxu0 0.0
        %4874 = vmatpush1.msra.mxu0 0.0
        %4875 = vmatprep.subr.mxu0 0.0
        %4876 = vmatpush1.msra.mxu0 0.0
        %4877 = vmatprep.subr.mxu0 0.0
        %4878 = vmatpush1.msra.mxu0 0.0
        %4879 = vmatprep.subr.mxu0 0.0
        %4880 = vmatpush1.msra.mxu0 0.0
        %4881 = vmatprep.subr.mxu0 0.0
        %4882 = vmatpush1.msra.mxu0 0.0
        %4883 = vmatprep.subr.mxu0 0.0
        %4884 = vmatpush1.msra.mxu0 0.0
        %4885 = vmatprep.subr.mxu0 0.0
        %4886 = vmatpush1.msra.mxu0 0.0
        %4887 = vmatprep.subr.mxu0 0.0
        %4888 = vmatpush1.msra.mxu0 0.0
        %4889 = vmatprep.subr.mxu0 0.0
        %4890 = vmatpush1.msra.mxu0 0.0
        %4891 = vmatprep.subr.mxu0 0.0
        %4892 = vmatpush1.msra.mxu0 0.0
        %4893 = vmatprep.subr.mxu0 0.0
        %v4894 = vand.u32 %v4782, 4294901760
        %v4895 = vsub.f32 %v4782, %v4894
        %v4896 = vand.u32 %v4895, 4294901760
        %v4897 = vsub.f32 %v4895, %v4896
        %v4898 = vand.u32 %v4897, 4294901760
        %4899 = vmatpush1.msra.mxu0 %v4898
        %4900 = vmatprep.subr.mxu0 0.0
        %4901 = vmatpush2.msra.mxu0 0.0
        %4902 = vmatprep.subr.mxu0 0.0
        %4903 = vmatpush2.msra.mxu0 0.0
        %4904 = vmatprep.subr.mxu0 0.0
        %4905 = vmatpush2.msra.mxu0 0.0
        %4906 = vmatprep.subr.mxu0 0.0
        %4907 = vmatpush2.msra.mxu0 0.0
        %4908 = vmatprep.subr.mxu0 0.0
        %4909 = vmatpush2.msra.mxu0 0.0
        %4910 = vmatprep.subr.mxu0 0.0
        %4911 = vmatpush2.msra.mxu0 0.0
        %4912 = vmatprep.subr.mxu0 0.0
        %4913 = vmatpush2.msra.mxu0 0.0
        %4914 = vmatprep.subr.mxu0 0.0
        %4915 = vmatpush2.msra.mxu0 0.0
        %4916 = vmatprep.subr.mxu0 0.0
        %4917 = vmatpush2.msra.mxu0 0.0
        %4918 = vmatprep.subr.mxu0 0.0
        %4919 = vmatpush2.msra.mxu0 0.0
        %4920 = vmatprep.subr.mxu0 0.0
        %4921 = vmatpush2.msra.mxu0 0.0
        %4922 = vmatprep.subr.mxu0 0.0
        %4923 = vmatpush2.msra.mxu0 0.0
        %4924 = vmatprep.subr.mxu0 0.0
        %4925 = vmatpush2.msra.mxu0 0.0
        %4926 = vmatprep.subr.mxu0 0.0
        %4927 = vmatpush2.msra.mxu0 0.0
        %4928 = vmatprep.subr.mxu0 0.0
        %4929 = vmatpush2.msra.mxu0 0.0
        %4930 = vmatprep.subr.mxu0 0.0
        %4931 = vmatpush2.msra.mxu0 0.0
        %4932 = vmatprep.mubr.f32.mxu0 0.0
        %v4933 = vand.u32 %v4785, 4294901760
        %4934 = vmatmul.mubr.f32.gmra.mxu0 %v4933
        %v4935 = vpop.f32.mrf.mxu0
        %v4936 = vadd.f32 %v4860, %v4935
        %v4937 = vpop.f32.mrf.mxu0
        %4938 = vdwg.mxu0
        %4939 = vmatprep.subr.mxu0 0.0
        %4940 = vmatpush1.msra.mxu0 0.0
        %4941 = vmatprep.subr.mxu0 0.0
        %4942 = vmatpush1.msra.mxu0 0.0
        %4943 = vmatprep.subr.mxu0 0.0
        %4944 = vmatpush1.msra.mxu0 0.0
        %4945 = vmatprep.subr.mxu0 0.0
        %4946 = vmatpush1.msra.mxu0 0.0
        %4947 = vmatprep.subr.mxu0 0.0
        %4948 = vmatpush1.msra.mxu0 0.0
        %4949 = vmatprep.subr.mxu0 0.0
        %4950 = vmatpush1.msra.mxu0 0.0
        %4951 = vmatprep.subr.mxu0 0.0
        %4952 = vmatpush1.msra.mxu0 0.0
        %4953 = vmatprep.subr.mxu0 0.0
        %4954 = vmatpush1.msra.mxu0 0.0
        %4955 = vmatprep.subr.mxu0 0.0
        %4956 = vmatpush1.msra.mxu0 0.0
        %4957 = vmatprep.subr.mxu0 0.0
        %4958 = vmatpush1.msra.mxu0 0.0
        %4959 = vmatprep.subr.mxu0 0.0
        %4960 = vmatpush1.msra.mxu0 0.0
        %4961 = vmatprep.subr.mxu0 0.0
        %4962 = vmatpush1.msra.mxu0 0.0
        %4963 = vmatprep.subr.mxu0 0.0
        %4964 = vmatpush1.msra.mxu0 0.0
        %4965 = vmatprep.subr.mxu0 0.0
        %4966 = vmatpush1.msra.mxu0 0.0
        %4967 = vmatprep.subr.mxu0 0.0
        %4968 = vmatpush1.msra.mxu0 0.0
        %4969 = vmatprep.subr.mxu0 0.0
        %v4970 = vand.u32 %v4782, 4294901760
        %v4971 = vsub.f32 %v4782, %v4970
        %4972 = vmatpush1.msra.mxu0 %v4971
        %4973 = vmatprep.subr.mxu0 0.0
        %4974 = vmatpush2.msra.mxu0 0.0
        %4975 = vmatprep.subr.mxu0 0.0
        %4976 = vmatpush2.msra.mxu0 0.0
        %4977 = vmatprep.subr.mxu0 0.0
        %4978 = vmatpush2.msra.mxu0 0.0
        %4979 = vmatprep.subr.mxu0 0.0
        %4980 = vmatpush2.msra.mxu0 0.0
        %4981 = vmatprep.subr.mxu0 0.0
        %4982 = vmatpush2.msra.mxu0 0.0
        %4983 = vmatprep.subr.mxu0 0.0
        %4984 = vmatpush2.msra.mxu0 0.0
        %4985 = vmatprep.subr.mxu0 0.0
        %4986 = vmatpush2.msra.mxu0 0.0
        %4987 = vmatprep.subr.mxu0 0.0
        %4988 = vmatpush2.msra.mxu0 0.0
        %4989 = vmatprep.subr.mxu0 0.0
        %4990 = vmatpush2.msra.mxu0 0.0
        %4991 = vmatprep.subr.mxu0 0.0
        %4992 = vmatpush2.msra.mxu0 0.0
        %4993 = vmatprep.subr.mxu0 0.0
        %4994 = vmatpush2.msra.mxu0 0.0
        %4995 = vmatprep.subr.mxu0 0.0
        %4996 = vmatpush2.msra.mxu0 0.0
        %4997 = vmatprep.subr.mxu0 0.0
        %4998 = vmatpush2.msra.mxu0 0.0
        %4999 = vmatprep.subr.mxu0 0.0
        %5000 = vmatpush2.msra.mxu0 0.0
        %5001 = vmatprep.subr.mxu0 0.0
        %5002 = vmatpush2.msra.mxu0 0.0
        %5003 = vmatprep.subr.mxu0 0.0
        %5004 = vmatpush2.msra.mxu0 0.0
        %5005 = vmatprep.mubr.f32.mxu0 0.0
        %v5006 = vand.u32 %v4785, 4294901760
        %v5007 = vsub.f32 %v4785, %v5006
        %5008 = vmatmul.mubr.f32.gmra.mxu0 %v5007
        %v5009 = vpop.f32.mrf.mxu0
        %v5010 = vadd.f32 %v4936, %v5009
        %v5011 = vpop.f32.mrf.mxu0
        %5012 = vdwg.mxu0
        %5013 = vmatprep.subr.mxu0 0.0
        %5014 = vmatpush1.msra.mxu0 0.0
        %5015 = vmatprep.subr.mxu0 0.0
        %5016 = vmatpush1.msra.mxu0 0.0
        %5017 = vmatprep.subr.mxu0 0.0
        %5018 = vmatpush1.msra.mxu0 0.0
        %5019 = vmatprep.subr.mxu0 0.0
        %5020 = vmatpush1.msra.mxu0 0.0
        %5021 = vmatprep.subr.mxu0 0.0
        %5022 = vmatpush1.msra.mxu0 0.0
        %5023 = vmatprep.subr.mxu0 0.0
        %5024 = vmatpush1.msra.mxu0 0.0
        %5025 = vmatprep.subr.mxu0 0.0
        %5026 = vmatpush1.msra.mxu0 0.0
        %5027 = vmatprep.subr.mxu0 0.0
        %5028 = vmatpush1.msra.mxu0 0.0
        %5029 = vmatprep.subr.mxu0 0.0
        %5030 = vmatpush1.msra.mxu0 0.0
        %5031 = vmatprep.subr.mxu0 0.0
        %5032 = vmatpush1.msra.mxu0 0.0
        %5033 = vmatprep.subr.mxu0 0.0
        %5034 = vmatpush1.msra.mxu0 0.0
        %5035 = vmatprep.subr.mxu0 0.0
        %5036 = vmatpush1.msra.mxu0 0.0
        %5037 = vmatprep.subr.mxu0 0.0
        %5038 = vmatpush1.msra.mxu0 0.0
        %5039 = vmatprep.subr.mxu0 0.0
        %5040 = vmatpush1.msra.mxu0 0.0
        %5041 = vmatprep.subr.mxu0 0.0
        %5042 = vmatpush1.msra.mxu0 0.0
        %5043 = vmatprep.subr.mxu0 0.0
        %v5044 = vand.u32 %v4782, 4294901760
        %5045 = vmatpush1.msra.mxu0 %v5044
        %5046 = vmatprep.subr.mxu0 0.0
        %5047 = vmatpush2.msra.mxu0 0.0
        %5048 = vmatprep.subr.mxu0 0.0
        %5049 = vmatpush2.msra.mxu0 0.0
        %5050 = vmatprep.subr.mxu0 0.0
        %5051 = vmatpush2.msra.mxu0 0.0
        %5052 = vmatprep.subr.mxu0 0.0
        %5053 = vmatpush2.msra.mxu0 0.0
        %5054 = vmatprep.subr.mxu0 0.0
        %5055 = vmatpush2.msra.mxu0 0.0
        %5056 = vmatprep.subr.mxu0 0.0
        %5057 = vmatpush2.msra.mxu0 0.0
        %5058 = vmatprep.subr.mxu0 0.0
        %5059 = vmatpush2.msra.mxu0 0.0
        %5060 = vmatprep.subr.mxu0 0.0
        %5061 = vmatpush2.msra.mxu0 0.0
        %5062 = vmatprep.subr.mxu0 0.0
        %5063 = vmatpush2.msra.mxu0 0.0
        %5064 = vmatprep.subr.mxu0 0.0
        %5065 = vmatpush2.msra.mxu0 0.0
        %5066 = vmatprep.subr.mxu0 0.0
        %5067 = vmatpush2.msra.mxu0 0.0
        %5068 = vmatprep.subr.mxu0 0.0
        %5069 = vmatpush2.msra.mxu0 0.0
        %5070 = vmatprep.subr.mxu0 0.0
        %5071 = vmatpush2.msra.mxu0 0.0
        %5072 = vmatprep.subr.mxu0 0.0
        %5073 = vmatpush2.msra.mxu0 0.0
        %5074 = vmatprep.subr.mxu0 0.0
        %5075 = vmatpush2.msra.mxu0 0.0
        %5076 = vmatprep.subr.mxu0 0.0
        %5077 = vmatpush2.msra.mxu0 0.0
        %5078 = vmatprep.mubr.f32.mxu0 0.0
        %v5079 = vand.u32 %v4785, 4294901760
        %v5080 = vsub.f32 %v4785, %v5079
        %v5081 = vand.u32 %v5080, 4294901760
        %5082 = vmatmul.mubr.f32.gmra.mxu0 %v5081
        %v5083 = vpop.f32.mrf.mxu0
        %v5084 = vadd.f32 %v5010, %v5083
        %v5085 = vpop.f32.mrf.mxu0
        %5086 = vdwg.mxu0
        %5087 = vmatprep.subr.mxu0 0.0
        %5088 = vmatpush1.msra.mxu0 0.0
        %5089 = vmatprep.subr.mxu0 0.0
        %5090 = vmatpush1.msra.mxu0 0.0
        %5091 = vmatprep.subr.mxu0 0.0
        %5092 = vmatpush1.msra.mxu0 0.0
        %5093 = vmatprep.subr.mxu0 0.0
        %5094 = vmatpush1.msra.mxu0 0.0
        %5095 = vmatprep.subr.mxu0 0.0
        %5096 = vmatpush1.msra.mxu0 0.0
        %5097 = vmatprep.subr.mxu0 0.0
        %5098 = vmatpush1.msra.mxu0 0.0
        %5099 = vmatprep.subr.mxu0 0.0
        %5100 = vmatpush1.msra.mxu0 0.0
        %5101 = vmatprep.subr.mxu0 0.0
        %5102 = vmatpush1.msra.mxu0 0.0
        %5103 = vmatprep.subr.mxu0 0.0
        %5104 = vmatpush1.msra.mxu0 0.0
        %5105 = vmatprep.subr.mxu0 0.0
        %5106 = vmatpush1.msra.mxu0 0.0
        %5107 = vmatprep.subr.mxu0 0.0
        %5108 = vmatpush1.msra.mxu0 0.0
        %5109 = vmatprep.subr.mxu0 0.0
        %5110 = vmatpush1.msra.mxu0 0.0
        %5111 = vmatprep.subr.mxu0 0.0
        %5112 = vmatpush1.msra.mxu0 0.0
        %5113 = vmatprep.subr.mxu0 0.0
        %5114 = vmatpush1.msra.mxu0 0.0
        %5115 = vmatprep.subr.mxu0 0.0
        %5116 = vmatpush1.msra.mxu0 0.0
        %5117 = vmatprep.subr.mxu0 0.0
        %v5118 = vand.u32 %v4782, 4294901760
        %v5119 = vsub.f32 %v4782, %v5118
        %v5120 = vand.u32 %v5119, 4294901760
        %5121 = vmatpush1.msra.mxu0 %v5120
        %5122 = vmatprep.subr.mxu0 0.0
        %5123 = vmatpush2.msra.mxu0 0.0
        %5124 = vmatprep.subr.mxu0 0.0
        %5125 = vmatpush2.msra.mxu0 0.0
        %5126 = vmatprep.subr.mxu0 0.0
        %5127 = vmatpush2.msra.mxu0 0.0
        %5128 = vmatprep.subr.mxu0 0.0
        %5129 = vmatpush2.msra.mxu0 0.0
        %5130 = vmatprep.subr.mxu0 0.0
        %5131 = vmatpush2.msra.mxu0 0.0
        %5132 = vmatprep.subr.mxu0 0.0
        %5133 = vmatpush2.msra.mxu0 0.0
        %5134 = vmatprep.subr.mxu0 0.0
        %5135 = vmatpush2.msra.mxu0 0.0
        %5136 = vmatprep.subr.mxu0 0.0
        %5137 = vmatpush2.msra.mxu0 0.0
        %5138 = vmatprep.subr.mxu0 0.0
        %5139 = vmatpush2.msra.mxu0 0.0
        %5140 = vmatprep.subr.mxu0 0.0
        %5141 = vmatpush2.msra.mxu0 0.0
        %5142 = vmatprep.subr.mxu0 0.0
        %5143 = vmatpush2.msra.mxu0 0.0
        %5144 = vmatprep.subr.mxu0 0.0
        %5145 = vmatpush2.msra.mxu0 0.0
        %5146 = vmatprep.subr.mxu0 0.0
        %5147 = vmatpush2.msra.mxu0 0.0
        %5148 = vmatprep.subr.mxu0 0.0
        %5149 = vmatpush2.msra.mxu0 0.0
        %5150 = vmatprep.subr.mxu0 0.0
        %5151 = vmatpush2.msra.mxu0 0.0
        %5152 = vmatprep.subr.mxu0 0.0
        %5153 = vmatpush2.msra.mxu0 0.0
        %5154 = vmatprep.mubr.f32.mxu0 0.0
        %v5155 = vand.u32 %v4785, 4294901760
        %5156 = vmatmul.mubr.f32.gmra.mxu0 %v5155
        %v5157 = vpop.f32.mrf.mxu0
        %v5158 = vadd.f32 %v5084, %v5157
        %v5159 = vpop.f32.mrf.mxu0
        %5160 = vdwg.mxu0
        %5161 = vmatprep.subr.mxu0 0.0
        %5162 = vmatpush1.msra.mxu0 0.0
        %5163 = vmatprep.subr.mxu0 0.0
        %5164 = vmatpush1.msra.mxu0 0.0
        %5165 = vmatprep.subr.mxu0 0.0
        %5166 = vmatpush1.msra.mxu0 0.0
        %5167 = vmatprep.subr.mxu0 0.0
        %5168 = vmatpush1.msra.mxu0 0.0
        %5169 = vmatprep.subr.mxu0 0.0
        %5170 = vmatpush1.msra.mxu0 0.0
        %5171 = vmatprep.subr.mxu0 0.0
        %5172 = vmatpush1.msra.mxu0 0.0
        %5173 = vmatprep.subr.mxu0 0.0
        %5174 = vmatpush1.msra.mxu0 0.0
        %5175 = vmatprep.subr.mxu0 0.0
        %5176 = vmatpush1.msra.mxu0 0.0
        %5177 = vmatprep.subr.mxu0 0.0
        %5178 = vmatpush1.msra.mxu0 0.0
        %5179 = vmatprep.subr.mxu0 0.0
        %5180 = vmatpush1.msra.mxu0 0.0
        %5181 = vmatprep.subr.mxu0 0.0
        %5182 = vmatpush1.msra.mxu0 0.0
        %5183 = vmatprep.subr.mxu0 0.0
        %5184 = vmatpush1.msra.mxu0 0.0
        %5185 = vmatprep.subr.mxu0 0.0
        %5186 = vmatpush1.msra.mxu0 0.0
        %5187 = vmatprep.subr.mxu0 0.0
        %5188 = vmatpush1.msra.mxu0 0.0
        %5189 = vmatprep.subr.mxu0 0.0
        %5190 = vmatpush1.msra.mxu0 0.0
        %5191 = vmatprep.subr.mxu0 0.0
        %v5192 = vand.u32 %v4782, 4294901760
        %5193 = vmatpush1.msra.mxu0 %v5192
        %5194 = vmatprep.subr.mxu0 0.0
        %5195 = vmatpush2.msra.mxu0 0.0
        %5196 = vmatprep.subr.mxu0 0.0
        %5197 = vmatpush2.msra.mxu0 0.0
        %5198 = vmatprep.subr.mxu0 0.0
        %5199 = vmatpush2.msra.mxu0 0.0
        %5200 = vmatprep.subr.mxu0 0.0
        %5201 = vmatpush2.msra.mxu0 0.0
        %5202 = vmatprep.subr.mxu0 0.0
        %5203 = vmatpush2.msra.mxu0 0.0
        %5204 = vmatprep.subr.mxu0 0.0
        %5205 = vmatpush2.msra.mxu0 0.0
        %5206 = vmatprep.subr.mxu0 0.0
        %5207 = vmatpush2.msra.mxu0 0.0
        %5208 = vmatprep.subr.mxu0 0.0
        %5209 = vmatpush2.msra.mxu0 0.0
        %5210 = vmatprep.subr.mxu0 0.0
        %5211 = vmatpush2.msra.mxu0 0.0
        %5212 = vmatprep.subr.mxu0 0.0
        %5213 = vmatpush2.msra.mxu0 0.0
        %5214 = vmatprep.subr.mxu0 0.0
        %5215 = vmatpush2.msra.mxu0 0.0
        %5216 = vmatprep.subr.mxu0 0.0
        %5217 = vmatpush2.msra.mxu0 0.0
        %5218 = vmatprep.subr.mxu0 0.0
        %5219 = vmatpush2.msra.mxu0 0.0
        %5220 = vmatprep.subr.mxu0 0.0
        %5221 = vmatpush2.msra.mxu0 0.0
        %5222 = vmatprep.subr.mxu0 0.0
        %5223 = vmatpush2.msra.mxu0 0.0
        %5224 = vmatprep.subr.mxu0 0.0
        %5225 = vmatpush2.msra.mxu0 0.0
        %5226 = vmatprep.mubr.f32.mxu0 0.0
        %v5227 = vand.u32 %v4785, 4294901760
        %5228 = vmatmul.mubr.f32.gmra.mxu0 %v5227
        %v5229 = vpop.f32.mrf.mxu0
        %v5230 = vadd.f32 %v5158, %v5229
        %v5231 = vpop.f32.mrf.mxu0
        %5232 = vdwg.mxu0
        %5234 = vrot.lane.b32.xlu0 %v3396, 16
        %v5235 = vpop.permute.xlu0 %5234
        %5238 = vrot.lane.b32.xlu0 %v4313, 32
        %v5239 = vpop.permute.xlu0 %5238
        %5242 = vrot.lane.b32.xlu0 %v5230, 48
        %v5243 = vpop.permute.xlu0 %5242
        %v5245 = vsel %vm1567, %v2478, %v5235
        %vm5246 = vcmask 261120
        %v5247 = vsel %vm5246, %v5245, %v5239
        %vm5248 = vcmask 392192
        %v5249 = vsel %vm5248, %v5247, %v5243
        %v5250 = vld [vmem:[#allocation7] sm:$0xff]
        %v5251 = vld [vmem:[#allocation7 + $0x8] sm:$0xff]
        %v5252 = vld [vmem:[#allocation7 + $0x10] sm:$0xff]
        %v5253 = vld [vmem:[#allocation7 + $0x18] sm:$0xff]
        %v5254 = vld [vmem:[#allocation7 + $0x20] sm:$0xff]
        %v5255 = vld [vmem:[#allocation7 + $0x28] sm:$0xff]
        %v5256 = vld [vmem:[#allocation7 + $0x30] sm:$0xff]
        %v5257 = vld [vmem:[#allocation7 + $0x38] sm:$0xff]
        %v5258 = vld [vmem:[%s4] sm:$0x1]
        %v5260 = vlaneseq
        %v5261 = vshrl.u32 %v5260, 7
        %v5262 = vsub.s32 0, %v5261
        %v5263 = vrot.slane %v5258, %v5262
        %v5266 = vsel %vm353, %v5249, 0
        %5268 = vmatprep.subr.mxu0 0.0
        %5269 = vmatpush1.msra.mxu0 0.0
        %5270 = vmatprep.subr.mxu0 0.0
        %5271 = vmatpush1.msra.mxu0 0.0
        %5272 = vmatprep.subr.mxu0 0.0
        %5273 = vmatpush1.msra.mxu0 0.0
        %5274 = vmatprep.subr.mxu0 0.0
        %5275 = vmatpush1.msra.mxu0 0.0
        %5276 = vmatprep.subr.mxu0 0.0
        %5277 = vmatpush1.msra.mxu0 0.0
        %5278 = vmatprep.subr.mxu0 0.0
        %5279 = vmatpush1.msra.mxu0 0.0
        %5280 = vmatprep.subr.mxu0 0.0
        %5281 = vmatpush1.msra.mxu0 0.0
        %5282 = vmatprep.subr.mxu0 0.0
        %5283 = vmatpush1.msra.mxu0 0.0
        %5284 = vmatprep.subr.mxu0 0.0
        %v5285 = vand.u32 %v5257, 4294901760
        %5286 = vmatpush1.msra.mxu0 %v5285
        %5287 = vmatprep.subr.mxu0 0.0
        %v5288 = vand.u32 %v5256, 4294901760
        %5289 = vmatpush1.msra.mxu0 %v5288
        %5290 = vmatprep.subr.mxu0 0.0
        %v5291 = vand.u32 %v5255, 4294901760
        %5292 = vmatpush1.msra.mxu0 %v5291
        %5293 = vmatprep.subr.mxu0 0.0
        %v5294 = vand.u32 %v5254, 4294901760
        %5295 = vmatpush1.msra.mxu0 %v5294
        %5296 = vmatprep.subr.mxu0 0.0
        %v5297 = vand.u32 %v5253, 4294901760
        %5298 = vmatpush1.msra.mxu0 %v5297
        %5299 = vmatprep.subr.mxu0 0.0
        %v5300 = vand.u32 %v5252, 4294901760
        %5301 = vmatpush1.msra.mxu0 %v5300
        %5302 = vmatprep.subr.mxu0 0.0
        %v5303 = vand.u32 %v5251, 4294901760
        %5304 = vmatpush1.msra.mxu0 %v5303
        %5305 = vmatprep.subr.mxu0 0.0
        %v5306 = vand.u32 %v5250, 4294901760
        %5307 = vmatpush1.msra.mxu0 %v5306
        %5308 = vmatprep.subr.mxu0 0.0
        %5309 = vmatpush2.msra.mxu0 0.0
        %5310 = vmatprep.subr.mxu0 0.0
        %5311 = vmatpush2.msra.mxu0 0.0
        %5312 = vmatprep.subr.mxu0 0.0
        %5313 = vmatpush2.msra.mxu0 0.0
        %5314 = vmatprep.subr.mxu0 0.0
        %5315 = vmatpush2.msra.mxu0 0.0
        %5316 = vmatprep.subr.mxu0 0.0
        %5317 = vmatpush2.msra.mxu0 0.0
        %5318 = vmatprep.subr.mxu0 0.0
        %5319 = vmatpush2.msra.mxu0 0.0
        %5320 = vmatprep.subr.mxu0 0.0
        %5321 = vmatpush2.msra.mxu0 0.0
        %5322 = vmatprep.subr.mxu0 0.0
        %5323 = vmatpush2.msra.mxu0 0.0
        %5324 = vmatprep.subr.mxu0 0.0
        %5325 = vmatpush2.msra.mxu0 0.0
        %5326 = vmatprep.subr.mxu0 0.0
        %5327 = vmatpush2.msra.mxu0 0.0
        %5328 = vmatprep.subr.mxu0 0.0
        %5329 = vmatpush2.msra.mxu0 0.0
        %5330 = vmatprep.subr.mxu0 0.0
        %5331 = vmatpush2.msra.mxu0 0.0
        %5332 = vmatprep.subr.mxu0 0.0
        %5333 = vmatpush2.msra.mxu0 0.0
        %5334 = vmatprep.subr.mxu0 0.0
        %5335 = vmatpush2.msra.mxu0 0.0
        %5336 = vmatprep.subr.mxu0 0.0
        %5337 = vmatpush2.msra.mxu0 0.0
        %5338 = vmatprep.subr.mxu0 0.0
        %5339 = vmatpush2.msra.mxu0 0.0
        %5340 = vmatprep.mubr.f32.mxu0 0.0
        %v5341 = vand.u32 %v5266, 4294901760
        %v5342 = vsub.f32 %v5266, %v5341
        %v5343 = vand.u32 %v5342, 4294901760
        %v5344 = vsub.f32 %v5342, %v5343
        %v5345 = vand.u32 %v5344, 4294901760
        %5346 = vmatmul.mubr.f32.gmra.mxu0 %v5345
        %v5347 = vpop.f32.mrf.mxu0
        %v5348 = vadd.f32 %v5263, %v5347
        %v5349 = vpop.f32.mrf.mxu0
        %5350 = vdwg.mxu0
        %5351 = vmatprep.subr.mxu0 0.0
        %5352 = vmatpush1.msra.mxu0 0.0
        %5353 = vmatprep.subr.mxu0 0.0
        %5354 = vmatpush1.msra.mxu0 0.0
        %5355 = vmatprep.subr.mxu0 0.0
        %5356 = vmatpush1.msra.mxu0 0.0
        %5357 = vmatprep.subr.mxu0 0.0
        %5358 = vmatpush1.msra.mxu0 0.0
        %5359 = vmatprep.subr.mxu0 0.0
        %5360 = vmatpush1.msra.mxu0 0.0
        %5361 = vmatprep.subr.mxu0 0.0
        %5362 = vmatpush1.msra.mxu0 0.0
        %5363 = vmatprep.subr.mxu0 0.0
        %5364 = vmatpush1.msra.mxu0 0.0
        %5365 = vmatprep.subr.mxu0 0.0
        %5366 = vmatpush1.msra.mxu0 0.0
        %5367 = vmatprep.subr.mxu0 0.0
        %v5368 = vand.u32 %v5257, 4294901760
        %v5369 = vsub.f32 %v5257, %v5368
        %v5370 = vand.u32 %v5369, 4294901760
        %v5371 = vsub.f32 %v5369, %v5370
        %v5372 = vand.u32 %v5371, 4294901760
        %5373 = vmatpush1.msra.mxu0 %v5372
        %5374 = vmatprep.subr.mxu0 0.0
        %v5375 = vand.u32 %v5256, 4294901760
        %v5376 = vsub.f32 %v5256, %v5375
        %v5377 = vand.u32 %v5376, 4294901760
        %v5378 = vsub.f32 %v5376, %v5377
        %v5379 = vand.u32 %v5378, 4294901760
        %5380 = vmatpush1.msra.mxu0 %v5379
        %5381 = vmatprep.subr.mxu0 0.0
        %v5382 = vand.u32 %v5255, 4294901760
        %v5383 = vsub.f32 %v5255, %v5382
        %v5384 = vand.u32 %v5383, 4294901760
        %v5385 = vsub.f32 %v5383, %v5384
        %v5386 = vand.u32 %v5385, 4294901760
        %5387 = vmatpush1.msra.mxu0 %v5386
        %5388 = vmatprep.subr.mxu0 0.0
        %v5389 = vand.u32 %v5254, 4294901760
        %v5390 = vsub.f32 %v5254, %v5389
        %v5391 = vand.u32 %v5390, 4294901760
        %v5392 = vsub.f32 %v5390, %v5391
        %v5393 = vand.u32 %v5392, 4294901760
        %5394 = vmatpush1.msra.mxu0 %v5393
        %5395 = vmatprep.subr.mxu0 0.0
        %v5396 = vand.u32 %v5253, 4294901760
        %v5397 = vsub.f32 %v5253, %v5396
        %v5398 = vand.u32 %v5397, 4294901760
        %v5399 = vsub.f32 %v5397, %v5398
        %v5400 = vand.u32 %v5399, 4294901760
        %5401 = vmatpush1.msra.mxu0 %v5400
        %5402 = vmatprep.subr.mxu0 0.0
        %v5403 = vand.u32 %v5252, 4294901760
        %v5404 = vsub.f32 %v5252, %v5403
        %v5405 = vand.u32 %v5404, 4294901760
        %v5406 = vsub.f32 %v5404, %v5405
        %v5407 = vand.u32 %v5406, 4294901760
        %5408 = vmatpush1.msra.mxu0 %v5407
        %5409 = vmatprep.subr.mxu0 0.0
        %v5410 = vand.u32 %v5251, 4294901760
        %v5411 = vsub.f32 %v5251, %v5410
        %v5412 = vand.u32 %v5411, 4294901760
        %v5413 = vsub.f32 %v5411, %v5412
        %v5414 = vand.u32 %v5413, 4294901760
        %5415 = vmatpush1.msra.mxu0 %v5414
        %5416 = vmatprep.subr.mxu0 0.0
        %v5417 = vand.u32 %v5250, 4294901760
        %v5418 = vsub.f32 %v5250, %v5417
        %v5419 = vand.u32 %v5418, 4294901760
        %v5420 = vsub.f32 %v5418, %v5419
        %v5421 = vand.u32 %v5420, 4294901760
        %5422 = vmatpush1.msra.mxu0 %v5421
        %5423 = vmatprep.subr.mxu0 0.0
        %5424 = vmatpush2.msra.mxu0 0.0
        %5425 = vmatprep.subr.mxu0 0.0
        %5426 = vmatpush2.msra.mxu0 0.0
        %5427 = vmatprep.subr.mxu0 0.0
        %5428 = vmatpush2.msra.mxu0 0.0
        %5429 = vmatprep.subr.mxu0 0.0
        %5430 = vmatpush2.msra.mxu0 0.0
        %5431 = vmatprep.subr.mxu0 0.0
        %5432 = vmatpush2.msra.mxu0 0.0
        %5433 = vmatprep.subr.mxu0 0.0
        %5434 = vmatpush2.msra.mxu0 0.0
        %5435 = vmatprep.subr.mxu0 0.0
        %5436 = vmatpush2.msra.mxu0 0.0
        %5437 = vmatprep.subr.mxu0 0.0
        %5438 = vmatpush2.msra.mxu0 0.0
        %5439 = vmatprep.subr.mxu0 0.0
        %5440 = vmatpush2.msra.mxu0 0.0
        %5441 = vmatprep.subr.mxu0 0.0
        %5442 = vmatpush2.msra.mxu0 0.0
        %5443 = vmatprep.subr.mxu0 0.0
        %5444 = vmatpush2.msra.mxu0 0.0
        %5445 = vmatprep.subr.mxu0 0.0
        %5446 = vmatpush2.msra.mxu0 0.0
        %5447 = vmatprep.subr.mxu0 0.0
        %5448 = vmatpush2.msra.mxu0 0.0
        %5449 = vmatprep.subr.mxu0 0.0
        %5450 = vmatpush2.msra.mxu0 0.0
        %5451 = vmatprep.subr.mxu0 0.0
        %5452 = vmatpush2.msra.mxu0 0.0
        %5453 = vmatprep.subr.mxu0 0.0
        %5454 = vmatpush2.msra.mxu0 0.0
        %5455 = vmatprep.mubr.f32.mxu0 0.0
        %v5456 = vand.u32 %v5266, 4294901760
        %5457 = vmatmul.mubr.f32.gmra.mxu0 %v5456
        %v5458 = vpop.f32.mrf.mxu0
        %v5459 = vadd.f32 %v5348, %v5458
        %v5460 = vpop.f32.mrf.mxu0
        %5461 = vdwg.mxu0
        %5462 = vmatprep.subr.mxu0 0.0
        %5463 = vmatpush1.msra.mxu0 0.0
        %5464 = vmatprep.subr.mxu0 0.0
        %5465 = vmatpush1.msra.mxu0 0.0
        %5466 = vmatprep.subr.mxu0 0.0
        %5467 = vmatpush1.msra.mxu0 0.0
        %5468 = vmatprep.subr.mxu0 0.0
        %5469 = vmatpush1.msra.mxu0 0.0
        %5470 = vmatprep.subr.mxu0 0.0
        %5471 = vmatpush1.msra.mxu0 0.0
        %5472 = vmatprep.subr.mxu0 0.0
        %5473 = vmatpush1.msra.mxu0 0.0
        %5474 = vmatprep.subr.mxu0 0.0
        %5475 = vmatpush1.msra.mxu0 0.0
        %5476 = vmatprep.subr.mxu0 0.0
        %5477 = vmatpush1.msra.mxu0 0.0
        %5478 = vmatprep.subr.mxu0 0.0
        %v5479 = vand.u32 %v5257, 4294901760
        %v5480 = vsub.f32 %v5257, %v5479
        %5481 = vmatpush1.msra.mxu0 %v5480
        %5482 = vmatprep.subr.mxu0 0.0
        %v5483 = vand.u32 %v5256, 4294901760
        %v5484 = vsub.f32 %v5256, %v5483
        %5485 = vmatpush1.msra.mxu0 %v5484
        %5486 = vmatprep.subr.mxu0 0.0
        %v5487 = vand.u32 %v5255, 4294901760
        %v5488 = vsub.f32 %v5255, %v5487
        %5489 = vmatpush1.msra.mxu0 %v5488
        %5490 = vmatprep.subr.mxu0 0.0
        %v5491 = vand.u32 %v5254, 4294901760
        %v5492 = vsub.f32 %v5254, %v5491
        %5493 = vmatpush1.msra.mxu0 %v5492
        %5494 = vmatprep.subr.mxu0 0.0
        %v5495 = vand.u32 %v5253, 4294901760
        %v5496 = vsub.f32 %v5253, %v5495
        %5497 = vmatpush1.msra.mxu0 %v5496
        %5498 = vmatprep.subr.mxu0 0.0
        %v5499 = vand.u32 %v5252, 4294901760
        %v5500 = vsub.f32 %v5252, %v5499
        %5501 = vmatpush1.msra.mxu0 %v5500
        %5502 = vmatprep.subr.mxu0 0.0
        %v5503 = vand.u32 %v5251, 4294901760
        %v5504 = vsub.f32 %v5251, %v5503
        %5505 = vmatpush1.msra.mxu0 %v5504
        %5506 = vmatprep.subr.mxu0 0.0
        %v5507 = vand.u32 %v5250, 4294901760
        %v5508 = vsub.f32 %v5250, %v5507
        %5509 = vmatpush1.msra.mxu0 %v5508
        %5510 = vmatprep.subr.mxu0 0.0
        %5511 = vmatpush2.msra.mxu0 0.0
        %5512 = vmatprep.subr.mxu0 0.0
        %5513 = vmatpush2.msra.mxu0 0.0
        %5514 = vmatprep.subr.mxu0 0.0
        %5515 = vmatpush2.msra.mxu0 0.0
        %5516 = vmatprep.subr.mxu0 0.0
        %5517 = vmatpush2.msra.mxu0 0.0
        %5518 = vmatprep.subr.mxu0 0.0
        %5519 = vmatpush2.msra.mxu0 0.0
        %5520 = vmatprep.subr.mxu0 0.0
        %5521 = vmatpush2.msra.mxu0 0.0
        %5522 = vmatprep.subr.mxu0 0.0
        %5523 = vmatpush2.msra.mxu0 0.0
        %5524 = vmatprep.subr.mxu0 0.0
        %5525 = vmatpush2.msra.mxu0 0.0
        %5526 = vmatprep.subr.mxu0 0.0
        %5527 = vmatpush2.msra.mxu0 0.0
        %5528 = vmatprep.subr.mxu0 0.0
        %5529 = vmatpush2.msra.mxu0 0.0
        %5530 = vmatprep.subr.mxu0 0.0
        %5531 = vmatpush2.msra.mxu0 0.0
        %5532 = vmatprep.subr.mxu0 0.0
        %5533 = vmatpush2.msra.mxu0 0.0
        %5534 = vmatprep.subr.mxu0 0.0
        %5535 = vmatpush2.msra.mxu0 0.0
        %5536 = vmatprep.subr.mxu0 0.0
        %5537 = vmatpush2.msra.mxu0 0.0
        %5538 = vmatprep.subr.mxu0 0.0
        %5539 = vmatpush2.msra.mxu0 0.0
        %5540 = vmatprep.subr.mxu0 0.0
        %5541 = vmatpush2.msra.mxu0 0.0
        %5542 = vmatprep.mubr.f32.mxu0 0.0
        %v5543 = vand.u32 %v5266, 4294901760
        %v5544 = vsub.f32 %v5266, %v5543
        %5545 = vmatmul.mubr.f32.gmra.mxu0 %v5544
        %v5546 = vpop.f32.mrf.mxu0
        %v5547 = vadd.f32 %v5459, %v5546
        %v5548 = vpop.f32.mrf.mxu0
        %5549 = vdwg.mxu0
        %5550 = vmatprep.subr.mxu0 0.0
        %5551 = vmatpush1.msra.mxu0 0.0
        %5552 = vmatprep.subr.mxu0 0.0
        %5553 = vmatpush1.msra.mxu0 0.0
        %5554 = vmatprep.subr.mxu0 0.0
        %5555 = vmatpush1.msra.mxu0 0.0
        %5556 = vmatprep.subr.mxu0 0.0
        %5557 = vmatpush1.msra.mxu0 0.0
        %5558 = vmatprep.subr.mxu0 0.0
        %5559 = vmatpush1.msra.mxu0 0.0
        %5560 = vmatprep.subr.mxu0 0.0
        %5561 = vmatpush1.msra.mxu0 0.0
        %5562 = vmatprep.subr.mxu0 0.0
        %5563 = vmatpush1.msra.mxu0 0.0
        %5564 = vmatprep.subr.mxu0 0.0
        %5565 = vmatpush1.msra.mxu0 0.0
        %5566 = vmatprep.subr.mxu0 0.0
        %v5567 = vand.u32 %v5257, 4294901760
        %5568 = vmatpush1.msra.mxu0 %v5567
        %5569 = vmatprep.subr.mxu0 0.0
        %v5570 = vand.u32 %v5256, 4294901760
        %5571 = vmatpush1.msra.mxu0 %v5570
        %5572 = vmatprep.subr.mxu0 0.0
        %v5573 = vand.u32 %v5255, 4294901760
        %5574 = vmatpush1.msra.mxu0 %v5573
        %5575 = vmatprep.subr.mxu0 0.0
        %v5576 = vand.u32 %v5254, 4294901760
        %5577 = vmatpush1.msra.mxu0 %v5576
        %5578 = vmatprep.subr.mxu0 0.0
        %v5579 = vand.u32 %v5253, 4294901760
        %5580 = vmatpush1.msra.mxu0 %v5579
        %5581 = vmatprep.subr.mxu0 0.0
        %v5582 = vand.u32 %v5252, 4294901760
        %5583 = vmatpush1.msra.mxu0 %v5582
        %5584 = vmatprep.subr.mxu0 0.0
        %v5585 = vand.u32 %v5251, 4294901760
        %5586 = vmatpush1.msra.mxu0 %v5585
        %5587 = vmatprep.subr.mxu0 0.0
        %v5588 = vand.u32 %v5250, 4294901760
        %5589 = vmatpush1.msra.mxu0 %v5588
        %5590 = vmatprep.subr.mxu0 0.0
        %5591 = vmatpush2.msra.mxu0 0.0
        %5592 = vmatprep.subr.mxu0 0.0
        %5593 = vmatpush2.msra.mxu0 0.0
        %5594 = vmatprep.subr.mxu0 0.0
        %5595 = vmatpush2.msra.mxu0 0.0
        %5596 = vmatprep.subr.mxu0 0.0
        %5597 = vmatpush2.msra.mxu0 0.0
        %5598 = vmatprep.subr.mxu0 0.0
        %5599 = vmatpush2.msra.mxu0 0.0
        %5600 = vmatprep.subr.mxu0 0.0
        %5601 = vmatpush2.msra.mxu0 0.0
        %5602 = vmatprep.subr.mxu0 0.0
        %5603 = vmatpush2.msra.mxu0 0.0
        %5604 = vmatprep.subr.mxu0 0.0
        %5605 = vmatpush2.msra.mxu0 0.0
        %5606 = vmatprep.subr.mxu0 0.0
        %5607 = vmatpush2.msra.mxu0 0.0
        %5608 = vmatprep.subr.mxu0 0.0
        %5609 = vmatpush2.msra.mxu0 0.0
        %5610 = vmatprep.subr.mxu0 0.0
        %5611 = vmatpush2.msra.mxu0 0.0
        %5612 = vmatprep.subr.mxu0 0.0
        %5613 = vmatpush2.msra.mxu0 0.0
        %5614 = vmatprep.subr.mxu0 0.0
        %5615 = vmatpush2.msra.mxu0 0.0
        %5616 = vmatprep.subr.mxu0 0.0
        %5617 = vmatpush2.msra.mxu0 0.0
        %5618 = vmatprep.subr.mxu0 0.0
        %5619 = vmatpush2.msra.mxu0 0.0
        %5620 = vmatprep.subr.mxu0 0.0
        %5621 = vmatpush2.msra.mxu0 0.0
        %5622 = vmatprep.mubr.f32.mxu0 0.0
        %v5623 = vand.u32 %v5266, 4294901760
        %v5624 = vsub.f32 %v5266, %v5623
        %v5625 = vand.u32 %v5624, 4294901760
        %5626 = vmatmul.mubr.f32.gmra.mxu0 %v5625
        %v5627 = vpop.f32.mrf.mxu0
        %v5628 = vadd.f32 %v5547, %v5627
        %v5629 = vpop.f32.mrf.mxu0
        %5630 = vdwg.mxu0
        %5631 = vmatprep.subr.mxu0 0.0
        %5632 = vmatpush1.msra.mxu0 0.0
        %5633 = vmatprep.subr.mxu0 0.0
        %5634 = vmatpush1.msra.mxu0 0.0
        %5635 = vmatprep.subr.mxu0 0.0
        %5636 = vmatpush1.msra.mxu0 0.0
        %5637 = vmatprep.subr.mxu0 0.0
        %5638 = vmatpush1.msra.mxu0 0.0
        %5639 = vmatprep.subr.mxu0 0.0
        %5640 = vmatpush1.msra.mxu0 0.0
        %5641 = vmatprep.subr.mxu0 0.0
        %5642 = vmatpush1.msra.mxu0 0.0
        %5643 = vmatprep.subr.mxu0 0.0
        %5644 = vmatpush1.msra.mxu0 0.0
        %5645 = vmatprep.subr.mxu0 0.0
        %5646 = vmatpush1.msra.mxu0 0.0
        %5647 = vmatprep.subr.mxu0 0.0
        %v5648 = vand.u32 %v5257, 4294901760
        %v5649 = vsub.f32 %v5257, %v5648
        %v5650 = vand.u32 %v5649, 4294901760
        %5651 = vmatpush1.msra.mxu0 %v5650
        %5652 = vmatprep.subr.mxu0 0.0
        %v5653 = vand.u32 %v5256, 4294901760
        %v5654 = vsub.f32 %v5256, %v5653
        %v5655 = vand.u32 %v5654, 4294901760
        %5656 = vmatpush1.msra.mxu0 %v5655
        %5657 = vmatprep.subr.mxu0 0.0
        %v5658 = vand.u32 %v5255, 4294901760
        %v5659 = vsub.f32 %v5255, %v5658
        %v5660 = vand.u32 %v5659, 4294901760
        %5661 = vmatpush1.msra.mxu0 %v5660
        %5662 = vmatprep.subr.mxu0 0.0
        %v5663 = vand.u32 %v5254, 4294901760
        %v5664 = vsub.f32 %v5254, %v5663
        %v5665 = vand.u32 %v5664, 4294901760
        %5666 = vmatpush1.msra.mxu0 %v5665
        %5667 = vmatprep.subr.mxu0 0.0
        %v5668 = vand.u32 %v5253, 4294901760
        %v5669 = vsub.f32 %v5253, %v5668
        %v5670 = vand.u32 %v5669, 4294901760
        %5671 = vmatpush1.msra.mxu0 %v5670
        %5672 = vmatprep.subr.mxu0 0.0
        %v5673 = vand.u32 %v5252, 4294901760
        %v5674 = vsub.f32 %v5252, %v5673
        %v5675 = vand.u32 %v5674, 4294901760
        %5676 = vmatpush1.msra.mxu0 %v5675
        %5677 = vmatprep.subr.mxu0 0.0
        %v5678 = vand.u32 %v5251, 4294901760
        %v5679 = vsub.f32 %v5251, %v5678
        %v5680 = vand.u32 %v5679, 4294901760
        %5681 = vmatpush1.msra.mxu0 %v5680
        %5682 = vmatprep.subr.mxu0 0.0
        %v5683 = vand.u32 %v5250, 4294901760
        %v5684 = vsub.f32 %v5250, %v5683
        %v5685 = vand.u32 %v5684, 4294901760
        %5686 = vmatpush1.msra.mxu0 %v5685
        %5687 = vmatprep.subr.mxu0 0.0
        %5688 = vmatpush2.msra.mxu0 0.0
        %5689 = vmatprep.subr.mxu0 0.0
        %5690 = vmatpush2.msra.mxu0 0.0
        %5691 = vmatprep.subr.mxu0 0.0
        %5692 = vmatpush2.msra.mxu0 0.0
        %5693 = vmatprep.subr.mxu0 0.0
        %5694 = vmatpush2.msra.mxu0 0.0
        %5695 = vmatprep.subr.mxu0 0.0
        %5696 = vmatpush2.msra.mxu0 0.0
        %5697 = vmatprep.subr.mxu0 0.0
        %5698 = vmatpush2.msra.mxu0 0.0
        %5699 = vmatprep.subr.mxu0 0.0
        %5700 = vmatpush2.msra.mxu0 0.0
        %5701 = vmatprep.subr.mxu0 0.0
        %5702 = vmatpush2.msra.mxu0 0.0
        %5703 = vmatprep.subr.mxu0 0.0
        %5704 = vmatpush2.msra.mxu0 0.0
        %5705 = vmatprep.subr.mxu0 0.0
        %5706 = vmatpush2.msra.mxu0 0.0
        %5707 = vmatprep.subr.mxu0 0.0
        %5708 = vmatpush2.msra.mxu0 0.0
        %5709 = vmatprep.subr.mxu0 0.0
        %5710 = vmatpush2.msra.mxu0 0.0
        %5711 = vmatprep.subr.mxu0 0.0
        %5712 = vmatpush2.msra.mxu0 0.0
        %5713 = vmatprep.subr.mxu0 0.0
        %5714 = vmatpush2.msra.mxu0 0.0
        %5715 = vmatprep.subr.mxu0 0.0
        %5716 = vmatpush2.msra.mxu0 0.0
        %5717 = vmatprep.subr.mxu0 0.0
        %5718 = vmatpush2.msra.mxu0 0.0
        %5719 = vmatprep.mubr.f32.mxu0 0.0
        %v5720 = vand.u32 %v5266, 4294901760
        %5721 = vmatmul.mubr.f32.gmra.mxu0 %v5720
        %v5722 = vpop.f32.mrf.mxu0
        %v5723 = vadd.f32 %v5628, %v5722
        %v5724 = vpop.f32.mrf.mxu0
        %5725 = vdwg.mxu0
        %5726 = vmatprep.subr.mxu0 0.0
        %5727 = vmatpush1.msra.mxu0 0.0
        %5728 = vmatprep.subr.mxu0 0.0
        %5729 = vmatpush1.msra.mxu0 0.0
        %5730 = vmatprep.subr.mxu0 0.0
        %5731 = vmatpush1.msra.mxu0 0.0
        %5732 = vmatprep.subr.mxu0 0.0
        %5733 = vmatpush1.msra.mxu0 0.0
        %5734 = vmatprep.subr.mxu0 0.0
        %5735 = vmatpush1.msra.mxu0 0.0
        %5736 = vmatprep.subr.mxu0 0.0
        %5737 = vmatpush1.msra.mxu0 0.0
        %5738 = vmatprep.subr.mxu0 0.0
        %5739 = vmatpush1.msra.mxu0 0.0
        %5740 = vmatprep.subr.mxu0 0.0
        %5741 = vmatpush1.msra.mxu0 0.0
        %5742 = vmatprep.subr.mxu0 0.0
        %v5743 = vand.u32 %v5257, 4294901760
        %5744 = vmatpush1.msra.mxu0 %v5743
        %5745 = vmatprep.subr.mxu0 0.0
        %v5746 = vand.u32 %v5256, 4294901760
        %5747 = vmatpush1.msra.mxu0 %v5746
        %5748 = vmatprep.subr.mxu0 0.0
        %v5749 = vand.u32 %v5255, 4294901760
        %5750 = vmatpush1.msra.mxu0 %v5749
        %5751 = vmatprep.subr.mxu0 0.0
        %v5752 = vand.u32 %v5254, 4294901760
        %5753 = vmatpush1.msra.mxu0 %v5752
        %5754 = vmatprep.subr.mxu0 0.0
        %v5755 = vand.u32 %v5253, 4294901760
        %5756 = vmatpush1.msra.mxu0 %v5755
        %5757 = vmatprep.subr.mxu0 0.0
        %v5758 = vand.u32 %v5252, 4294901760
        %5759 = vmatpush1.msra.mxu0 %v5758
        %5760 = vmatprep.subr.mxu0 0.0
        %v5761 = vand.u32 %v5251, 4294901760
        %5762 = vmatpush1.msra.mxu0 %v5761
        %5763 = vmatprep.subr.mxu0 0.0
        %v5764 = vand.u32 %v5250, 4294901760
        %5765 = vmatpush1.msra.mxu0 %v5764
        %5766 = vmatprep.subr.mxu0 0.0
        %5767 = vmatpush2.msra.mxu0 0.0
        %5768 = vmatprep.subr.mxu0 0.0
        %5769 = vmatpush2.msra.mxu0 0.0
        %5770 = vmatprep.subr.mxu0 0.0
        %5771 = vmatpush2.msra.mxu0 0.0
        %5772 = vmatprep.subr.mxu0 0.0
        %5773 = vmatpush2.msra.mxu0 0.0
        %5774 = vmatprep.subr.mxu0 0.0
        %5775 = vmatpush2.msra.mxu0 0.0
        %5776 = vmatprep.subr.mxu0 0.0
        %5777 = vmatpush2.msra.mxu0 0.0
        %5778 = vmatprep.subr.mxu0 0.0
        %5779 = vmatpush2.msra.mxu0 0.0
        %5780 = vmatprep.subr.mxu0 0.0
        %5781 = vmatpush2.msra.mxu0 0.0
        %5782 = vmatprep.subr.mxu0 0.0
        %5783 = vmatpush2.msra.mxu0 0.0
        %5784 = vmatprep.subr.mxu0 0.0
        %5785 = vmatpush2.msra.mxu0 0.0
        %5786 = vmatprep.subr.mxu0 0.0
        %5787 = vmatpush2.msra.mxu0 0.0
        %5788 = vmatprep.subr.mxu0 0.0
        %5789 = vmatpush2.msra.mxu0 0.0
        %5790 = vmatprep.subr.mxu0 0.0
        %5791 = vmatpush2.msra.mxu0 0.0
        %5792 = vmatprep.subr.mxu0 0.0
        %5793 = vmatpush2.msra.mxu0 0.0
        %5794 = vmatprep.subr.mxu0 0.0
        %5795 = vmatpush2.msra.mxu0 0.0
        %5796 = vmatprep.subr.mxu0 0.0
        %5797 = vmatpush2.msra.mxu0 0.0
        %5798 = vmatprep.mubr.f32.mxu0 0.0
        %v5799 = vand.u32 %v5266, 4294901760
        %5800 = vmatmul.mubr.f32.gmra.mxu0 %v5799
        %v5801 = vpop.f32.mrf.mxu0
        %v5802 = vadd.f32 %v5723, %v5801
        %v5803 = vpop.f32.mrf.mxu0
        %5804 = vdwg.mxu0
        %5805 = vst.msk [vmem:[%s310] sm:$0xff] %vm353, %v5802
        %s5806 = sand.u32 %s164, 1
        %s5807 = scalar_lea.sflag [#allocation4], %s5806
        %s5808 = sand.u32 %s164, 1
        %s5809 = smul.addr %s5808, 8
        %s5810 = scalar_lea.vmem [#allocation10], %s5809
        // Predicated region
        $region61: #{tpu_custom_call.1} parent=43 // pred_check
          %p5811 = pneg %p174
        $region62: #{tpu_custom_call.1} parent=43 // pred_check_branch
          %5813 = sbr.rel (%p5811) target = $region64
        $region63: #{tpu_custom_call.1} parent=43 // pred_region
          %s5815 = ssub.s32 128, 128
          %5816 = vsyncadd %s5807, %s5815
          %s5817 = smul.addr %s25, 128
          %s5818 = scalar_lea.hbm %s6, %s5817
          %s5820 = sshll.u32 %s5810, 4
          %s5821 = int_to_ptr.vmem [resolvable:$true] %s5820
          %5823 = dma.vmem_to_hbm [thread:$0]  %s5821, 128, %s5818, %s5807
        $region64: #{tpu_custom_call.1} parent=43 // pred_fallthru
          _
      $region44: #{tpu_custom_call.1} parent=5 // pred_fallthru
        _
      %p5824 = scmp.le.s32.totalorder 2, %s20
      // Predicated region
      $region65: #{tpu_custom_call.1} parent=5 // pred_check
        %p5825 = pneg %p5824
      $region66: #{tpu_custom_call.1} parent=5 // pred_check_branch
        %5827 = sbr.rel (%p5825) target = $region68
      $region67: #{tpu_custom_call.1} parent=5 // pred_region
        %s5828 = ssub.s32 %s20, 2
        // Predicated region
        $region69: #{tpu_custom_call.1} parent=67 // pred_check
          %p5829 = pneg %p180
        $region70: #{tpu_custom_call.1} parent=67 // pred_check_branch
          %5831 = sbr.rel (%p5829) target = $region72
        $region71: #{tpu_custom_call.1} parent=67 // pred_region
          %s5832 = sand.u32 %s165, 1
          %s5833 = scalar_lea.sflag [#allocation4], %s5832
          %s5834 = sand.u32 %s165, 1
          %s5835 = smul.addr %s5834, 8
          %s5836 = scalar_lea.vmem [#allocation10], %s5835
          %5837 = dma.done %s5833, 128
        $region72: #{tpu_custom_call.1} parent=67 // pred_fallthru
          _
      $region68: #{tpu_custom_call.1} parent=5 // pred_fallthru
        _
    $region6: #{tpu_custom_call.1} parent=1 // loop_footer
      %s24 = sadd.s32 1, %s20
    $region7: #{tpu_custom_call.1} parent=1 // loop_footer_branch
      %19 = sbr.rel target = $region3
    $region8: #{tpu_custom_call.1} parent=1 // loop_exit
      _
    %5838 = vsyncpa [#allocation3], 1
    %s5839 = scalar_lea.sflag [#allocation3], 1
    %5840 = vsyncpa %s5839, 1
    %5841 = vsyncpa [#allocation6], 1
    %5842 = vsyncpa [#allocation9], 1
    %5843 = vsyncpa [#allocation4], 1
    %s5844 = scalar_lea.sflag [#allocation4], 1
    %5845 = vsyncpa %s5844, 1

</llo_original>
